<compile_context>
chip_gen: v6e
topology: v6e:2x2x1
jax: 0.10.0
libtpu: 0.0.40
codegen_flags: <defaults>
</compile_context>

<pallas_src>
import functools

import jax
import jax.numpy as jnp
from jax.experimental import pallas as pl
from jax.experimental.pallas import tpu as pltpu


# ----------------------------------------------------------------------------
# In-kernel helper: 3x3 "same" conv as 9 lane-shifted bf16 MXU matmuls
# ----------------------------------------------------------------------------
def _accum_conv3x3_taps(acc, src_bf16, w_taps, *, W, P, col, out_w):
    """Accumulate a 3x3 conv (cross-correlation) into `acc`.

    acc      : (Cout, out_w) f32 accumulator, output frame.
    src_bf16 : (C, out_w + 2*P) bf16 flat frame with a zero halo of P columns on
               each side of the region matching the output frame.
    w_taps   : (9, Cout, C) bf16, tap-major (t = ky*3 + kx).
    col      : (1, out_w) int32 image-column index per output position.
    Output position j of the output frame reads src column j + P + k with
    k = dy*W + dx; vertical zero padding is implicit in the halo, horizontal
    zero padding is enforced with the column mask.
    """
    t = 0
    for dy in (-1, 0, 1):
        for dx in (-1, 0, 1):
            k = dy * W + dx
            s = src_bf16[:, P + k: P + k + out_w]
            if dx == -1:                       # tap would wrap across row start
                s = jnp.where(col >= 1, s, 0.0)
            elif dx == 1:                      # tap would wrap across row end
                s = jnp.where(col <= W - 2, s, 0.0)
            acc = acc + jnp.dot(w_taps[t], s, preferred_element_type=jnp.float32)
            t += 1
    return acc


# ----------------------------------------------------------------------------
# Fused kernel: upsample + concat + (conv3x3 + BN + ReLU) x 2, per batch element
# ----------------------------------------------------------------------------
def _up_fused_kernel(x1_ref, x2_ref, up_mat_ref, w1x2_ref, w1x1_ref, w2_ref,
                     aff_ref, o_ref, *, H, W, P):
    HW = H * W
    wa = HW + 4 * P          # conv1 input frame width
    wb = HW + 2 * P          # conv1 output / conv2 input frame width

    # --- bilinear upsample of x1 (align_corners=True) as one MXU matmul ------
    # up_mat's columns already embed the conv1 input halo, so the upsampled
    # operand comes out of the MXU with its zero halo in place.
    x1 = x1_ref[0]                                            # (C1, H1*W1) f32
    up = jnp.dot(x1, up_mat_ref[...],
                 preferred_element_type=jnp.float32)          # (C1, wa) f32
    up_bf = up.astype(jnp.bfloat16)

    # x2 arrives already flat-padded to the same frame (tiny 1-D wrapper pad).
    x2_bf = x2_ref[0].astype(jnp.bfloat16)                    # (C2, wa) bf16

    w1x2 = w1x2_ref[...]                                      # (9, Cout, C2)
    w1x1 = w1x1_ref[...]                                      # (9, Cout, C1)
    w2 = w2_ref[...]                                          # (9, Cout, Cout)
    aff = aff_ref[...]                                        # (2, 2, Cout, 1)
    cout = w2.shape[1]

    # image-column index of every position of the two output frames
    iota_b = jax.lax.broadcasted_iota(jnp.int32, (1, wb), 1)
    col_b = (iota_b - P) % W
    iota_c = jax.lax.broadcasted_iota(jnp.int32, (1, HW), 1)
    col_c = iota_c % W

    # --- conv1 + folded BN1 + ReLU, computed on the halo'd frame -------------
    # torch.cat([x2, x1], dim=1): x2 channels first, then upsampled x1; the
    # concat is replaced by two accumulation passes with split weights.
    acc1 = jnp.zeros((cout, wb), jnp.float32)
    acc1 = _accum_conv3x3_taps(acc1, x2_bf, w1x2, W=W, P=P, col=col_b, out_w=wb)
    acc1 = _accum_conv3x3_taps(acc1, up_bf, w1x1, W=W, P=P, col=col_b, out_w=wb)
    y1 = jnp.maximum(acc1 * aff[0, 0] + aff[0, 1], 0.0)
    # zero the halo so it acts as conv2's zero padding
    in_img = (iota_b >= P) & (iota_b < P + HW)
    y1_bf = jnp.where(in_img, y1, 0.0).astype(jnp.bfloat16)   # (Cout, wb)

    # --- conv2 + folded BN2 + ReLU -------------------------------------------
    acc2 = jnp.zeros((cout, HW), jnp.float32)
    acc2 = _accum_conv3x3_taps(acc2, y1_bf, w2, W=W, P=P, col=col_c, out_w=HW)
    y2 = jnp.maximum(acc2 * aff[1, 0] + aff[1, 1], 0.0)

    # lane-dense store (last dim = H*W, a multiple of 128 here), already NCHW
    o_ref[0] = y2.astype(o_ref.dtype)


# ----------------------------------------------------------------------------
# Wrapper
# ----------------------------------------------------------------------------
def _bilinear_matrix(n_in, n_out):
    """1-D bilinear interpolation matrix (n_out, n_in), align_corners=True."""
    if n_out == 1:
        src = jnp.zeros((1,), jnp.float32)
    else:
        src = jnp.arange(n_out, dtype=jnp.float32) * ((n_in - 1) / (n_out - 1))
    grid = jnp.arange(n_in, dtype=jnp.float32)
    return jnp.maximum(0.0, 1.0 - jnp.abs(src[:, None] - grid[None, :]))


def up_forward(params, x1, x2, scale_factor=2):
    """Forward pass of `Up` (eval-mode BatchNorm). x1, x2 are NCHW float32."""
    eps = 1e-5
    N, C1, H1, W1 = x1.shape
    N2, C2, H, W = x2.shape
    assert N2 == N and H == H1 * scale_factor and W == W1 * scale_factor
    cout, cin, kh, kw = params["w1"].shape
    assert (kh, kw) == (3, 3) and cin == C1 + C2

    HW = H * W
    P = W + 1                      # halo so every 3x3 tap is a flat lane shift
    wa = HW + 4 * P                # conv1 input frame
    wb = HW + 2 * P                # conv1 output / conv2 input frame
    del wb  # (kernel recomputes it from H, W, P)

    # separable align_corners bilinear upsample as one matrix, columns padded
    # with the conv1-input halo (for large maps keep it separable / per-strip).
    a_h = _bilinear_matrix(H1, H)                        # (H, H1)
    a_w = _bilinear_matrix(W1, W)                        # (W, W1)
    up_mat = jnp.kron(a_h, a_w).T                        # (H1*W1, H*W)
    up_mat = jnp.pad(up_mat, ((0, 0), (2 * P, 2 * P)))   # (H1*W1, wa)

    # fold BatchNorm (inference / running stats) into per-channel scale & bias
    s1 = params["bn1_gamma"] * jax.lax.rsqrt(params["bn1_var"] + eps)
    b1 = params["bn1_beta"] - params["bn1_mean"] * s1
    s2 = params["bn2_gamma"] * jax.lax.rsqrt(params["bn2_var"] + eps)
    b2 = params["bn2_beta"] - params["bn2_mean"] * s2
    affine = jnp.stack([jnp.stack([s1, b1]), jnp.stack([s2, b2])])
    affine = affine.reshape(2, 2, cout, 1).astype(jnp.float32)

    # conv weights: OIHW -> tap-major (9, Cout, Cin_part), bf16.  conv1 weights
    # are split into the x2 part and the upsampled-x1 part so the channel
    # concat never has to be materialized in the kernel.
    w1 = jnp.transpose(params["w1"], (2, 3, 0, 1)).reshape(9, cout, cin)
    w1x2 = w1[:, :, :C2].astype(jnp.bfloat16)            # (9, Cout, C2)
    w1x1 = w1[:, :, C2:].astype(jnp.bfloat16)            # (9, Cout, C1)
    w2 = jnp.transpose(params["w2"], (2, 3, 0, 1)).reshape(9, cout, cout)
    w2 = w2.astype(jnp.bfloat16)

    # channels-major, flattened-spatial (lane-dense) inputs; x2 gets a tiny 1-D
    # flat pad so the kernel sees it already in the halo'd frame.
    x1f = x1.reshape(N, C1, H1 * W1)
    x2f = jnp.pad(x2.reshape(N, C2, HW), ((0, 0), (0, 0), (2 * P, 2 * P)))

    kernel = functools.partial(_up_fused_kernel, H=H, W=W, P=P)
    out_flat = pl.pallas_call(
        kernel,
        out_shape=jax.ShapeDtypeStruct((N, cout, HW), x1.dtype),
        grid=(N,),
        in_specs=[
            pl.BlockSpec((1, C1, H1 * W1), lambda n: (n, 0, 0)),
            pl.BlockSpec((1, C2, HW + 4 * P), lambda n: (n, 0, 0)),
            pl.BlockSpec((H1 * W1, HW + 4 * P), lambda n: (0, 0)),
            pl.BlockSpec((9, cout, C2), lambda n: (0, 0, 0)),
            pl.BlockSpec((9, cout, C1), lambda n: (0, 0, 0)),
            pl.BlockSpec((9, cout, cout), lambda n: (0, 0, 0)),
            pl.BlockSpec((2, 2, cout, 1), lambda n: (0, 0, 0, 0)),
        ],
        out_specs=pl.BlockSpec((1, cout, HW), lambda n: (n, 0, 0)),
        compiler_params=pltpu.CompilerParams(
            dimension_semantics=("parallel",),
        ),
    )(x1f, x2f, up_mat, w1x2, w1x1, w2, affine)

    return out_flat.reshape(N, cout, H, W)


# ----------------------------------------------------------------------------
# Parameters + pure-JAX f32 reference (for the correctness check)
# ----------------------------------------------------------------------------
def init_params(key, in_channels, out_channels):
    k1, k2, k3, k4, k5, k6 = jax.random.split(key, 6)
    return {
        # Conv2d(kernel_size=3, padding=1, bias=False) weights, PyTorch OIHW.
        "w1": 0.1 * jax.random.normal(
            k1, (out_channels, in_channels, 3, 3), jnp.float32),
        "w2": 0.1 * jax.random.normal(
            k2, (out_channels, out_channels, 3, 3), jnp.float32),
        # BatchNorm2d parameters (inference-mode running stats).
        "bn1_gamma": 1.0 + 0.1 * jax.random.normal(k3, (out_channels,), jnp.float32),
        "bn1_beta": 0.1 * jax.random.normal(k4, (out_channels,), jnp.float32),
        "bn1_mean": jnp.zeros((out_channels,), jnp.float32),
        "bn1_var": jnp.ones((out_channels,), jnp.float32),
        "bn2_gamma": 1.0 + 0.1 * jax.random.normal(k5, (out_channels,), jnp.float32),
        "bn2_beta": 0.1 * jax.random.normal(k6, (out_channels,), jnp.float32),
        "bn2_mean": jnp.zeros((out_channels,), jnp.float32),
        "bn2_var": jnp.ones((out_channels,), jnp.float32),
        # TODO(synk): training-mode BatchNorm (batch statistics + running-stat
        # updates) is not implemented; BN is applied in eval mode.
    }


def up_forward_reference(params, x1, x2, scale_factor=2, eps=1e-5):
    """Pure-JAX f32 reference (gather-based bilinear + lax conv)."""
    N, C1, H1, W1 = x1.shape
    H, W = H1 * scale_factor, W1 * scale_factor

    def coords(n_in, n_out):
        if n_out == 1:
            return jnp.zeros((1,), jnp.float32)
        return jnp.arange(n_out, dtype=jnp.float32) * ((n_in - 1) / (n_out - 1))

    ys, xs = coords(H1, H), coords(W1, W)
    y0 = jnp.floor(ys).astype(jnp.int32)
    x0 = jnp.floor(xs).astype(jnp.int32)
    y1i = jnp.minimum(y0 + 1, H1 - 1)
    x1i = jnp.minimum(x0 + 1, W1 - 1)
    wy = (ys - y0)[None, None, :, None]
    wx = (xs - x0)[None, None, None, :]

    def gather(yi, xi):
        return x1[:, :, yi[:, None], xi[None, :]]

    top = gather(y0, x0) * (1 - wx) + gather(y0, x1i) * wx
    bot = gather(y1i, x0) * (1 - wx) + gather(y1i, x1i) * wx
    up = top * (1 - wy) + bot * wy

    x = jnp.concatenate([x2, up], axis=1)

    def conv_bn_relu(x, w, gamma, beta, mean, var):
        y = jax.lax.conv_general_dilated(
            x, w, window_strides=(1, 1), padding=((1, 1), (1, 1)),
            dimension_numbers=("NCHW", "OIHW", "NCHW"))
        s = gamma / jnp.sqrt(var + eps)
        b = beta - mean * s
        return jnp.maximum(y * s[None, :, None, None] + b[None, :, None, None], 0.0)

    y = conv_bn_relu(x, params["w1"], params["bn1_gamma"], params["bn1_beta"],
                     params["bn1_mean"], params["bn1_var"])
    y = conv_bn_relu(y, params["w2"], params["bn2_gamma"], params["bn2_beta"],
                     params["bn2_mean"], params["bn2_var"])
    return y


if __name__ == "__main__":
    key = jax.random.PRNGKey(0)
    kx1, kx2, kp = jax.random.split(key, 3)

    B = 2
    C1, C2 = 4, 4                 # x1 (to be upsampled) / x2 (skip) channels
    H1, W1 = 8, 8                 # low-res map -> upsampled to 16 x 16
    in_channels = C1 + C2
    out_channels = 4

    x1 = jax.random.normal(kx1, (B, C1, H1, W1), jnp.float32)          # NCHW
    x2 = jax.random.normal(kx2, (B, C2, 2 * H1, 2 * W1), jnp.float32)  # NCHW
    params = init_params(kp, in_channels, out_channels)

    fwd = jax.jit(functools.partial(up_forward, scale_factor=2))
    out = fwd(params, x1, x2)
    jax.block_until_ready(out)
    assert out.shape == (B, out_channels, 2 * H1, 2 * W1), out.shape

    # correctness check against the pure-JAX f32 reference (kernel uses bf16
    # MXU operands with f32 accumulation -> allow a small tolerance)
    ref = up_forward_reference(params, x1, x2, scale_factor=2)
    err = float(jnp.max(jnp.abs(out - ref)))
    assert err < 1e-1, f"max abs error vs reference: {err}"

    print("KERNEL_OK")
</pallas_src>

<mosaic_0001>
module attributes {stable_mosaic.version = 11 : i64} {
  func.func @_up_fused_kernel(%arg0: i32, %arg1: memref<1x4x64xf32, #tpu.memory_space<vmem>>, %arg2: memref<1x4x324xf32, #tpu.memory_space<vmem>>, %arg3: memref<64x324xf32, #tpu.memory_space<vmem>>, %arg4: memref<9x4x4xbf16, #tpu.memory_space<vmem>>, %arg5: memref<9x4x4xbf16, #tpu.memory_space<vmem>>, %arg6: memref<9x4x4xbf16, #tpu.memory_space<vmem>>, %arg7: memref<2x2x4x1xf32, #tpu.memory_space<vmem>>, %arg8: memref<1x4x256xf32, #tpu.memory_space<vmem>>) attributes {dimension_semantics = [#tpu.dimension_semantics<parallel>], iteration_bounds = array<i64: 2>, scalar_prefetch = 0 : i64, scratch_operands = 0 : i64, tpu.core_type = #tpu.core_type<tc>, window_params = [{transform_indices = @transform_0, window_bounds = array<i64: 1, 4, 64>}, {transform_indices = @transform_1, window_bounds = array<i64: 1, 4, 324>}, {pipeline_mode = #tpu.pipeline_mode<synchronous>, transform_indices = @transform_2, window_bounds = array<i64: 64, 324>}, {pipeline_mode = #tpu.pipeline_mode<synchronous>, transform_indices = @transform_3, window_bounds = array<i64: 9, 4, 4>}, {pipeline_mode = #tpu.pipeline_mode<synchronous>, transform_indices = @transform_4, window_bounds = array<i64: 9, 4, 4>}, {pipeline_mode = #tpu.pipeline_mode<synchronous>, transform_indices = @transform_5, window_bounds = array<i64: 9, 4, 4>}, {pipeline_mode = #tpu.pipeline_mode<synchronous>, transform_indices = @transform_6, window_bounds = array<i64: 2, 2, 4, 1>}, {transform_indices = @transform_7, window_bounds = array<i64: 1, 4, 256>}]} {
    %c0 = arith.constant 0 : index
    %c0_0 = arith.constant 0 : index
    %c0_1 = arith.constant 0 : index
    %0 = vector.load %arg1[%c0, %c0_0, %c0_1] : memref<1x4x64xf32, #tpu.memory_space<vmem>>, vector<1x4x64xf32>
    %1 = vector.shape_cast %0 : vector<1x4x64xf32> to vector<4x64xf32>
    %c0_2 = arith.constant 0 : index
    %c0_3 = arith.constant 0 : index
    %2 = vector.load %arg3[%c0_2, %c0_3] : memref<64x324xf32, #tpu.memory_space<vmem>>, vector<64x324xf32>
    %cst = arith.constant dense<0.000000e+00> : vector<4x324xf32>
    %3 = tpu.matmul %1, %2, %cst {dimension_numbers = #tpu.dot_dimension_numbers<[1], [0], [0], [1], [0, 0, 1, 1], [], []>} : vector<4x64xf32>, vector<64x324xf32>, vector<4x324xf32> -> vector<4x324xf32>
    %4 = arith.truncf %3 : vector<4x324xf32> to vector<4x324xbf16>
    %c0_4 = arith.constant 0 : index
    %c0_5 = arith.constant 0 : index
    %c0_6 = arith.constant 0 : index
    %5 = vector.load %arg2[%c0_4, %c0_5, %c0_6] : memref<1x4x324xf32, #tpu.memory_space<vmem>>, vector<1x4x324xf32>
    %6 = vector.shape_cast %5 : vector<1x4x324xf32> to vector<4x324xf32>
    %7 = arith.truncf %6 : vector<4x324xf32> to vector<4x324xbf16>
    %c0_7 = arith.constant 0 : index
    %c0_8 = arith.constant 0 : index
    %c0_9 = arith.constant 0 : index
    %8 = vector.load %arg4[%c0_7, %c0_8, %c0_9] : memref<9x4x4xbf16, #tpu.memory_space<vmem>>, vector<9x4x4xbf16>
    %c0_10 = arith.constant 0 : index
    %c0_11 = arith.constant 0 : index
    %c0_12 = arith.constant 0 : index
    %9 = vector.load %arg5[%c0_10, %c0_11, %c0_12] : memref<9x4x4xbf16, #tpu.memory_space<vmem>>, vector<9x4x4xbf16>
    %c0_13 = arith.constant 0 : index
    %c0_14 = arith.constant 0 : index
    %c0_15 = arith.constant 0 : index
    %10 = vector.load %arg6[%c0_13, %c0_14, %c0_15] : memref<9x4x4xbf16, #tpu.memory_space<vmem>>, vector<9x4x4xbf16>
    %c0_16 = arith.constant 0 : index
    %c0_17 = arith.constant 0 : index
    %c0_18 = arith.constant 0 : index
    %c0_19 = arith.constant 0 : index
    %11 = vector.load %arg7[%c0_16, %c0_17, %c0_18, %c0_19] : memref<2x2x4x1xf32, #tpu.memory_space<vmem>>, vector<2x2x4x1xf32>
    %12 = tpu.iota {dimensions = array<i32: 1>} : vector<1x290xi32>
    %c17_i32 = arith.constant 17 : i32
    %13 = vector.broadcast %c17_i32 : i32 to vector<1x290xi32>
    %14 = arith.subi %12, %13 : vector<1x290xi32>
    %c16_i32 = arith.constant 16 : i32
    %c0_i32 = arith.constant 0 : i32
    %15 = arith.cmpi eq, %c16_i32, %c0_i32 : i32
    %c1_i32 = arith.constant 1 : i32
    %16 = arith.select %15, %c1_i32, %c16_i32 : i32
    %17 = vector.broadcast %16 : i32 to vector<1x290xi32>
    %18 = arith.remsi %14, %17 : vector<1x290xi32>
    %c0_i32_20 = arith.constant 0 : i32
    %19 = vector.broadcast %c0_i32_20 : i32 to vector<1x290xi32>
    %20 = arith.cmpi ne, %18, %19 : vector<1x290xi32>
    %c0_i32_21 = arith.constant 0 : i32
    %21 = vector.broadcast %c0_i32_21 : i32 to vector<1x290xi32>
    %22 = arith.cmpi slt, %18, %21 : vector<1x290xi32>
    %c0_i32_22 = arith.constant 0 : i32
    %23 = arith.cmpi slt, %16, %c0_i32_22 : i32
    %24 = vector.broadcast %23 : i1 to vector<1x290xi1>
    %25 = vector.broadcast %24 : vector<1x290xi1> to vector<1x290xi1>
    %26 = arith.xori %22, %25 : vector<1x290xi1>
    %27 = arith.andi %26, %20 : vector<1x290xi1>
    %28 = vector.broadcast %16 : i32 to vector<1x290xi32>
    %29 = arith.addi %18, %28 : vector<1x290xi32>
    %30 = arith.select %27, %29, %18 : vector<1x290xi1>, vector<1x290xi32>
    %31 = tpu.iota {dimensions = array<i32: 1>} : vector<1x256xi32>
    %c16_i32_23 = arith.constant 16 : i32
    %c0_i32_24 = arith.constant 0 : i32
    %32 = arith.cmpi eq, %c16_i32_23, %c0_i32_24 : i32
    %c1_i32_25 = arith.constant 1 : i32
    %33 = arith.select %32, %c1_i32_25, %c16_i32_23 : i32
    %34 = vector.broadcast %33 : i32 to vector<1x256xi32>
    %35 = arith.remsi %31, %34 : vector<1x256xi32>
    %c0_i32_26 = arith.constant 0 : i32
    %36 = vector.broadcast %c0_i32_26 : i32 to vector<1x256xi32>
    %37 = arith.cmpi ne, %35, %36 : vector<1x256xi32>
    %c0_i32_27 = arith.constant 0 : i32
    %38 = vector.broadcast %c0_i32_27 : i32 to vector<1x256xi32>
    %39 = arith.cmpi slt, %35, %38 : vector<1x256xi32>
    %c0_i32_28 = arith.constant 0 : i32
    %40 = arith.cmpi slt, %33, %c0_i32_28 : i32
    %41 = vector.broadcast %40 : i1 to vector<1x256xi1>
    %42 = vector.broadcast %41 : vector<1x256xi1> to vector<1x256xi1>
    %43 = arith.xori %39, %42 : vector<1x256xi1>
    %44 = arith.andi %43, %37 : vector<1x256xi1>
    %45 = vector.broadcast %33 : i32 to vector<1x256xi32>
    %46 = arith.addi %35, %45 : vector<1x256xi32>
    %47 = arith.select %44, %46, %35 : vector<1x256xi1>, vector<1x256xi32>
    %cst_29 = arith.constant 0.000000e+00 : f32
    %48 = vector.broadcast %cst_29 : f32 to vector<4x290xf32>
    %49 = vector.extract_strided_slice %7 {offsets = [0, 0], sizes = [4, 290], strides = [1, 1]} : vector<4x324xbf16> to vector<4x290xbf16>
    %c1_i32_30 = arith.constant 1 : i32
    %50 = vector.broadcast %c1_i32_30 : i32 to vector<1x290xi32>
    %51 = arith.cmpi sge, %30, %50 : vector<1x290xi32>
    %cst_31 = arith.constant 0.000000e+00 : f32
    %52 = arith.truncf %cst_31 : f32 to bf16
    %53 = vector.shape_cast %51 : vector<1x290xi1> to vector<1x290xi1>
    %54 = vector.broadcast %53 : vector<1x290xi1> to vector<4x290xi1>
    %55 = vector.broadcast %52 : bf16 to vector<4x290xbf16>
    %56 = arith.select %54, %49, %55 : vector<4x290xi1>, vector<4x290xbf16>
    %57 = vector.extract_strided_slice %8 {offsets = [0, 0, 0], sizes = [1, 4, 4], strides = [1, 1, 1]} : vector<9x4x4xbf16> to vector<1x4x4xbf16>
    %58 = vector.shape_cast %57 : vector<1x4x4xbf16> to vector<4x4xbf16>
    %cst_32 = arith.constant dense<0.000000e+00> : vector<4x290xf32>
    %59 = tpu.matmul %58, %56, %cst_32 {dimension_numbers = #tpu.dot_dimension_numbers<[1], [0], [0], [1], [0, 0, 1, 1], [], []>} : vector<4x4xbf16>, vector<4x290xbf16>, vector<4x290xf32> -> vector<4x290xf32>
    %60 = arith.addf %48, %59 : vector<4x290xf32>
    %61 = vector.extract_strided_slice %7 {offsets = [0, 1], sizes = [4, 290], strides = [1, 1]} : vector<4x324xbf16> to vector<4x290xbf16>
    %62 = vector.extract_strided_slice %8 {offsets = [1, 0, 0], sizes = [1, 4, 4], strides = [1, 1, 1]} : vector<9x4x4xbf16> to vector<1x4x4xbf16>
    %63 = vector.shape_cast %62 : vector<1x4x4xbf16> to vector<4x4xbf16>
    %cst_33 = arith.constant dense<0.000000e+00> : vector<4x290xf32>
    %64 = tpu.matmul %63, %61, %cst_33 {dimension_numbers = #tpu.dot_dimension_numbers<[1], [0], [0], [1], [0, 0, 1, 1], [], []>} : vector<4x4xbf16>, vector<4x290xbf16>, vector<4x290xf32> -> vector<4x290xf32>
    %65 = arith.addf %60, %64 : vector<4x290xf32>
    %66 = vector.extract_strided_slice %7 {offsets = [0, 2], sizes = [4, 290], strides = [1, 1]} : vector<4x324xbf16> to vector<4x290xbf16>
    %c14_i32 = arith.constant 14 : i32
    %67 = vector.broadcast %c14_i32 : i32 to vector<1x290xi32>
    %68 = arith.cmpi sle, %30, %67 : vector<1x290xi32>
    %cst_34 = arith.constant 0.000000e+00 : f32
    %69 = arith.truncf %cst_34 : f32 to bf16
    %70 = vector.shape_cast %68 : vector<1x290xi1> to vector<1x290xi1>
    %71 = vector.broadcast %70 : vector<1x290xi1> to vector<4x290xi1>
    %72 = vector.broadcast %69 : bf16 to vector<4x290xbf16>
    %73 = arith.select %71, %66, %72 : vector<4x290xi1>, vector<4x290xbf16>
    %74 = vector.extract_strided_slice %8 {offsets = [2, 0, 0], sizes = [1, 4, 4], strides = [1, 1, 1]} : vector<9x4x4xbf16> to vector<1x4x4xbf16>
    %75 = vector.shape_cast %74 : vector<1x4x4xbf16> to vector<4x4xbf16>
    %cst_35 = arith.constant dense<0.000000e+00> : vector<4x290xf32>
    %76 = tpu.matmul %75, %73, %cst_35 {dimension_numbers = #tpu.dot_dimension_numbers<[1], [0], [0], [1], [0, 0, 1, 1], [], []>} : vector<4x4xbf16>, vector<4x290xbf16>, vector<4x290xf32> -> vector<4x290xf32>
    %77 = arith.addf %65, %76 : vector<4x290xf32>
    %78 = vector.extract_strided_slice %7 {offsets = [0, 16], sizes = [4, 290], strides = [1, 1]} : vector<4x324xbf16> to vector<4x290xbf16>
    %c1_i32_36 = arith.constant 1 : i32
    %79 = vector.broadcast %c1_i32_36 : i32 to vector<1x290xi32>
    %80 = arith.cmpi sge, %30, %79 : vector<1x290xi32>
    %cst_37 = arith.constant 0.000000e+00 : f32
    %81 = arith.truncf %cst_37 : f32 to bf16
    %82 = vector.shape_cast %80 : vector<1x290xi1> to vector<1x290xi1>
    %83 = vector.broadcast %82 : vector<1x290xi1> to vector<4x290xi1>
    %84 = vector.broadcast %81 : bf16 to vector<4x290xbf16>
    %85 = arith.select %83, %78, %84 : vector<4x290xi1>, vector<4x290xbf16>
    %86 = vector.extract_strided_slice %8 {offsets = [3, 0, 0], sizes = [1, 4, 4], strides = [1, 1, 1]} : vector<9x4x4xbf16> to vector<1x4x4xbf16>
    %87 = vector.shape_cast %86 : vector<1x4x4xbf16> to vector<4x4xbf16>
    %cst_38 = arith.constant dense<0.000000e+00> : vector<4x290xf32>
    %88 = tpu.matmul %87, %85, %cst_38 {dimension_numbers = #tpu.dot_dimension_numbers<[1], [0], [0], [1], [0, 0, 1, 1], [], []>} : vector<4x4xbf16>, vector<4x290xbf16>, vector<4x290xf32> -> vector<4x290xf32>
    %89 = arith.addf %77, %88 : vector<4x290xf32>
    %90 = vector.extract_strided_slice %7 {offsets = [0, 17], sizes = [4, 290], strides = [1, 1]} : vector<4x324xbf16> to vector<4x290xbf16>
    %91 = vector.extract_strided_slice %8 {offsets = [4, 0, 0], sizes = [1, 4, 4], strides = [1, 1, 1]} : vector<9x4x4xbf16> to vector<1x4x4xbf16>
    %92 = vector.shape_cast %91 : vector<1x4x4xbf16> to vector<4x4xbf16>
    %cst_39 = arith.constant dense<0.000000e+00> : vector<4x290xf32>
    %93 = tpu.matmul %92, %90, %cst_39 {dimension_numbers = #tpu.dot_dimension_numbers<[1], [0], [0], [1], [0, 0, 1, 1], [], []>} : vector<4x4xbf16>, vector<4x290xbf16>, vector<4x290xf32> -> vector<4x290xf32>
    %94 = arith.addf %89, %93 : vector<4x290xf32>
    %95 = vector.extract_strided_slice %7 {offsets = [0, 18], sizes = [4, 290], strides = [1, 1]} : vector<4x324xbf16> to vector<4x290xbf16>
    %c14_i32_40 = arith.constant 14 : i32
    %96 = vector.broadcast %c14_i32_40 : i32 to vector<1x290xi32>
    %97 = arith.cmpi sle, %30, %96 : vector<1x290xi32>
    %cst_41 = arith.constant 0.000000e+00 : f32
    %98 = arith.truncf %cst_41 : f32 to bf16
    %99 = vector.shape_cast %97 : vector<1x290xi1> to vector<1x290xi1>
    %100 = vector.broadcast %99 : vector<1x290xi1> to vector<4x290xi1>
    %101 = vector.broadcast %98 : bf16 to vector<4x290xbf16>
    %102 = arith.select %100, %95, %101 : vector<4x290xi1>, vector<4x290xbf16>
    %103 = vector.extract_strided_slice %8 {offsets = [5, 0, 0], sizes = [1, 4, 4], strides = [1, 1, 1]} : vector<9x4x4xbf16> to vector<1x4x4xbf16>
    %104 = vector.shape_cast %103 : vector<1x4x4xbf16> to vector<4x4xbf16>
    %cst_42 = arith.constant dense<0.000000e+00> : vector<4x290xf32>
    %105 = tpu.matmul %104, %102, %cst_42 {dimension_numbers = #tpu.dot_dimension_numbers<[1], [0], [0], [1], [0, 0, 1, 1], [], []>} : vector<4x4xbf16>, vector<4x290xbf16>, vector<4x290xf32> -> vector<4x290xf32>
    %106 = arith.addf %94, %105 : vector<4x290xf32>
    %107 = vector.extract_strided_slice %7 {offsets = [0, 32], sizes = [4, 290], strides = [1, 1]} : vector<4x324xbf16> to vector<4x290xbf16>
    %c1_i32_43 = arith.constant 1 : i32
    %108 = vector.broadcast %c1_i32_43 : i32 to vector<1x290xi32>
    %109 = arith.cmpi sge, %30, %108 : vector<1x290xi32>
    %cst_44 = arith.constant 0.000000e+00 : f32
    %110 = arith.truncf %cst_44 : f32 to bf16
    %111 = vector.shape_cast %109 : vector<1x290xi1> to vector<1x290xi1>
    %112 = vector.broadcast %111 : vector<1x290xi1> to vector<4x290xi1>
    %113 = vector.broadcast %110 : bf16 to vector<4x290xbf16>
    %114 = arith.select %112, %107, %113 : vector<4x290xi1>, vector<4x290xbf16>
    %115 = vector.extract_strided_slice %8 {offsets = [6, 0, 0], sizes = [1, 4, 4], strides = [1, 1, 1]} : vector<9x4x4xbf16> to vector<1x4x4xbf16>
    %116 = vector.shape_cast %115 : vector<1x4x4xbf16> to vector<4x4xbf16>
    %cst_45 = arith.constant dense<0.000000e+00> : vector<4x290xf32>
    %117 = tpu.matmul %116, %114, %cst_45 {dimension_numbers = #tpu.dot_dimension_numbers<[1], [0], [0], [1], [0, 0, 1, 1], [], []>} : vector<4x4xbf16>, vector<4x290xbf16>, vector<4x290xf32> -> vector<4x290xf32>
    %118 = arith.addf %106, %117 : vector<4x290xf32>
    %119 = vector.extract_strided_slice %7 {offsets = [0, 33], sizes = [4, 290], strides = [1, 1]} : vector<4x324xbf16> to vector<4x290xbf16>
    %120 = vector.extract_strided_slice %8 {offsets = [7, 0, 0], sizes = [1, 4, 4], strides = [1, 1, 1]} : vector<9x4x4xbf16> to vector<1x4x4xbf16>
    %121 = vector.shape_cast %120 : vector<1x4x4xbf16> to vector<4x4xbf16>
    %cst_46 = arith.constant dense<0.000000e+00> : vector<4x290xf32>
    %122 = tpu.matmul %121, %119, %cst_46 {dimension_numbers = #tpu.dot_dimension_numbers<[1], [0], [0], [1], [0, 0, 1, 1], [], []>} : vector<4x4xbf16>, vector<4x290xbf16>, vector<4x290xf32> -> vector<4x290xf32>
    %123 = arith.addf %118, %122 : vector<4x290xf32>
    %124 = vector.extract_strided_slice %7 {offsets = [0, 34], sizes = [4, 290], strides = [1, 1]} : vector<4x324xbf16> to vector<4x290xbf16>
    %c14_i32_47 = arith.constant 14 : i32
    %125 = vector.broadcast %c14_i32_47 : i32 to vector<1x290xi32>
    %126 = arith.cmpi sle, %30, %125 : vector<1x290xi32>
    %cst_48 = arith.constant 0.000000e+00 : f32
    %127 = arith.truncf %cst_48 : f32 to bf16
    %128 = vector.shape_cast %126 : vector<1x290xi1> to vector<1x290xi1>
    %129 = vector.broadcast %128 : vector<1x290xi1> to vector<4x290xi1>
    %130 = vector.broadcast %127 : bf16 to vector<4x290xbf16>
    %131 = arith.select %129, %124, %130 : vector<4x290xi1>, vector<4x290xbf16>
    %132 = vector.extract_strided_slice %8 {offsets = [8, 0, 0], sizes = [1, 4, 4], strides = [1, 1, 1]} : vector<9x4x4xbf16> to vector<1x4x4xbf16>
    %133 = vector.shape_cast %132 : vector<1x4x4xbf16> to vector<4x4xbf16>
    %cst_49 = arith.constant dense<0.000000e+00> : vector<4x290xf32>
    %134 = tpu.matmul %133, %131, %cst_49 {dimension_numbers = #tpu.dot_dimension_numbers<[1], [0], [0], [1], [0, 0, 1, 1], [], []>} : vector<4x4xbf16>, vector<4x290xbf16>, vector<4x290xf32> -> vector<4x290xf32>
    %135 = arith.addf %123, %134 : vector<4x290xf32>
    %136 = vector.extract_strided_slice %4 {offsets = [0, 0], sizes = [4, 290], strides = [1, 1]} : vector<4x324xbf16> to vector<4x290xbf16>
    %c1_i32_50 = arith.constant 1 : i32
    %137 = vector.broadcast %c1_i32_50 : i32 to vector<1x290xi32>
    %138 = arith.cmpi sge, %30, %137 : vector<1x290xi32>
    %cst_51 = arith.constant 0.000000e+00 : f32
    %139 = arith.truncf %cst_51 : f32 to bf16
    %140 = vector.shape_cast %138 : vector<1x290xi1> to vector<1x290xi1>
    %141 = vector.broadcast %140 : vector<1x290xi1> to vector<4x290xi1>
    %142 = vector.broadcast %139 : bf16 to vector<4x290xbf16>
    %143 = arith.select %141, %136, %142 : vector<4x290xi1>, vector<4x290xbf16>
    %144 = vector.extract_strided_slice %9 {offsets = [0, 0, 0], sizes = [1, 4, 4], strides = [1, 1, 1]} : vector<9x4x4xbf16> to vector<1x4x4xbf16>
    %145 = vector.shape_cast %144 : vector<1x4x4xbf16> to vector<4x4xbf16>
    %cst_52 = arith.constant dense<0.000000e+00> : vector<4x290xf32>
    %146 = tpu.matmul %145, %143, %cst_52 {dimension_numbers = #tpu.dot_dimension_numbers<[1], [0], [0], [1], [0, 0, 1, 1], [], []>} : vector<4x4xbf16>, vector<4x290xbf16>, vector<4x290xf32> -> vector<4x290xf32>
    %147 = arith.addf %135, %146 : vector<4x290xf32>
    %148 = vector.extract_strided_slice %4 {offsets = [0, 1], sizes = [4, 290], strides = [1, 1]} : vector<4x324xbf16> to vector<4x290xbf16>
    %149 = vector.extract_strided_slice %9 {offsets = [1, 0, 0], sizes = [1, 4, 4], strides = [1, 1, 1]} : vector<9x4x4xbf16> to vector<1x4x4xbf16>
    %150 = vector.shape_cast %149 : vector<1x4x4xbf16> to vector<4x4xbf16>
    %cst_53 = arith.constant dense<0.000000e+00> : vector<4x290xf32>
    %151 = tpu.matmul %150, %148, %cst_53 {dimension_numbers = #tpu.dot_dimension_numbers<[1], [0], [0], [1], [0, 0, 1, 1], [], []>} : vector<4x4xbf16>, vector<4x290xbf16>, vector<4x290xf32> -> vector<4x290xf32>
    %152 = arith.addf %147, %151 : vector<4x290xf32>
    %153 = vector.extract_strided_slice %4 {offsets = [0, 2], sizes = [4, 290], strides = [1, 1]} : vector<4x324xbf16> to vector<4x290xbf16>
    %c14_i32_54 = arith.constant 14 : i32
    %154 = vector.broadcast %c14_i32_54 : i32 to vector<1x290xi32>
    %155 = arith.cmpi sle, %30, %154 : vector<1x290xi32>
    %cst_55 = arith.constant 0.000000e+00 : f32
    %156 = arith.truncf %cst_55 : f32 to bf16
    %157 = vector.shape_cast %155 : vector<1x290xi1> to vector<1x290xi1>
    %158 = vector.broadcast %157 : vector<1x290xi1> to vector<4x290xi1>
    %159 = vector.broadcast %156 : bf16 to vector<4x290xbf16>
    %160 = arith.select %158, %153, %159 : vector<4x290xi1>, vector<4x290xbf16>
    %161 = vector.extract_strided_slice %9 {offsets = [2, 0, 0], sizes = [1, 4, 4], strides = [1, 1, 1]} : vector<9x4x4xbf16> to vector<1x4x4xbf16>
    %162 = vector.shape_cast %161 : vector<1x4x4xbf16> to vector<4x4xbf16>
    %cst_56 = arith.constant dense<0.000000e+00> : vector<4x290xf32>
    %163 = tpu.matmul %162, %160, %cst_56 {dimension_numbers = #tpu.dot_dimension_numbers<[1], [0], [0], [1], [0, 0, 1, 1], [], []>} : vector<4x4xbf16>, vector<4x290xbf16>, vector<4x290xf32> -> vector<4x290xf32>
    %164 = arith.addf %152, %163 : vector<4x290xf32>
    %165 = vector.extract_strided_slice %4 {offsets = [0, 16], sizes = [4, 290], strides = [1, 1]} : vector<4x324xbf16> to vector<4x290xbf16>
    %c1_i32_57 = arith.constant 1 : i32
    %166 = vector.broadcast %c1_i32_57 : i32 to vector<1x290xi32>
    %167 = arith.cmpi sge, %30, %166 : vector<1x290xi32>
    %cst_58 = arith.constant 0.000000e+00 : f32
    %168 = arith.truncf %cst_58 : f32 to bf16
    %169 = vector.shape_cast %167 : vector<1x290xi1> to vector<1x290xi1>
    %170 = vector.broadcast %169 : vector<1x290xi1> to vector<4x290xi1>
    %171 = vector.broadcast %168 : bf16 to vector<4x290xbf16>
    %172 = arith.select %170, %165, %171 : vector<4x290xi1>, vector<4x290xbf16>
    %173 = vector.extract_strided_slice %9 {offsets = [3, 0, 0], sizes = [1, 4, 4], strides = [1, 1, 1]} : vector<9x4x4xbf16> to vector<1x4x4xbf16>
    %174 = vector.shape_cast %173 : vector<1x4x4xbf16> to vector<4x4xbf16>
    %cst_59 = arith.constant dense<0.000000e+00> : vector<4x290xf32>
    %175 = tpu.matmul %174, %172, %cst_59 {dimension_numbers = #tpu.dot_dimension_numbers<[1], [0], [0], [1], [0, 0, 1, 1], [], []>} : vector<4x4xbf16>, vector<4x290xbf16>, vector<4x290xf32> -> vector<4x290xf32>
    %176 = arith.addf %164, %175 : vector<4x290xf32>
    %177 = vector.extract_strided_slice %4 {offsets = [0, 17], sizes = [4, 290], strides = [1, 1]} : vector<4x324xbf16> to vector<4x290xbf16>
    %178 = vector.extract_strided_slice %9 {offsets = [4, 0, 0], sizes = [1, 4, 4], strides = [1, 1, 1]} : vector<9x4x4xbf16> to vector<1x4x4xbf16>
    %179 = vector.shape_cast %178 : vector<1x4x4xbf16> to vector<4x4xbf16>
    %cst_60 = arith.constant dense<0.000000e+00> : vector<4x290xf32>
    %180 = tpu.matmul %179, %177, %cst_60 {dimension_numbers = #tpu.dot_dimension_numbers<[1], [0], [0], [1], [0, 0, 1, 1], [], []>} : vector<4x4xbf16>, vector<4x290xbf16>, vector<4x290xf32> -> vector<4x290xf32>
    %181 = arith.addf %176, %180 : vector<4x290xf32>
    %182 = vector.extract_strided_slice %4 {offsets = [0, 18], sizes = [4, 290], strides = [1, 1]} : vector<4x324xbf16> to vector<4x290xbf16>
    %c14_i32_61 = arith.constant 14 : i32
    %183 = vector.broadcast %c14_i32_61 : i32 to vector<1x290xi32>
    %184 = arith.cmpi sle, %30, %183 : vector<1x290xi32>
    %cst_62 = arith.constant 0.000000e+00 : f32
    %185 = arith.truncf %cst_62 : f32 to bf16
    %186 = vector.shape_cast %184 : vector<1x290xi1> to vector<1x290xi1>
    %187 = vector.broadcast %186 : vector<1x290xi1> to vector<4x290xi1>
    %188 = vector.broadcast %185 : bf16 to vector<4x290xbf16>
    %189 = arith.select %187, %182, %188 : vector<4x290xi1>, vector<4x290xbf16>
    %190 = vector.extract_strided_slice %9 {offsets = [5, 0, 0], sizes = [1, 4, 4], strides = [1, 1, 1]} : vector<9x4x4xbf16> to vector<1x4x4xbf16>
    %191 = vector.shape_cast %190 : vector<1x4x4xbf16> to vector<4x4xbf16>
    %cst_63 = arith.constant dense<0.000000e+00> : vector<4x290xf32>
    %192 = tpu.matmul %191, %189, %cst_63 {dimension_numbers = #tpu.dot_dimension_numbers<[1], [0], [0], [1], [0, 0, 1, 1], [], []>} : vector<4x4xbf16>, vector<4x290xbf16>, vector<4x290xf32> -> vector<4x290xf32>
    %193 = arith.addf %181, %192 : vector<4x290xf32>
    %194 = vector.extract_strided_slice %4 {offsets = [0, 32], sizes = [4, 290], strides = [1, 1]} : vector<4x324xbf16> to vector<4x290xbf16>
    %c1_i32_64 = arith.constant 1 : i32
    %195 = vector.broadcast %c1_i32_64 : i32 to vector<1x290xi32>
    %196 = arith.cmpi sge, %30, %195 : vector<1x290xi32>
    %cst_65 = arith.constant 0.000000e+00 : f32
    %197 = arith.truncf %cst_65 : f32 to bf16
    %198 = vector.shape_cast %196 : vector<1x290xi1> to vector<1x290xi1>
    %199 = vector.broadcast %198 : vector<1x290xi1> to vector<4x290xi1>
    %200 = vector.broadcast %197 : bf16 to vector<4x290xbf16>
    %201 = arith.select %199, %194, %200 : vector<4x290xi1>, vector<4x290xbf16>
    %202 = vector.extract_strided_slice %9 {offsets = [6, 0, 0], sizes = [1, 4, 4], strides = [1, 1, 1]} : vector<9x4x4xbf16> to vector<1x4x4xbf16>
    %203 = vector.shape_cast %202 : vector<1x4x4xbf16> to vector<4x4xbf16>
    %cst_66 = arith.constant dense<0.000000e+00> : vector<4x290xf32>
    %204 = tpu.matmul %203, %201, %cst_66 {dimension_numbers = #tpu.dot_dimension_numbers<[1], [0], [0], [1], [0, 0, 1, 1], [], []>} : vector<4x4xbf16>, vector<4x290xbf16>, vector<4x290xf32> -> vector<4x290xf32>
    %205 = arith.addf %193, %204 : vector<4x290xf32>
    %206 = vector.extract_strided_slice %4 {offsets = [0, 33], sizes = [4, 290], strides = [1, 1]} : vector<4x324xbf16> to vector<4x290xbf16>
    %207 = vector.extract_strided_slice %9 {offsets = [7, 0, 0], sizes = [1, 4, 4], strides = [1, 1, 1]} : vector<9x4x4xbf16> to vector<1x4x4xbf16>
    %208 = vector.shape_cast %207 : vector<1x4x4xbf16> to vector<4x4xbf16>
    %cst_67 = arith.constant dense<0.000000e+00> : vector<4x290xf32>
    %209 = tpu.matmul %208, %206, %cst_67 {dimension_numbers = #tpu.dot_dimension_numbers<[1], [0], [0], [1], [0, 0, 1, 1], [], []>} : vector<4x4xbf16>, vector<4x290xbf16>, vector<4x290xf32> -> vector<4x290xf32>
    %210 = arith.addf %205, %209 : vector<4x290xf32>
    %211 = vector.extract_strided_slice %4 {offsets = [0, 34], sizes = [4, 290], strides = [1, 1]} : vector<4x324xbf16> to vector<4x290xbf16>
    %c14_i32_68 = arith.constant 14 : i32
    %212 = vector.broadcast %c14_i32_68 : i32 to vector<1x290xi32>
    %213 = arith.cmpi sle, %30, %212 : vector<1x290xi32>
    %cst_69 = arith.constant 0.000000e+00 : f32
    %214 = arith.truncf %cst_69 : f32 to bf16
    %215 = vector.shape_cast %213 : vector<1x290xi1> to vector<1x290xi1>
    %216 = vector.broadcast %215 : vector<1x290xi1> to vector<4x290xi1>
    %217 = vector.broadcast %214 : bf16 to vector<4x290xbf16>
    %218 = arith.select %216, %211, %217 : vector<4x290xi1>, vector<4x290xbf16>
    %219 = vector.extract_strided_slice %9 {offsets = [8, 0, 0], sizes = [1, 4, 4], strides = [1, 1, 1]} : vector<9x4x4xbf16> to vector<1x4x4xbf16>
    %220 = vector.shape_cast %219 : vector<1x4x4xbf16> to vector<4x4xbf16>
    %cst_70 = arith.constant dense<0.000000e+00> : vector<4x290xf32>
    %221 = tpu.matmul %220, %218, %cst_70 {dimension_numbers = #tpu.dot_dimension_numbers<[1], [0], [0], [1], [0, 0, 1, 1], [], []>} : vector<4x4xbf16>, vector<4x290xbf16>, vector<4x290xf32> -> vector<4x290xf32>
    %222 = arith.addf %210, %221 : vector<4x290xf32>
    %223 = vector.extract_strided_slice %11 {offsets = [0, 0, 0, 0], sizes = [1, 1, 4, 1], strides = [1, 1, 1, 1]} : vector<2x2x4x1xf32> to vector<1x1x4x1xf32>
    %224 = vector.shape_cast %223 : vector<1x1x4x1xf32> to vector<4x1xf32>
    %225 = vector.broadcast %224 : vector<4x1xf32> to vector<4x290xf32>
    %226 = arith.mulf %222, %225 : vector<4x290xf32>
    %227 = vector.extract_strided_slice %11 {offsets = [0, 1, 0, 0], sizes = [1, 1, 4, 1], strides = [1, 1, 1, 1]} : vector<2x2x4x1xf32> to vector<1x1x4x1xf32>
    %228 = vector.shape_cast %227 : vector<1x1x4x1xf32> to vector<4x1xf32>
    %229 = vector.broadcast %228 : vector<4x1xf32> to vector<4x290xf32>
    %230 = arith.addf %226, %229 : vector<4x290xf32>
    %cst_71 = arith.constant 0.000000e+00 : f32
    %231 = vector.broadcast %cst_71 : f32 to vector<4x290xf32>
    %232 = arith.maximumf %230, %231 : vector<4x290xf32>
    %c17_i32_72 = arith.constant 17 : i32
    %233 = vector.broadcast %c17_i32_72 : i32 to vector<1x290xi32>
    %234 = arith.cmpi sge, %12, %233 : vector<1x290xi32>
    %c273_i32 = arith.constant 273 : i32
    %235 = vector.broadcast %c273_i32 : i32 to vector<1x290xi32>
    %236 = arith.cmpi slt, %12, %235 : vector<1x290xi32>
    %237 = arith.andi %234, %236 : vector<1x290xi1>
    %cst_73 = arith.constant 0.000000e+00 : f32
    %238 = vector.shape_cast %237 : vector<1x290xi1> to vector<1x290xi1>
    %239 = vector.broadcast %238 : vector<1x290xi1> to vector<4x290xi1>
    %240 = vector.broadcast %cst_73 : f32 to vector<4x290xf32>
    %241 = arith.select %239, %232, %240 : vector<4x290xi1>, vector<4x290xf32>
    %242 = arith.truncf %241 : vector<4x290xf32> to vector<4x290xbf16>
    %cst_74 = arith.constant 0.000000e+00 : f32
    %243 = vector.broadcast %cst_74 : f32 to vector<4x256xf32>
    %244 = vector.extract_strided_slice %242 {offsets = [0, 0], sizes = [4, 256], strides = [1, 1]} : vector<4x290xbf16> to vector<4x256xbf16>
    %c1_i32_75 = arith.constant 1 : i32
    %245 = vector.broadcast %c1_i32_75 : i32 to vector<1x256xi32>
    %246 = arith.cmpi sge, %47, %245 : vector<1x256xi32>
    %cst_76 = arith.constant 0.000000e+00 : f32
    %247 = arith.truncf %cst_76 : f32 to bf16
    %248 = vector.shape_cast %246 : vector<1x256xi1> to vector<1x256xi1>
    %249 = vector.broadcast %248 : vector<1x256xi1> to vector<4x256xi1>
    %250 = vector.broadcast %247 : bf16 to vector<4x256xbf16>
    %251 = arith.select %249, %244, %250 : vector<4x256xi1>, vector<4x256xbf16>
    %252 = vector.extract_strided_slice %10 {offsets = [0, 0, 0], sizes = [1, 4, 4], strides = [1, 1, 1]} : vector<9x4x4xbf16> to vector<1x4x4xbf16>
    %253 = vector.shape_cast %252 : vector<1x4x4xbf16> to vector<4x4xbf16>
    %cst_77 = arith.constant dense<0.000000e+00> : vector<4x256xf32>
    %254 = tpu.matmul %253, %251, %cst_77 {dimension_numbers = #tpu.dot_dimension_numbers<[1], [0], [0], [1], [0, 0, 1, 1], [], []>} : vector<4x4xbf16>, vector<4x256xbf16>, vector<4x256xf32> -> vector<4x256xf32>
    %255 = arith.addf %243, %254 : vector<4x256xf32>
    %256 = vector.extract_strided_slice %242 {offsets = [0, 1], sizes = [4, 256], strides = [1, 1]} : vector<4x290xbf16> to vector<4x256xbf16>
    %257 = vector.extract_strided_slice %10 {offsets = [1, 0, 0], sizes = [1, 4, 4], strides = [1, 1, 1]} : vector<9x4x4xbf16> to vector<1x4x4xbf16>
    %258 = vector.shape_cast %257 : vector<1x4x4xbf16> to vector<4x4xbf16>
    %cst_78 = arith.constant dense<0.000000e+00> : vector<4x256xf32>
    %259 = tpu.matmul %258, %256, %cst_78 {dimension_numbers = #tpu.dot_dimension_numbers<[1], [0], [0], [1], [0, 0, 1, 1], [], []>} : vector<4x4xbf16>, vector<4x256xbf16>, vector<4x256xf32> -> vector<4x256xf32>
    %260 = arith.addf %255, %259 : vector<4x256xf32>
    %261 = vector.extract_strided_slice %242 {offsets = [0, 2], sizes = [4, 256], strides = [1, 1]} : vector<4x290xbf16> to vector<4x256xbf16>
    %c14_i32_79 = arith.constant 14 : i32
    %262 = vector.broadcast %c14_i32_79 : i32 to vector<1x256xi32>
    %263 = arith.cmpi sle, %47, %262 : vector<1x256xi32>
    %cst_80 = arith.constant 0.000000e+00 : f32
    %264 = arith.truncf %cst_80 : f32 to bf16
    %265 = vector.shape_cast %263 : vector<1x256xi1> to vector<1x256xi1>
    %266 = vector.broadcast %265 : vector<1x256xi1> to vector<4x256xi1>
    %267 = vector.broadcast %264 : bf16 to vector<4x256xbf16>
    %268 = arith.select %266, %261, %267 : vector<4x256xi1>, vector<4x256xbf16>
    %269 = vector.extract_strided_slice %10 {offsets = [2, 0, 0], sizes = [1, 4, 4], strides = [1, 1, 1]} : vector<9x4x4xbf16> to vector<1x4x4xbf16>
    %270 = vector.shape_cast %269 : vector<1x4x4xbf16> to vector<4x4xbf16>
    %cst_81 = arith.constant dense<0.000000e+00> : vector<4x256xf32>
    %271 = tpu.matmul %270, %268, %cst_81 {dimension_numbers = #tpu.dot_dimension_numbers<[1], [0], [0], [1], [0, 0, 1, 1], [], []>} : vector<4x4xbf16>, vector<4x256xbf16>, vector<4x256xf32> -> vector<4x256xf32>
    %272 = arith.addf %260, %271 : vector<4x256xf32>
    %273 = vector.extract_strided_slice %242 {offsets = [0, 16], sizes = [4, 256], strides = [1, 1]} : vector<4x290xbf16> to vector<4x256xbf16>
    %c1_i32_82 = arith.constant 1 : i32
    %274 = vector.broadcast %c1_i32_82 : i32 to vector<1x256xi32>
    %275 = arith.cmpi sge, %47, %274 : vector<1x256xi32>
    %cst_83 = arith.constant 0.000000e+00 : f32
    %276 = arith.truncf %cst_83 : f32 to bf16
    %277 = vector.shape_cast %275 : vector<1x256xi1> to vector<1x256xi1>
    %278 = vector.broadcast %277 : vector<1x256xi1> to vector<4x256xi1>
    %279 = vector.broadcast %276 : bf16 to vector<4x256xbf16>
    %280 = arith.select %278, %273, %279 : vector<4x256xi1>, vector<4x256xbf16>
    %281 = vector.extract_strided_slice %10 {offsets = [3, 0, 0], sizes = [1, 4, 4], strides = [1, 1, 1]} : vector<9x4x4xbf16> to vector<1x4x4xbf16>
    %282 = vector.shape_cast %281 : vector<1x4x4xbf16> to vector<4x4xbf16>
    %cst_84 = arith.constant dense<0.000000e+00> : vector<4x256xf32>
    %283 = tpu.matmul %282, %280, %cst_84 {dimension_numbers = #tpu.dot_dimension_numbers<[1], [0], [0], [1], [0, 0, 1, 1], [], []>} : vector<4x4xbf16>, vector<4x256xbf16>, vector<4x256xf32> -> vector<4x256xf32>
    %284 = arith.addf %272, %283 : vector<4x256xf32>
    %285 = vector.extract_strided_slice %242 {offsets = [0, 17], sizes = [4, 256], strides = [1, 1]} : vector<4x290xbf16> to vector<4x256xbf16>
    %286 = vector.extract_strided_slice %10 {offsets = [4, 0, 0], sizes = [1, 4, 4], strides = [1, 1, 1]} : vector<9x4x4xbf16> to vector<1x4x4xbf16>
    %287 = vector.shape_cast %286 : vector<1x4x4xbf16> to vector<4x4xbf16>
    %cst_85 = arith.constant dense<0.000000e+00> : vector<4x256xf32>
    %288 = tpu.matmul %287, %285, %cst_85 {dimension_numbers = #tpu.dot_dimension_numbers<[1], [0], [0], [1], [0, 0, 1, 1], [], []>} : vector<4x4xbf16>, vector<4x256xbf16>, vector<4x256xf32> -> vector<4x256xf32>
    %289 = arith.addf %284, %288 : vector<4x256xf32>
    %290 = vector.extract_strided_slice %242 {offsets = [0, 18], sizes = [4, 256], strides = [1, 1]} : vector<4x290xbf16> to vector<4x256xbf16>
    %c14_i32_86 = arith.constant 14 : i32
    %291 = vector.broadcast %c14_i32_86 : i32 to vector<1x256xi32>
    %292 = arith.cmpi sle, %47, %291 : vector<1x256xi32>
    %cst_87 = arith.constant 0.000000e+00 : f32
    %293 = arith.truncf %cst_87 : f32 to bf16
    %294 = vector.shape_cast %292 : vector<1x256xi1> to vector<1x256xi1>
    %295 = vector.broadcast %294 : vector<1x256xi1> to vector<4x256xi1>
    %296 = vector.broadcast %293 : bf16 to vector<4x256xbf16>
    %297 = arith.select %295, %290, %296 : vector<4x256xi1>, vector<4x256xbf16>
    %298 = vector.extract_strided_slice %10 {offsets = [5, 0, 0], sizes = [1, 4, 4], strides = [1, 1, 1]} : vector<9x4x4xbf16> to vector<1x4x4xbf16>
    %299 = vector.shape_cast %298 : vector<1x4x4xbf16> to vector<4x4xbf16>
    %cst_88 = arith.constant dense<0.000000e+00> : vector<4x256xf32>
    %300 = tpu.matmul %299, %297, %cst_88 {dimension_numbers = #tpu.dot_dimension_numbers<[1], [0], [0], [1], [0, 0, 1, 1], [], []>} : vector<4x4xbf16>, vector<4x256xbf16>, vector<4x256xf32> -> vector<4x256xf32>
    %301 = arith.addf %289, %300 : vector<4x256xf32>
    %302 = vector.extract_strided_slice %242 {offsets = [0, 32], sizes = [4, 256], strides = [1, 1]} : vector<4x290xbf16> to vector<4x256xbf16>
    %c1_i32_89 = arith.constant 1 : i32
    %303 = vector.broadcast %c1_i32_89 : i32 to vector<1x256xi32>
    %304 = arith.cmpi sge, %47, %303 : vector<1x256xi32>
    %cst_90 = arith.constant 0.000000e+00 : f32
    %305 = arith.truncf %cst_90 : f32 to bf16
    %306 = vector.shape_cast %304 : vector<1x256xi1> to vector<1x256xi1>
    %307 = vector.broadcast %306 : vector<1x256xi1> to vector<4x256xi1>
    %308 = vector.broadcast %305 : bf16 to vector<4x256xbf16>
    %309 = arith.select %307, %302, %308 : vector<4x256xi1>, vector<4x256xbf16>
    %310 = vector.extract_strided_slice %10 {offsets = [6, 0, 0], sizes = [1, 4, 4], strides = [1, 1, 1]} : vector<9x4x4xbf16> to vector<1x4x4xbf16>
    %311 = vector.shape_cast %310 : vector<1x4x4xbf16> to vector<4x4xbf16>
    %cst_91 = arith.constant dense<0.000000e+00> : vector<4x256xf32>
    %312 = tpu.matmul %311, %309, %cst_91 {dimension_numbers = #tpu.dot_dimension_numbers<[1], [0], [0], [1], [0, 0, 1, 1], [], []>} : vector<4x4xbf16>, vector<4x256xbf16>, vector<4x256xf32> -> vector<4x256xf32>
    %313 = arith.addf %301, %312 : vector<4x256xf32>
    %314 = vector.extract_strided_slice %242 {offsets = [0, 33], sizes = [4, 256], strides = [1, 1]} : vector<4x290xbf16> to vector<4x256xbf16>
    %315 = vector.extract_strided_slice %10 {offsets = [7, 0, 0], sizes = [1, 4, 4], strides = [1, 1, 1]} : vector<9x4x4xbf16> to vector<1x4x4xbf16>
    %316 = vector.shape_cast %315 : vector<1x4x4xbf16> to vector<4x4xbf16>
    %cst_92 = arith.constant dense<0.000000e+00> : vector<4x256xf32>
    %317 = tpu.matmul %316, %314, %cst_92 {dimension_numbers = #tpu.dot_dimension_numbers<[1], [0], [0], [1], [0, 0, 1, 1], [], []>} : vector<4x4xbf16>, vector<4x256xbf16>, vector<4x256xf32> -> vector<4x256xf32>
    %318 = arith.addf %313, %317 : vector<4x256xf32>
    %319 = vector.extract_strided_slice %242 {offsets = [0, 34], sizes = [4, 256], strides = [1, 1]} : vector<4x290xbf16> to vector<4x256xbf16>
    %c14_i32_93 = arith.constant 14 : i32
    %320 = vector.broadcast %c14_i32_93 : i32 to vector<1x256xi32>
    %321 = arith.cmpi sle, %47, %320 : vector<1x256xi32>
    %cst_94 = arith.constant 0.000000e+00 : f32
    %322 = arith.truncf %cst_94 : f32 to bf16
    %323 = vector.shape_cast %321 : vector<1x256xi1> to vector<1x256xi1>
    %324 = vector.broadcast %323 : vector<1x256xi1> to vector<4x256xi1>
    %325 = vector.broadcast %322 : bf16 to vector<4x256xbf16>
    %326 = arith.select %324, %319, %325 : vector<4x256xi1>, vector<4x256xbf16>
    %327 = vector.extract_strided_slice %10 {offsets = [8, 0, 0], sizes = [1, 4, 4], strides = [1, 1, 1]} : vector<9x4x4xbf16> to vector<1x4x4xbf16>
    %328 = vector.shape_cast %327 : vector<1x4x4xbf16> to vector<4x4xbf16>
    %cst_95 = arith.constant dense<0.000000e+00> : vector<4x256xf32>
    %329 = tpu.matmul %328, %326, %cst_95 {dimension_numbers = #tpu.dot_dimension_numbers<[1], [0], [0], [1], [0, 0, 1, 1], [], []>} : vector<4x4xbf16>, vector<4x256xbf16>, vector<4x256xf32> -> vector<4x256xf32>
    %330 = arith.addf %318, %329 : vector<4x256xf32>
    %331 = vector.extract_strided_slice %11 {offsets = [1, 0, 0, 0], sizes = [1, 1, 4, 1], strides = [1, 1, 1, 1]} : vector<2x2x4x1xf32> to vector<1x1x4x1xf32>
    %332 = vector.shape_cast %331 : vector<1x1x4x1xf32> to vector<4x1xf32>
    %333 = vector.broadcast %332 : vector<4x1xf32> to vector<4x256xf32>
    %334 = arith.mulf %330, %333 : vector<4x256xf32>
    %335 = vector.extract_strided_slice %11 {offsets = [1, 1, 0, 0], sizes = [1, 1, 4, 1], strides = [1, 1, 1, 1]} : vector<2x2x4x1xf32> to vector<1x1x4x1xf32>
    %336 = vector.shape_cast %335 : vector<1x1x4x1xf32> to vector<4x1xf32>
    %337 = vector.broadcast %336 : vector<4x1xf32> to vector<4x256xf32>
    %338 = arith.addf %334, %337 : vector<4x256xf32>
    %cst_96 = arith.constant 0.000000e+00 : f32
    %339 = vector.broadcast %cst_96 : f32 to vector<4x256xf32>
    %340 = arith.maximumf %338, %339 : vector<4x256xf32>
    %c0_97 = arith.constant 0 : index
    %c0_98 = arith.constant 0 : index
    %c0_99 = arith.constant 0 : index
    %341 = vector.load %arg8[%c0_97, %c0_98, %c0_99] : memref<1x4x256xf32, #tpu.memory_space<vmem>>, vector<1x4x256xf32>
    %342 = vector.shape_cast %341 : vector<1x4x256xf32> to vector<4x256xf32>
    %343 = vector.shape_cast %340 : vector<4x256xf32> to vector<1x4x256xf32>
    tpu.vector_store %arg8[%c0_97, %c0_98, %c0_99], %343 {strides = array<i32>} : memref<1x4x256xf32, #tpu.memory_space<vmem>>, vector<1x4x256xf32>,
    return
  }
  func.func @transform_0(%arg0: i32) -> (i32, i32, i32) {
    %c0_i32 = arith.constant 0 : i32
    %c0_i32_0 = arith.constant 0 : i32
    %c0_i32_1 = arith.constant 0 : i32
    return %arg0, %c0_i32, %c0_i32_0 : i32, i32, i32
  }
  func.func @transform_1(%arg0: i32) -> (i32, i32, i32) {
    %c0_i32 = arith.constant 0 : i32
    %c0_i32_0 = arith.constant 0 : i32
    %c0_i32_1 = arith.constant 0 : i32
    return %arg0, %c0_i32, %c0_i32_0 : i32, i32, i32
  }
  func.func @transform_2(%arg0: i32) -> (i32, i32) {
    %c0_i32 = arith.constant 0 : i32
    %c0_i32_0 = arith.constant 0 : i32
    %c0_i32_1 = arith.constant 0 : i32
    return %c0_i32, %c0_i32_0 : i32, i32
  }
  func.func @transform_3(%arg0: i32) -> (i32, i32, i32) {
    %c0_i32 = arith.constant 0 : i32
    %c0_i32_0 = arith.constant 0 : i32
    %c0_i32_1 = arith.constant 0 : i32
    %c0_i32_2 = arith.constant 0 : i32
    return %c0_i32, %c0_i32_0, %c0_i32_1 : i32, i32, i32
  }
  func.func @transform_4(%arg0: i32) -> (i32, i32, i32) {
    %c0_i32 = arith.constant 0 : i32
    %c0_i32_0 = arith.constant 0 : i32
    %c0_i32_1 = arith.constant 0 : i32
    %c0_i32_2 = arith.constant 0 : i32
    return %c0_i32, %c0_i32_0, %c0_i32_1 : i32, i32, i32
  }
  func.func @transform_5(%arg0: i32) -> (i32, i32, i32) {
    %c0_i32 = arith.constant 0 : i32
    %c0_i32_0 = arith.constant 0 : i32
    %c0_i32_1 = arith.constant 0 : i32
    %c0_i32_2 = arith.constant 0 : i32
    return %c0_i32, %c0_i32_0, %c0_i32_1 : i32, i32, i32
  }
  func.func @transform_6(%arg0: i32) -> (i32, i32, i32, i32) {
    %c0_i32 = arith.constant 0 : i32
    %c0_i32_0 = arith.constant 0 : i32
    %c0_i32_1 = arith.constant 0 : i32
    %c0_i32_2 = arith.constant 0 : i32
    %c0_i32_3 = arith.constant 0 : i32
    return %c0_i32, %c0_i32_0, %c0_i32_1, %c0_i32_2 : i32, i32, i32, i32
  }
  func.func @transform_7(%arg0: i32) -> (i32, i32, i32) {
    %c0_i32 = arith.constant 0 : i32
    %c0_i32_0 = arith.constant 0 : i32
    %c0_i32_1 = arith.constant 0 : i32
    return %arg0, %c0_i32, %c0_i32_0 : i32, i32, i32
  }
}

</mosaic_0001>

<llo_original>
// kernel: up_forward.1
$region0: #{up_forward.1}
  #allocation0 [shape = 'u32[]', space=smem, size = 0x4, offset = 0x4, fixed_abs, tag = 'smem constant byte address 0x4 - core index']
  #allocation1 [shape = 'u32[144,128]{1,0:T(1,128)}', space=vmem, size = 0x12000, scoped, tag = 'internal scratch']
  %s0 = inlined_call_operand.vmem [shape: f32[2,4,64], index: 0, kind: input, shape index: {}]
  %s1 = inlined_call_operand.vmem [shape: f32[2,4,324], index: 1, kind: input, shape index: {}]
  %s2 = inlined_call_operand.vmem [shape: f32[64,324], index: 2, kind: input, shape index: {}]
  %s3 = inlined_call_operand.vmem [shape: bf16[9,4,4], index: 3, kind: input, shape index: {}]
  %s4 = inlined_call_operand.vmem [shape: bf16[9,4,4], index: 4, kind: input, shape index: {}]
  %s5 = inlined_call_operand.vmem [shape: bf16[9,4,4], index: 5, kind: input, shape index: {}]
  %s6 = inlined_call_operand.vmem [shape: f32[2,2,4,1], index: 6, kind: input, shape index: {}]
  %s7 = inlined_call_operand.vmem [shape: f32[2,4,256], index: 7, kind: output, shape index: {}]
  %s8 = sld [smem:[#allocation0]]
  $region61: #{up_forward.1} parent=0
    _
  %s10 = ssub.s32 1, %s8
  %s11 = scalar_select 0, %s10, %s8
  loop: start=0, step=1, limit=4
  $region2: #{up_forward.1} parent=0 // loop_pre_header
    _
  $region3: #{up_forward.1} parent=0 // loop_header
    %s13 = sphi 0, %s17
    %p14 = scmp.ge.s32.totalorder %s13, 4
    %s23 = sphi 0, %s25
    %s26 = sphi 0, %s23
    %s27 = sphi 0, %s26
    %s43 = sphi 0, %s27
    %s49 = sphi 0, %s51
    %s52 = sphi 0, %s49
    %s53 = sphi 0, %s52
    %s69 = sphi 0, %s53
    %s73 = sphi 0, %s73
    %s75 = sphi 0, %s73
    %s76 = sphi 0, %s75
    %s90 = sphi 0, %s76
    %s94 = sphi 0, %s94
    %s96 = sphi 0, %s94
    %s97 = sphi 0, %s96
    %s111 = sphi 0, %s97
    %s115 = sphi 0, %s115
    %s117 = sphi 0, %s115
    %s118 = sphi 0, %s117
    %s132 = sphi 0, %s118
    %s136 = sphi 0, %s136
    %s138 = sphi 0, %s136
    %s139 = sphi 0, %s138
    %s153 = sphi 0, %s139
    %s157 = sphi 0, %s157
    %s159 = sphi 0, %s157
    %s160 = sphi 0, %s159
    %s174 = sphi 0, %s160
    %s180 = sphi 0, %s182
    %s183 = sphi 0, %s180
    %s184 = sphi 0, %s183
    %s200 = sphi 0, %s184
  $region4: #{up_forward.1} parent=0 // loop_header_branch
    %16 = sbr.rel (%p14) target = $region8
  $region5: #{up_forward.1} parent=0 // loop_body
    %s18 = ssub.s32 %s13, 1
    %s19 = ssub.s32 %s13, 2
    %s20 = sadd.s32 %s13, 1
    %s21 = ssub.s32 %s13, %s20
    %p22 = scmp.eq.s32.totalorder %s21, 0
    %s24 = sadd.s32 %s23, 1
    %s25 = scalar_select %p22, %s23, %s24
    %p28 = pneg %p22
    %p29 = scmp.eq.s32.totalorder %s13, 1
    %p30 = por %p28, %p29
    %p31 = scmp.ne.s32.totalorder %s23, %s26
    %p32 = scmp.eq.s32.totalorder %s13, 0
    %p33 = por %p31, %p32
    %p34 = scmp.ne.s32.totalorder %s23, %s26
    %p35 = scmp.eq.s32.totalorder %s18, 1
    %p36 = por %p34, %p35
    %p37 = scmp.ne.s32.totalorder %s26, %s27
    %p38 = scmp.eq.s32.totalorder %s18, 0
    %p39 = por %p37, %p38
    %p40 = scmp.ne.s32.totalorder %s26, %s27
    %p41 = scmp.eq.s32.totalorder %s19, 1
    %p42 = por %p40, %p41
    %p44 = scmp.ne.s32.totalorder %s27, %s43
    %p45 = scmp.eq.s32.totalorder %s19, 0
    %p46 = por %p44, %p45
    %s47 = ssub.s32 %s13, %s20
    %p48 = scmp.eq.s32.totalorder %s47, 0
    %s50 = sadd.s32 %s49, 1
    %s51 = scalar_select %p48, %s49, %s50
    %p54 = pneg %p48
    %p55 = scmp.eq.s32.totalorder %s13, 1
    %p56 = por %p54, %p55
    %p57 = scmp.ne.s32.totalorder %s49, %s52
    %p58 = scmp.eq.s32.totalorder %s13, 0
    %p59 = por %p57, %p58
    %p60 = scmp.ne.s32.totalorder %s49, %s52
    %p61 = scmp.eq.s32.totalorder %s18, 1
    %p62 = por %p60, %p61
    %p63 = scmp.ne.s32.totalorder %s52, %s53
    %p64 = scmp.eq.s32.totalorder %s18, 0
    %p65 = por %p63, %p64
    %p66 = scmp.ne.s32.totalorder %s52, %s53
    %p67 = scmp.eq.s32.totalorder %s19, 1
    %p68 = por %p66, %p67
    %p70 = scmp.ne.s32.totalorder %s53, %s69
    %p71 = scmp.eq.s32.totalorder %s19, 0
    %p72 = por %p70, %p71
    %s74 = sadd.s32 %s73, 1
    %p77 = scmp.eq.s32.totalorder %s13, 1
    %p78 = scmp.ne.s32.totalorder %s73, %s75
    %p79 = scmp.eq.s32.totalorder %s13, 0
    %p80 = por %p78, %p79
    %p81 = scmp.ne.s32.totalorder %s73, %s75
    %p82 = scmp.eq.s32.totalorder %s18, 1
    %p83 = por %p81, %p82
    %p84 = scmp.ne.s32.totalorder %s75, %s76
    %p85 = scmp.eq.s32.totalorder %s18, 0
    %p86 = por %p84, %p85
    %p87 = scmp.ne.s32.totalorder %s75, %s76
    %p88 = scmp.eq.s32.totalorder %s19, 1
    %p89 = por %p87, %p88
    %p91 = scmp.ne.s32.totalorder %s76, %s90
    %p92 = scmp.eq.s32.totalorder %s19, 0
    %p93 = por %p91, %p92
    %s95 = sadd.s32 %s94, 1
    %p98 = scmp.eq.s32.totalorder %s13, 1
    %p99 = scmp.ne.s32.totalorder %s94, %s96
    %p100 = scmp.eq.s32.totalorder %s13, 0
    %p101 = por %p99, %p100
    %p102 = scmp.ne.s32.totalorder %s94, %s96
    %p103 = scmp.eq.s32.totalorder %s18, 1
    %p104 = por %p102, %p103
    %p105 = scmp.ne.s32.totalorder %s96, %s97
    %p106 = scmp.eq.s32.totalorder %s18, 0
    %p107 = por %p105, %p106
    %p108 = scmp.ne.s32.totalorder %s96, %s97
    %p109 = scmp.eq.s32.totalorder %s19, 1
    %p110 = por %p108, %p109
    %p112 = scmp.ne.s32.totalorder %s97, %s111
    %p113 = scmp.eq.s32.totalorder %s19, 0
    %p114 = por %p112, %p113
    %s116 = sadd.s32 %s115, 1
    %p119 = scmp.eq.s32.totalorder %s13, 1
    %p120 = scmp.ne.s32.totalorder %s115, %s117
    %p121 = scmp.eq.s32.totalorder %s13, 0
    %p122 = por %p120, %p121
    %p123 = scmp.ne.s32.totalorder %s115, %s117
    %p124 = scmp.eq.s32.totalorder %s18, 1
    %p125 = por %p123, %p124
    %p126 = scmp.ne.s32.totalorder %s117, %s118
    %p127 = scmp.eq.s32.totalorder %s18, 0
    %p128 = por %p126, %p127
    %p129 = scmp.ne.s32.totalorder %s117, %s118
    %p130 = scmp.eq.s32.totalorder %s19, 1
    %p131 = por %p129, %p130
    %p133 = scmp.ne.s32.totalorder %s118, %s132
    %p134 = scmp.eq.s32.totalorder %s19, 0
    %p135 = por %p133, %p134
    %s137 = sadd.s32 %s136, 1
    %p140 = scmp.eq.s32.totalorder %s13, 1
    %p141 = scmp.ne.s32.totalorder %s136, %s138
    %p142 = scmp.eq.s32.totalorder %s13, 0
    %p143 = por %p141, %p142
    %p144 = scmp.ne.s32.totalorder %s136, %s138
    %p145 = scmp.eq.s32.totalorder %s18, 1
    %p146 = por %p144, %p145
    %p147 = scmp.ne.s32.totalorder %s138, %s139
    %p148 = scmp.eq.s32.totalorder %s18, 0
    %p149 = por %p147, %p148
    %p150 = scmp.ne.s32.totalorder %s138, %s139
    %p151 = scmp.eq.s32.totalorder %s19, 1
    %p152 = por %p150, %p151
    %p154 = scmp.ne.s32.totalorder %s139, %s153
    %p155 = scmp.eq.s32.totalorder %s19, 0
    %p156 = por %p154, %p155
    %s158 = sadd.s32 %s157, 1
    %p161 = scmp.eq.s32.totalorder %s13, 1
    %p162 = scmp.ne.s32.totalorder %s157, %s159
    %p163 = scmp.eq.s32.totalorder %s13, 0
    %p164 = por %p162, %p163
    %p165 = scmp.ne.s32.totalorder %s157, %s159
    %p166 = scmp.eq.s32.totalorder %s18, 1
    %p167 = por %p165, %p166
    %p168 = scmp.ne.s32.totalorder %s159, %s160
    %p169 = scmp.eq.s32.totalorder %s18, 0
    %p170 = por %p168, %p169
    %p171 = scmp.ne.s32.totalorder %s159, %s160
    %p172 = scmp.eq.s32.totalorder %s19, 1
    %p173 = por %p171, %p172
    %p175 = scmp.ne.s32.totalorder %s160, %s174
    %p176 = scmp.eq.s32.totalorder %s19, 0
    %p177 = por %p175, %p176
    %s178 = ssub.s32 %s13, %s20
    %p179 = scmp.eq.s32.totalorder %s178, 0
    %s181 = sadd.s32 %s180, 1
    %s182 = scalar_select %p179, %s180, %s181
    %p185 = pneg %p179
    %p186 = scmp.eq.s32.totalorder %s13, 1
    %p187 = por %p185, %p186
    %p188 = scmp.ne.s32.totalorder %s180, %s183
    %p189 = scmp.eq.s32.totalorder %s13, 0
    %p190 = por %p188, %p189
    %p191 = scmp.ne.s32.totalorder %s180, %s183
    %p192 = scmp.eq.s32.totalorder %s18, 1
    %p193 = por %p191, %p192
    %p194 = scmp.ne.s32.totalorder %s183, %s184
    %p195 = scmp.eq.s32.totalorder %s18, 0
    %p196 = por %p194, %p195
    %p197 = scmp.ne.s32.totalorder %s183, %s184
    %p198 = scmp.eq.s32.totalorder %s19, 1
    %p199 = por %p197, %p198
    %p201 = scmp.ne.s32.totalorder %s184, %s200
    %p202 = scmp.eq.s32.totalorder %s19, 0
    %p203 = por %p201, %p202
    %p204 = scmp.le.s32.totalorder 1, %s13
    %p205 = scmp.lt.s32.totalorder %s13, 3
    %p206 = pnand %p204, %p205
    %p207 = pneg %p206
    // Predicated region
    $region9: #{up_forward.1} parent=5 // pred_check
      _
    $region10: #{up_forward.1} parent=5 // pred_check_branch
      %209 = sbr.rel (%p206) target = $region12
    $region11: #{up_forward.1} parent=5 // pred_region
      %s210 = ssub.s32 %s13, 1
      // Predicated region
      $region13: #{up_forward.1} parent=11 // pred_check
        %p211 = pneg %p86
      $region14: #{up_forward.1} parent=11 // pred_check_branch
        %213 = sbr.rel (%p211) target = $region16
      $region15: #{up_forward.1} parent=11 // pred_region
        _
      $region16: #{up_forward.1} parent=11 // pred_fallthru
        _
      // Predicated region
      $region17: #{up_forward.1} parent=11 // pred_check
        %p214 = pneg %p107
      $region18: #{up_forward.1} parent=11 // pred_check_branch
        %216 = sbr.rel (%p214) target = $region20
      $region19: #{up_forward.1} parent=11 // pred_region
        _
      $region20: #{up_forward.1} parent=11 // pred_fallthru
        _
      // Predicated region
      $region21: #{up_forward.1} parent=11 // pred_check
        %p217 = pneg %p128
      $region22: #{up_forward.1} parent=11 // pred_check_branch
        %219 = sbr.rel (%p217) target = $region24
      $region23: #{up_forward.1} parent=11 // pred_region
        _
      $region24: #{up_forward.1} parent=11 // pred_fallthru
        _
      // Predicated region
      $region25: #{up_forward.1} parent=11 // pred_check
        %p220 = pneg %p149
      $region26: #{up_forward.1} parent=11 // pred_check_branch
        %222 = sbr.rel (%p220) target = $region28
      $region27: #{up_forward.1} parent=11 // pred_region
        _
      $region28: #{up_forward.1} parent=11 // pred_fallthru
        _
      // Predicated region
      $region29: #{up_forward.1} parent=11 // pred_check
        %p223 = pneg %p170
      $region30: #{up_forward.1} parent=11 // pred_check_branch
        %225 = sbr.rel (%p223) target = $region32
      $region31: #{up_forward.1} parent=11 // pred_region
        _
      $region32: #{up_forward.1} parent=11 // pred_fallthru
        _
    $region12: #{up_forward.1} parent=5 // pred_fallthru
      _
    %p226 = scmp.lt.s32.totalorder %s13, 2
    // Predicated region
    $region33: #{up_forward.1} parent=5 // pred_check
      %p227 = pneg %p226
    $region34: #{up_forward.1} parent=5 // pred_check_branch
      %229 = sbr.rel (%p227) target = $region36
    $region35: #{up_forward.1} parent=5 // pred_region
      // Predicated region
      $region37: #{up_forward.1} parent=35 // pred_check
        %p230 = pneg %p33
      $region38: #{up_forward.1} parent=35 // pred_check_branch
        %232 = sbr.rel (%p230) target = $region40
      $region39: #{up_forward.1} parent=35 // pred_region
        %p233 = scmp.lt.s32.totalorder %s13, 1
        %s234 = scalar_select %p233, %s13, 1
        %s235 = smul.addr %s234, 4
        %s236 = scalar_lea.vmem %s0, %s235
      $region40: #{up_forward.1} parent=35 // pred_fallthru
        _
      // Predicated region
      $region41: #{up_forward.1} parent=35 // pred_check
        %p237 = pneg %p59
      $region42: #{up_forward.1} parent=35 // pred_check_branch
        %239 = sbr.rel (%p237) target = $region44
      $region43: #{up_forward.1} parent=35 // pred_region
        %p240 = scmp.lt.s32.totalorder %s13, 1
        %s241 = scalar_select %p240, %s13, 1
        %s242 = smul.addr %s241, 3
        %s243 = smul.addr %s242, 4
        %s244 = scalar_lea.vmem %s1, %s243
      $region44: #{up_forward.1} parent=35 // pred_fallthru
        _
    $region36: #{up_forward.1} parent=5 // pred_fallthru
      _
    %p245 = scmp.le.s32.totalorder 1, %s13
    %p246 = scmp.lt.s32.totalorder %s13, 3
    %p247 = pnand %p245, %p246
    %p248 = pneg %p247
    // Predicated region
    $region45: #{up_forward.1} parent=5 // pred_check
      _
    $region46: #{up_forward.1} parent=5 // pred_check_branch
      %250 = sbr.rel (%p247) target = $region48
    $region47: #{up_forward.1} parent=5 // pred_region
      %s251 = ssub.s32 %s13, 1
      %p252 = scmp.lt.s32.totalorder %s18, 1
      %s253 = scalar_select %p252, %s18, 1
      %s254 = smul.addr %s253, 4
      %s255 = scalar_lea.vmem %s0, %s254
      %p256 = pneg %p39
      %p257 = pneg %p36
      %p258 = scmp.lt.s32.totalorder %s18, 1
      %s259 = scalar_select %p258, %s18, 1
      %s260 = smul.addr %s259, 3
      %s261 = smul.addr %s260, 4
      %s262 = scalar_lea.vmem %s1, %s261
      %p263 = pneg %p65
      %p264 = pneg %p62
      %p265 = pneg %p86
      %p266 = pneg %p83
      %p267 = pneg %p107
      %p268 = pneg %p104
      %p269 = pneg %p128
      %p270 = pneg %p125
      %p271 = pneg %p149
      %p272 = pneg %p146
      %p273 = pneg %p170
      %p274 = pneg %p167
      %p275 = pneg %p196
      %p276 = pneg %p193
      %p277 = scmp.lt.s32.totalorder %s18, 1
      %s278 = scalar_select %p277, %s18, 1
      %s279 = smul.addr %s278, 2
      %s280 = smul.addr %s279, 4
      %s281 = scalar_lea.vmem %s7, %s280
      %p282 = scmp.lt.s32.totalorder %s18, 1
      %s283 = scalar_select %p282, %s18, 1
      %s284 = smul.addr %s283, 4
      %s285 = scalar_lea.vmem %s0, %s284
      %p286 = scmp.lt.s32.totalorder %s18, 1
      %s287 = scalar_select %p286, %s18, 1
      %s288 = smul.addr %s287, 3
      %s289 = smul.addr %s288, 4
      %s290 = scalar_lea.vmem %s1, %s289
      %p291 = scmp.lt.s32.totalorder %s18, 1
      %s292 = scalar_select %p291, %s18, 1
      %s293 = smul.addr %s292, 2
      %s294 = smul.addr %s293, 4
      %s295 = scalar_lea.vmem %s7, %s294
      %v299 = vld [vmem:[%s285] sm:$0xf]
      %v300 = vld [vmem:[%s2] sm:$0xff]
      %v301 = vld [vmem:[%s2 + $0x8] sm:$0xff]
      %v302 = vld [vmem:[%s2 + $0x10] sm:$0xff]
      %v303 = vld [vmem:[%s2 + $0x18] sm:$0xff]
      %v304 = vld [vmem:[%s2 + $0x20] sm:$0xff]
      %v305 = vld [vmem:[%s2 + $0x28] sm:$0xff]
      %v306 = vld [vmem:[%s2 + $0x30] sm:$0xff]
      %v307 = vld [vmem:[%s2 + $0x38] sm:$0xff]
      %v308 = vld [vmem:[%s2 + $0x40] sm:$0xff]
      %v309 = vld [vmem:[%s2 + $0x48] sm:$0xff]
      %v310 = vld [vmem:[%s2 + $0x50] sm:$0xff]
      %v311 = vld [vmem:[%s2 + $0x58] sm:$0xff]
      %v312 = vld [vmem:[%s2 + $0x60] sm:$0xff]
      %v313 = vld [vmem:[%s2 + $0x68] sm:$0xff]
      %v314 = vld [vmem:[%s2 + $0x70] sm:$0xff]
      %v315 = vld [vmem:[%s2 + $0x78] sm:$0xff]
      %v316 = vld [vmem:[%s2 + $0x80] sm:$0xff]
      %v317 = vld [vmem:[%s2 + $0x88] sm:$0xff]
      %v318 = vld [vmem:[%s2 + $0x90] sm:$0xff]
      %v319 = vld [vmem:[%s2 + $0x98] sm:$0xff]
      %v320 = vld [vmem:[%s2 + $0xa0] sm:$0xff]
      %v321 = vld [vmem:[%s2 + $0xa8] sm:$0xff]
      %v322 = vld [vmem:[%s2 + $0xb0] sm:$0xff]
      %v323 = vld [vmem:[%s2 + $0xb8] sm:$0xff]
      %vm324 = vcmask 523264
      %v326 = vsel %vm324, %v299, 0
      %328 = vmatprep.subr.mxu0 0.0
      %329 = vmatpush1.msra.mxu0 0.0
      %330 = vmatprep.subr.mxu0 0.0
      %331 = vmatpush1.msra.mxu0 0.0
      %332 = vmatprep.subr.mxu0 0.0
      %333 = vmatpush1.msra.mxu0 0.0
      %334 = vmatprep.subr.mxu0 0.0
      %335 = vmatpush1.msra.mxu0 0.0
      %336 = vmatprep.subr.mxu0 0.0
      %337 = vmatpush1.msra.mxu0 0.0
      %338 = vmatprep.subr.mxu0 0.0
      %339 = vmatpush1.msra.mxu0 0.0
      %340 = vmatprep.subr.mxu0 0.0
      %341 = vmatpush1.msra.mxu0 0.0
      %342 = vmatprep.subr.mxu0 0.0
      %343 = vmatpush1.msra.mxu0 0.0
      %344 = vmatprep.subr.mxu0 %v322
      %345 = vmatpush1.msra.mxu0 %v321
      %346 = vmatprep.subr.mxu0 %v319
      %347 = vmatpush1.msra.mxu0 %v318
      %348 = vmatprep.subr.mxu0 %v316
      %349 = vmatpush1.msra.mxu0 %v315
      %350 = vmatprep.subr.mxu0 %v313
      %351 = vmatpush1.msra.mxu0 %v312
      %352 = vmatprep.subr.mxu0 %v310
      %353 = vmatpush1.msra.mxu0 %v309
      %354 = vmatprep.subr.mxu0 %v307
      %355 = vmatpush1.msra.mxu0 %v306
      %356 = vmatprep.subr.mxu0 %v304
      %357 = vmatpush1.msra.mxu0 %v303
      %358 = vmatprep.subr.mxu0 %v301
      %359 = vmatpush1.msra.mxu0 %v300
      %360 = vmatprep.subr.mxu0 0.0
      %361 = vmatpush2.msra.mxu0 0.0
      %362 = vmatprep.subr.mxu0 0.0
      %363 = vmatpush2.msra.mxu0 0.0
      %364 = vmatprep.subr.mxu0 0.0
      %365 = vmatpush2.msra.mxu0 0.0
      %366 = vmatprep.subr.mxu0 0.0
      %367 = vmatpush2.msra.mxu0 0.0
      %368 = vmatprep.subr.mxu0 0.0
      %369 = vmatpush2.msra.mxu0 0.0
      %370 = vmatprep.subr.mxu0 0.0
      %371 = vmatpush2.msra.mxu0 0.0
      %372 = vmatprep.subr.mxu0 0.0
      %373 = vmatpush2.msra.mxu0 0.0
      %374 = vmatprep.subr.mxu0 0.0
      %375 = vmatpush2.msra.mxu0 0.0
      %376 = vmatprep.subr.mxu0 0.0
      %377 = vmatpush2.msra.mxu0 0.0
      %378 = vmatprep.subr.mxu0 0.0
      %379 = vmatpush2.msra.mxu0 0.0
      %380 = vmatprep.subr.mxu0 0.0
      %381 = vmatpush2.msra.mxu0 0.0
      %382 = vmatprep.subr.mxu0 0.0
      %383 = vmatpush2.msra.mxu0 0.0
      %384 = vmatprep.subr.mxu0 0.0
      %385 = vmatpush2.msra.mxu0 0.0
      %386 = vmatprep.subr.mxu0 0.0
      %387 = vmatpush2.msra.mxu0 0.0
      %388 = vmatprep.subr.mxu0 0.0
      %389 = vmatpush2.msra.mxu0 0.0
      %390 = vmatprep.subr.mxu0 0.0
      %391 = vmatpush2.msra.mxu0 0.0
      %392 = vmatprep.mubr.f32.mxu0 0.0
      %393 = vmatmul.mubr.f32.gmra.mxu0 %v326
      %v394 = vpop.f32.mrf.mxu0
      %v395 = vadd.f32 0.0, %v394
      %v396 = vpop.f32.mrf.mxu0
      %v397 = vadd.f32 0.0, %v396
      %398 = vdwg.mxu0
      %399 = vmatprep.subr.mxu0 0.0
      %400 = vmatpush1.msra.mxu0 0.0
      %401 = vmatprep.subr.mxu0 0.0
      %402 = vmatpush1.msra.mxu0 0.0
      %403 = vmatprep.subr.mxu0 0.0
      %404 = vmatpush1.msra.mxu0 0.0
      %405 = vmatprep.subr.mxu0 0.0
      %406 = vmatpush1.msra.mxu0 0.0
      %407 = vmatprep.subr.mxu0 0.0
      %408 = vmatpush1.msra.mxu0 0.0
      %409 = vmatprep.subr.mxu0 0.0
      %410 = vmatpush1.msra.mxu0 0.0
      %411 = vmatprep.subr.mxu0 0.0
      %412 = vmatpush1.msra.mxu0 0.0
      %413 = vmatprep.subr.mxu0 0.0
      %414 = vmatpush1.msra.mxu0 0.0
      %415 = vmatprep.subr.mxu0 0.0
      %416 = vmatpush1.msra.mxu0 %v323
      %417 = vmatprep.subr.mxu0 0.0
      %418 = vmatpush1.msra.mxu0 %v320
      %419 = vmatprep.subr.mxu0 0.0
      %420 = vmatpush1.msra.mxu0 %v317
      %421 = vmatprep.subr.mxu0 0.0
      %422 = vmatpush1.msra.mxu0 %v314
      %423 = vmatprep.subr.mxu0 0.0
      %424 = vmatpush1.msra.mxu0 %v311
      %425 = vmatprep.subr.mxu0 0.0
      %426 = vmatpush1.msra.mxu0 %v308
      %427 = vmatprep.subr.mxu0 0.0
      %428 = vmatpush1.msra.mxu0 %v305
      %429 = vmatprep.subr.mxu0 0.0
      %430 = vmatpush1.msra.mxu0 %v302
      %431 = vmatprep.subr.mxu0 0.0
      %432 = vmatpush2.msra.mxu0 0.0
      %433 = vmatprep.subr.mxu0 0.0
      %434 = vmatpush2.msra.mxu0 0.0
      %435 = vmatprep.subr.mxu0 0.0
      %436 = vmatpush2.msra.mxu0 0.0
      %437 = vmatprep.subr.mxu0 0.0
      %438 = vmatpush2.msra.mxu0 0.0
      %439 = vmatprep.subr.mxu0 0.0
      %440 = vmatpush2.msra.mxu0 0.0
      %441 = vmatprep.subr.mxu0 0.0
      %442 = vmatpush2.msra.mxu0 0.0
      %443 = vmatprep.subr.mxu0 0.0
      %444 = vmatpush2.msra.mxu0 0.0
      %445 = vmatprep.subr.mxu0 0.0
      %446 = vmatpush2.msra.mxu0 0.0
      %447 = vmatprep.subr.mxu0 0.0
      %448 = vmatpush2.msra.mxu0 0.0
      %449 = vmatprep.subr.mxu0 0.0
      %450 = vmatpush2.msra.mxu0 0.0
      %451 = vmatprep.subr.mxu0 0.0
      %452 = vmatpush2.msra.mxu0 0.0
      %453 = vmatprep.subr.mxu0 0.0
      %454 = vmatpush2.msra.mxu0 0.0
      %455 = vmatprep.subr.mxu0 0.0
      %456 = vmatpush2.msra.mxu0 0.0
      %457 = vmatprep.subr.mxu0 0.0
      %458 = vmatpush2.msra.mxu0 0.0
      %459 = vmatprep.subr.mxu0 0.0
      %460 = vmatpush2.msra.mxu0 0.0
      %461 = vmatprep.subr.mxu0 0.0
      %462 = vmatpush2.msra.mxu0 0.0
      %463 = vmatprep.mubr.f32.mxu0 0.0
      %464 = vmatmul.mubr.f32.gmra.mxu0 %v326
      %v465 = vpop.f32.mrf.mxu0
      %v466 = vadd.f32 0.0, %v465
      %v467 = vpop.f32.mrf.mxu0
      %468 = vdwg.mxu0
      %v469 = vpack.c.bf16 %v395, %v395
      %v470 = vpack.c.bf16 %v397, %v397
      %v471 = vpack.c.bf16 %v466, %v466
      %v472 = vld [vmem:[%s290] sm:$0xff]
      %v473 = vld [vmem:[%s290 + $0x8] sm:$0xf]
      %v475 = vcombine.high %v472, %v472
      %v477 = vpack.c.bf16 %v472, %v472
      %v478 = vpack.c.bf16 %v475, %v475
      %v479 = vpack.c.bf16 %v473, %v473
      %v480 = vld [vmem:[%s3] sm:$0x3]
      %v481 = vld [vmem:[%s3 + $0x2] sm:$0x3]
      %v482 = vld [vmem:[%s3 + $0x4] sm:$0x3]
      %v483 = vld [vmem:[%s3 + $0x6] sm:$0x3]
      %v484 = vld [vmem:[%s3 + $0x8] sm:$0x3]
      %v485 = vld [vmem:[%s3 + $0xa] sm:$0x3]
      %v486 = vld [vmem:[%s3 + $0xc] sm:$0x3]
      %v487 = vld [vmem:[%s3 + $0xe] sm:$0x3]
      %v488 = vld [vmem:[%s3 + $0x10] sm:$0x3]
      %v489 = vld [vmem:[%s4] sm:$0x3]
      %v490 = vld [vmem:[%s4 + $0x2] sm:$0x3]
      %v491 = vld [vmem:[%s4 + $0x4] sm:$0x3]
      %v492 = vld [vmem:[%s4 + $0x6] sm:$0x3]
      %v493 = vld [vmem:[%s4 + $0x8] sm:$0x3]
      %v494 = vld [vmem:[%s4 + $0xa] sm:$0x3]
      %v495 = vld [vmem:[%s4 + $0xc] sm:$0x3]
      %v496 = vld [vmem:[%s4 + $0xe] sm:$0x3]
      %v497 = vld [vmem:[%s4 + $0x10] sm:$0x3]
      %v498 = vld [vmem:[%s5] sm:$0x3]
      %v499 = vld [vmem:[%s5 + $0x2] sm:$0x3]
      %v500 = vld [vmem:[%s5 + $0x4] sm:$0x3]
      %v501 = vld [vmem:[%s5 + $0x6] sm:$0x3]
      %v502 = vld [vmem:[%s5 + $0x8] sm:$0x3]
      %v503 = vld [vmem:[%s5 + $0xa] sm:$0x3]
      %v504 = vld [vmem:[%s5 + $0xc] sm:$0x3]
      %v505 = vld [vmem:[%s5 + $0xe] sm:$0x3]
      %v506 = vld [vmem:[%s5 + $0x10] sm:$0x3]
      %v507 = vld [vmem:[%s6] sm:$0xf]
      %v508 = vld [vmem:[%s6 + $0x4] sm:$0xf]
      %v509 = vld [vmem:[%s6 + $0x8] sm:$0xf]
      %v510 = vld [vmem:[%s6 + $0xc] sm:$0xf]
      %v511 = vlaneseq
      %v512 = vand.u32 %v511, 127
      %v513 = vadd.s32 %v512, 128
      %v514 = vadd.s32 %v512, 256
      %v515 = vsub.s32 %v512, 17
      %v516 = vsub.s32 %v513, 17
      %v517 = vsub.s32 %v514, 17
      %vm518 = vcmp.lt.s32.totalorder %v515, 0
      %v519 = vsub.s32 0, %v515
      %v520 = vsel %vm518, %v519, %v515
      %v521 = vshrl.u32 %v520, 4
      %v522 = vand.u32 %v520, 15
      %v523 = vsub.s32 0, %v522
      %v524 = vsel %vm518, %v523, %v522
      %vm525 = vcmp.lt.s32.totalorder %v516, 0
      %v526 = vsub.s32 0, %v516
      %v527 = vsel %vm525, %v526, %v516
      %v528 = vshrl.u32 %v527, 4
      %v529 = vand.u32 %v527, 15
      %v530 = vsub.s32 0, %v529
      %v531 = vsel %vm525, %v530, %v529
      %vm532 = vcmp.lt.s32.totalorder %v517, 0
      %v533 = vsub.s32 0, %v517
      %v534 = vsel %vm532, %v533, %v517
      %v535 = vshrl.u32 %v534, 4
      %v536 = vand.u32 %v534, 15
      %v537 = vsub.s32 0, %v536
      %v538 = vsel %vm532, %v537, %v536
      %vm539 = vcmp.ne.s32.totalorder %v524, 0
      %vm540 = vcmp.ne.s32.totalorder %v531, 0
      %vm541 = vcmp.ne.s32.totalorder %v538, 0
      %vm542 = vcmp.lt.s32.totalorder %v524, 0
      %vm543 = vcmp.lt.s32.totalorder %v531, 0
      %vm544 = vcmp.lt.s32.totalorder %v538, 0
      %vm545 = vmand %vm542, %vm539
      %vm546 = vmand %vm543, %vm540
      %vm547 = vmand %vm544, %vm541
      %v548 = vadd.s32 %v524, 16
      %v549 = vadd.s32 %v531, 16
      %v550 = vadd.s32 %v538, 16
      %v551 = vsel %vm545, %v548, %v524
      %v552 = vsel %vm546, %v549, %v531
      %v553 = vsel %vm547, %v550, %v538
      %vm554 = vcmp.lt.s32.totalorder %v512, 0
      %v555 = vsub.s32 0, %v512
      %v556 = vsel %vm554, %v555, %v512
      %v557 = vshrl.u32 %v556, 4
      %v558 = vand.u32 %v556, 15
      %v559 = vsub.s32 0, %v558
      %v560 = vsel %vm554, %v559, %v558
      %vm561 = vcmp.lt.s32.totalorder %v513, 0
      %v562 = vsub.s32 0, %v513
      %v563 = vsel %vm561, %v562, %v513
      %v564 = vshrl.u32 %v563, 4
      %v565 = vand.u32 %v563, 15
      %v566 = vsub.s32 0, %v565
      %v567 = vsel %vm561, %v566, %v565
      %vm568 = vcmp.ne.s32.totalorder %v560, 0
      %vm569 = vcmp.ne.s32.totalorder %v567, 0
      %vm570 = vcmp.lt.s32.totalorder %v560, 0
      %vm571 = vcmp.lt.s32.totalorder %v567, 0
      %vm572 = vmand %vm570, %vm568
      %vm573 = vmand %vm571, %vm569
      %v574 = vadd.s32 %v560, 16
      %v575 = vadd.s32 %v567, 16
      %v576 = vsel %vm572, %v574, %v560
      %v577 = vsel %vm573, %v575, %v567
      %vm578 = vcmp.ge.s32.totalorder %v551, 1
      %vm579 = vcmp.ge.s32.totalorder %v552, 1
      %vm580 = vcmp.ge.s32.totalorder %v553, 1
      %v581 = vsel %vm578, 1, 0
      %v582 = vsel %vm579, 1, 0
      %v583 = vsel %vm580, 1, 0
      %vm584 = vcmp.eq.s32.totalorder %v581, 1
      %vm585 = vcmp.eq.s32.totalorder %v582, 1
      %vm586 = vcmp.eq.s32.totalorder %v583, 1
      %vm587 = vmpackc.low %vm585, %vm584
      %vm588 = vmpackc.low %vm586, %vm586
      %v589 = vsel %vm587, 65537, 0
      %v590 = vsel %vm588, 65537, 0
      %v591 = vlaneseq
      %v592 = vshrl.u32 %v591, 7
      %v593 = vsub.s32 0, %v592
      %v594 = vrot.slane %v589, %v593
      %v595 = vlaneseq
      %v596 = vshrl.u32 %v595, 7
      %v597 = vsub.s32 4, %v596
      %v598 = vrot.slane %v589, %v597
      %v599 = vlaneseq
      %v600 = vshrl.u32 %v599, 7
      %v601 = vsub.s32 0, %v600
      %v602 = vrot.slane %v590, %v601
      %vm603 = vcmp.ne.s16.totalorder %v594, 0
      %vm604 = vcmp.ne.s16.totalorder %v598, 0
      %vm605 = vcmp.ne.s16.totalorder %v602, 0
      %v606 = vsel %vm603, %v477, 0
      %v607 = vsel %vm604, %v478, 0
      %v608 = vsel %vm605, %v479, 0
      %612 = vrot.lane.b32.xlu0 %v477, 127
      %v613 = vpop.permute.xlu0 %612
      %614 = vrot.lane.b32.xlu0 %v478, 127
      %v615 = vpop.permute.xlu0 %614
      %616 = vrot.lane.b32.xlu0 %v479, 127
      %v617 = vpop.permute.xlu0 %616
      %vm618 = vcmask 1039360
      %v619 = vsel %vm618, %v613, %v615
      %v620 = vsel %vm618, %v615, %v617
      %vm621 = vcmask 31744
      %v623 = vsel %vm621, %v481, 0
      %vm625 = vcmask 1041408
      %v627 = vsel %vm625, %v619, 0
      %v630 = vsel %vm625, %v620, 0
      %v633 = vsel %vm625, %v617, 0
      %635 = vmatprep.subr.bf16.mxu0 0
      %636 = vmatpush1.bf16.msra.mxu0 0
      %637 = vmatprep.subr.bf16.mxu0 0
      %638 = vmatpush1.bf16.msra.mxu0 0
      %639 = vmatprep.subr.bf16.mxu0 0
      %640 = vmatpush1.bf16.msra.mxu0 0
      %641 = vmatprep.subr.bf16.mxu0 0
      %642 = vmatpush1.bf16.msra.mxu0 0
      %643 = vmatprep.subr.bf16.mxu0 0
      %644 = vmatpush1.bf16.msra.mxu0 0
      %645 = vmatprep.subr.bf16.mxu0 0
      %646 = vmatpush1.bf16.msra.mxu0 0
      %647 = vmatprep.subr.bf16.mxu0 0
      %648 = vmatpush1.bf16.msra.mxu0 0
      %649 = vmatprep.subr.bf16.mxu0 %v630
      %650 = vmatpush1.bf16.msra.mxu0 %v627
      %651 = vmatprep.subr.bf16.mxu0 0
      %652 = vmatpush2.bf16.msra.mxu0 0
      %653 = vmatprep.subr.bf16.mxu0 0
      %654 = vmatpush2.bf16.msra.mxu0 0
      %655 = vmatprep.subr.bf16.mxu0 0
      %656 = vmatpush2.bf16.msra.mxu0 0
      %657 = vmatprep.subr.bf16.mxu0 0
      %658 = vmatpush2.bf16.msra.mxu0 0
      %659 = vmatprep.subr.bf16.mxu0 0
      %660 = vmatpush2.bf16.msra.mxu0 0
      %661 = vmatprep.subr.bf16.mxu0 0
      %662 = vmatpush2.bf16.msra.mxu0 0
      %663 = vmatprep.subr.bf16.mxu0 0
      %664 = vmatpush2.bf16.msra.mxu0 0
      %665 = vmatprep.subr.bf16.mxu0 0
      %666 = vmatpush2.bf16.msra.mxu0 0
      %667 = vmatprep.mubr.bf16.mxu0 0
      %668 = vmatmul.mubr.bf16.gmra.mxu0 %v623
      %v669 = vpop.f32.mrf.mxu0
      %v670 = vadd.f32 0.0, %v669
      %v671 = vpop.f32.mrf.mxu0
      %v672 = vadd.f32 0.0, %v671
      %v673 = vpop.f32.mrf.mxu0
      %v674 = vpop.f32.mrf.mxu0
      %675 = vdwg.mxu0
      %676 = vmatprep.subr.bf16.mxu0 0
      %677 = vmatpush1.bf16.msra.mxu0 0
      %678 = vmatprep.subr.bf16.mxu0 0
      %679 = vmatpush1.bf16.msra.mxu0 0
      %680 = vmatprep.subr.bf16.mxu0 0
      %681 = vmatpush1.bf16.msra.mxu0 0
      %682 = vmatprep.subr.bf16.mxu0 0
      %683 = vmatpush1.bf16.msra.mxu0 0
      %684 = vmatprep.subr.bf16.mxu0 0
      %685 = vmatpush1.bf16.msra.mxu0 0
      %686 = vmatprep.subr.bf16.mxu0 0
      %687 = vmatpush1.bf16.msra.mxu0 0
      %688 = vmatprep.subr.bf16.mxu0 0
      %689 = vmatpush1.bf16.msra.mxu0 0
      %690 = vmatprep.subr.bf16.mxu0 0
      %691 = vmatpush1.bf16.msra.mxu0 %v633
      %692 = vmatprep.subr.bf16.mxu0 0
      %693 = vmatpush2.bf16.msra.mxu0 0
      %694 = vmatprep.subr.bf16.mxu0 0
      %695 = vmatpush2.bf16.msra.mxu0 0
      %696 = vmatprep.subr.bf16.mxu0 0
      %697 = vmatpush2.bf16.msra.mxu0 0
      %698 = vmatprep.subr.bf16.mxu0 0
      %699 = vmatpush2.bf16.msra.mxu0 0
      %700 = vmatprep.subr.bf16.mxu0 0
      %701 = vmatpush2.bf16.msra.mxu0 0
      %702 = vmatprep.subr.bf16.mxu0 0
      %703 = vmatpush2.bf16.msra.mxu0 0
      %704 = vmatprep.subr.bf16.mxu0 0
      %705 = vmatpush2.bf16.msra.mxu0 0
      %706 = vmatprep.subr.bf16.mxu0 0
      %707 = vmatpush2.bf16.msra.mxu0 0
      %708 = vmatprep.mubr.bf16.mxu0 0
      %709 = vmatmul.mubr.bf16.gmra.mxu0 %v623
      %v710 = vpop.f32.mrf.mxu0
      %v711 = vadd.f32 0.0, %v710
      %v712 = vpop.f32.mrf.mxu0
      %v713 = vpop.f32.mrf.mxu0
      %v714 = vpop.f32.mrf.mxu0
      %715 = vdwg.mxu0
      %v717 = vsel %vm621, %v480, 0
      %v720 = vsel %vm625, %v606, 0
      %v723 = vsel %vm625, %v607, 0
      %v726 = vsel %vm625, %v608, 0
      %728 = vmatprep.subr.bf16.mxu0 0
      %729 = vmatpush1.bf16.msra.mxu0 0
      %730 = vmatprep.subr.bf16.mxu0 0
      %731 = vmatpush1.bf16.msra.mxu0 0
      %732 = vmatprep.subr.bf16.mxu0 0
      %733 = vmatpush1.bf16.msra.mxu0 0
      %734 = vmatprep.subr.bf16.mxu0 0
      %735 = vmatpush1.bf16.msra.mxu0 0
      %736 = vmatprep.subr.bf16.mxu0 0
      %737 = vmatpush1.bf16.msra.mxu0 0
      %738 = vmatprep.subr.bf16.mxu0 0
      %739 = vmatpush1.bf16.msra.mxu0 0
      %740 = vmatprep.subr.bf16.mxu0 0
      %741 = vmatpush1.bf16.msra.mxu0 0
      %742 = vmatprep.subr.bf16.mxu0 %v723
      %743 = vmatpush1.bf16.msra.mxu0 %v720
      %744 = vmatprep.subr.bf16.mxu0 0
      %745 = vmatpush2.bf16.msra.mxu0 0
      %746 = vmatprep.subr.bf16.mxu0 0
      %747 = vmatpush2.bf16.msra.mxu0 0
      %748 = vmatprep.subr.bf16.mxu0 0
      %749 = vmatpush2.bf16.msra.mxu0 0
      %750 = vmatprep.subr.bf16.mxu0 0
      %751 = vmatpush2.bf16.msra.mxu0 0
      %752 = vmatprep.subr.bf16.mxu0 0
      %753 = vmatpush2.bf16.msra.mxu0 0
      %754 = vmatprep.subr.bf16.mxu0 0
      %755 = vmatpush2.bf16.msra.mxu0 0
      %756 = vmatprep.subr.bf16.mxu0 0
      %757 = vmatpush2.bf16.msra.mxu0 0
      %758 = vmatprep.subr.bf16.mxu0 0
      %759 = vmatpush2.bf16.msra.mxu0 0
      %760 = vmatprep.mubr.bf16.mxu0 0
      %761 = vmatmul.mubr.bf16.gmra.mxu0 %v717
      %v762 = vpop.f32.mrf.mxu0
      %v763 = vadd.f32 %v670, %v762
      %v764 = vpop.f32.mrf.mxu0
      %v765 = vadd.f32 %v672, %v764
      %v766 = vpop.f32.mrf.mxu0
      %v767 = vpop.f32.mrf.mxu0
      %768 = vdwg.mxu0
      %769 = vmatprep.subr.bf16.mxu0 0
      %770 = vmatpush1.bf16.msra.mxu0 0
      %771 = vmatprep.subr.bf16.mxu0 0
      %772 = vmatpush1.bf16.msra.mxu0 0
      %773 = vmatprep.subr.bf16.mxu0 0
      %774 = vmatpush1.bf16.msra.mxu0 0
      %775 = vmatprep.subr.bf16.mxu0 0
      %776 = vmatpush1.bf16.msra.mxu0 0
      %777 = vmatprep.subr.bf16.mxu0 0
      %778 = vmatpush1.bf16.msra.mxu0 0
      %779 = vmatprep.subr.bf16.mxu0 0
      %780 = vmatpush1.bf16.msra.mxu0 0
      %781 = vmatprep.subr.bf16.mxu0 0
      %782 = vmatpush1.bf16.msra.mxu0 0
      %783 = vmatprep.subr.bf16.mxu0 0
      %784 = vmatpush1.bf16.msra.mxu0 %v726
      %785 = vmatprep.subr.bf16.mxu0 0
      %786 = vmatpush2.bf16.msra.mxu0 0
      %787 = vmatprep.subr.bf16.mxu0 0
      %788 = vmatpush2.bf16.msra.mxu0 0
      %789 = vmatprep.subr.bf16.mxu0 0
      %790 = vmatpush2.bf16.msra.mxu0 0
      %791 = vmatprep.subr.bf16.mxu0 0
      %792 = vmatpush2.bf16.msra.mxu0 0
      %793 = vmatprep.subr.bf16.mxu0 0
      %794 = vmatpush2.bf16.msra.mxu0 0
      %795 = vmatprep.subr.bf16.mxu0 0
      %796 = vmatpush2.bf16.msra.mxu0 0
      %797 = vmatprep.subr.bf16.mxu0 0
      %798 = vmatpush2.bf16.msra.mxu0 0
      %799 = vmatprep.subr.bf16.mxu0 0
      %800 = vmatpush2.bf16.msra.mxu0 0
      %801 = vmatprep.mubr.bf16.mxu0 0
      %802 = vmatmul.mubr.bf16.gmra.mxu0 %v717
      %v803 = vpop.f32.mrf.mxu0
      %v804 = vadd.f32 %v711, %v803
      %v805 = vpop.f32.mrf.mxu0
      %v806 = vpop.f32.mrf.mxu0
      %v807 = vpop.f32.mrf.mxu0
      %808 = vdwg.mxu0
      %vm809 = vcmp.le.s32.totalorder %v551, 14
      %vm810 = vcmp.le.s32.totalorder %v552, 14
      %vm811 = vcmp.le.s32.totalorder %v553, 14
      %v812 = vsel %vm809, 1, 0
      %v813 = vsel %vm810, 1, 0
      %v814 = vsel %vm811, 1, 0
      %vm815 = vcmp.eq.s32.totalorder %v812, 1
      %vm816 = vcmp.eq.s32.totalorder %v813, 1
      %vm817 = vcmp.eq.s32.totalorder %v814, 1
      %vm818 = vmpackc.low %vm816, %vm815
      %vm819 = vmpackc.low %vm817, %vm817
      %v820 = vsel %vm818, 65537, 0
      %v821 = vsel %vm819, 65537, 0
      %v822 = vlaneseq
      %v823 = vshrl.u32 %v822, 7
      %v824 = vsub.s32 0, %v823
      %v825 = vrot.slane %v820, %v824
      %v826 = vlaneseq
      %v827 = vshrl.u32 %v826, 7
      %v828 = vsub.s32 4, %v827
      %v829 = vrot.slane %v820, %v828
      %v830 = vlaneseq
      %v831 = vshrl.u32 %v830, 7
      %v832 = vsub.s32 0, %v831
      %v833 = vrot.slane %v821, %v832
      %834 = vrot.lane.b32.xlu0 %v825, 2
      %v835 = vpop.permute.xlu0 %834
      %836 = vrot.lane.b32.xlu0 %v829, 2
      %v837 = vpop.permute.xlu0 %836
      %838 = vrot.lane.b32.xlu0 %v833, 2
      %v839 = vpop.permute.xlu0 %838
      %vm840 = vcmask 15360
      %v841 = vsel %vm840, %v835, %v837
      %v842 = vsel %vm840, %v837, %v839
      %vm843 = vcmp.ne.s16.totalorder %v835, 0
      %vm844 = vcmp.ne.s16.totalorder %v841, 0
      %vm845 = vcmp.ne.s16.totalorder %v842, 0
      %v846 = vsel %vm843, %v477, 0
      %v847 = vsel %vm844, %v478, 0
      %v848 = vsel %vm845, %v479, 0
      %852 = vrot.lane.b32.xlu0 %v846, 126
      %v853 = vpop.permute.xlu0 %852
      %854 = vrot.lane.b32.xlu0 %v847, 126
      %v855 = vpop.permute.xlu0 %854
      %856 = vrot.lane.b32.xlu0 %v848, 126
      %v857 = vpop.permute.xlu0 %856
      %vm858 = vcmask 1031168
      %v859 = vsel %vm858, %v853, %v855
      %v860 = vsel %vm858, %v855, %v857
      %v862 = vsel %vm621, %v482, 0
      %v865 = vsel %vm625, %v859, 0
      %v868 = vsel %vm625, %v860, 0
      %v871 = vsel %vm625, %v857, 0
      %873 = vmatprep.subr.bf16.mxu0 0
      %874 = vmatpush1.bf16.msra.mxu0 0
      %875 = vmatprep.subr.bf16.mxu0 0
      %876 = vmatpush1.bf16.msra.mxu0 0
      %877 = vmatprep.subr.bf16.mxu0 0
      %878 = vmatpush1.bf16.msra.mxu0 0
      %879 = vmatprep.subr.bf16.mxu0 0
      %880 = vmatpush1.bf16.msra.mxu0 0
      %881 = vmatprep.subr.bf16.mxu0 0
      %882 = vmatpush1.bf16.msra.mxu0 0
      %883 = vmatprep.subr.bf16.mxu0 0
      %884 = vmatpush1.bf16.msra.mxu0 0
      %885 = vmatprep.subr.bf16.mxu0 0
      %886 = vmatpush1.bf16.msra.mxu0 0
      %887 = vmatprep.subr.bf16.mxu0 %v868
      %888 = vmatpush1.bf16.msra.mxu0 %v865
      %889 = vmatprep.subr.bf16.mxu0 0
      %890 = vmatpush2.bf16.msra.mxu0 0
      %891 = vmatprep.subr.bf16.mxu0 0
      %892 = vmatpush2.bf16.msra.mxu0 0
      %893 = vmatprep.subr.bf16.mxu0 0
      %894 = vmatpush2.bf16.msra.mxu0 0
      %895 = vmatprep.subr.bf16.mxu0 0
      %896 = vmatpush2.bf16.msra.mxu0 0
      %897 = vmatprep.subr.bf16.mxu0 0
      %898 = vmatpush2.bf16.msra.mxu0 0
      %899 = vmatprep.subr.bf16.mxu0 0
      %900 = vmatpush2.bf16.msra.mxu0 0
      %901 = vmatprep.subr.bf16.mxu0 0
      %902 = vmatpush2.bf16.msra.mxu0 0
      %903 = vmatprep.subr.bf16.mxu0 0
      %904 = vmatpush2.bf16.msra.mxu0 0
      %905 = vmatprep.mubr.bf16.mxu0 0
      %906 = vmatmul.mubr.bf16.gmra.mxu0 %v862
      %v907 = vpop.f32.mrf.mxu0
      %v908 = vadd.f32 0.0, %v907
      %v909 = vpop.f32.mrf.mxu0
      %v910 = vadd.f32 0.0, %v909
      %v911 = vpop.f32.mrf.mxu0
      %v912 = vpop.f32.mrf.mxu0
      %913 = vdwg.mxu0
      %914 = vmatprep.subr.bf16.mxu0 0
      %915 = vmatpush1.bf16.msra.mxu0 0
      %916 = vmatprep.subr.bf16.mxu0 0
      %917 = vmatpush1.bf16.msra.mxu0 0
      %918 = vmatprep.subr.bf16.mxu0 0
      %919 = vmatpush1.bf16.msra.mxu0 0
      %920 = vmatprep.subr.bf16.mxu0 0
      %921 = vmatpush1.bf16.msra.mxu0 0
      %922 = vmatprep.subr.bf16.mxu0 0
      %923 = vmatpush1.bf16.msra.mxu0 0
      %924 = vmatprep.subr.bf16.mxu0 0
      %925 = vmatpush1.bf16.msra.mxu0 0
      %926 = vmatprep.subr.bf16.mxu0 0
      %927 = vmatpush1.bf16.msra.mxu0 0
      %928 = vmatprep.subr.bf16.mxu0 0
      %929 = vmatpush1.bf16.msra.mxu0 %v871
      %930 = vmatprep.subr.bf16.mxu0 0
      %931 = vmatpush2.bf16.msra.mxu0 0
      %932 = vmatprep.subr.bf16.mxu0 0
      %933 = vmatpush2.bf16.msra.mxu0 0
      %934 = vmatprep.subr.bf16.mxu0 0
      %935 = vmatpush2.bf16.msra.mxu0 0
      %936 = vmatprep.subr.bf16.mxu0 0
      %937 = vmatpush2.bf16.msra.mxu0 0
      %938 = vmatprep.subr.bf16.mxu0 0
      %939 = vmatpush2.bf16.msra.mxu0 0
      %940 = vmatprep.subr.bf16.mxu0 0
      %941 = vmatpush2.bf16.msra.mxu0 0
      %942 = vmatprep.subr.bf16.mxu0 0
      %943 = vmatpush2.bf16.msra.mxu0 0
      %944 = vmatprep.subr.bf16.mxu0 0
      %945 = vmatpush2.bf16.msra.mxu0 0
      %946 = vmatprep.mubr.bf16.mxu0 0
      %947 = vmatmul.mubr.bf16.gmra.mxu0 %v862
      %v948 = vpop.f32.mrf.mxu0
      %v949 = vadd.f32 0.0, %v948
      %v950 = vpop.f32.mrf.mxu0
      %v951 = vpop.f32.mrf.mxu0
      %v952 = vpop.f32.mrf.mxu0
      %953 = vdwg.mxu0
      %v954 = vadd.f32 %v763, %v908
      %v955 = vadd.f32 %v765, %v910
      %v956 = vadd.f32 %v804, %v949
      %957 = vrot.lane.b32.xlu0 %v594, 16
      %v958 = vpop.permute.xlu0 %957
      %959 = vrot.lane.b32.xlu0 %v598, 16
      %v960 = vpop.permute.xlu0 %959
      %961 = vrot.lane.b32.xlu0 %v602, 16
      %v962 = vpop.permute.xlu0 %961
      %vm963 = vcmask 130048
      %v964 = vsel %vm963, %v958, %v960
      %v965 = vsel %vm963, %v960, %v962
      %vm966 = vcmp.ne.s16.totalorder %v958, 0
      %vm967 = vcmp.ne.s16.totalorder %v964, 0
      %vm968 = vcmp.ne.s16.totalorder %v965, 0
      %v969 = vsel %vm966, %v477, 0
      %v970 = vsel %vm967, %v478, 0
      %v971 = vsel %vm968, %v479, 0
      %975 = vrot.lane.b32.xlu0 %v969, 112
      %v976 = vpop.permute.xlu0 %975
      %977 = vrot.lane.b32.xlu0 %v970, 112
      %v978 = vpop.permute.xlu0 %977
      %979 = vrot.lane.b32.xlu0 %v971, 112
      %v980 = vpop.permute.xlu0 %979
      %vm981 = vcmask 916480
      %v982 = vsel %vm981, %v976, %v978
      %v983 = vsel %vm981, %v978, %v980
      %v985 = vsel %vm621, %v483, 0
      %v988 = vsel %vm625, %v982, 0
      %v991 = vsel %vm625, %v983, 0
      %v994 = vsel %vm625, %v980, 0
      %996 = vmatprep.subr.bf16.mxu0 0
      %997 = vmatpush1.bf16.msra.mxu0 0
      %998 = vmatprep.subr.bf16.mxu0 0
      %999 = vmatpush1.bf16.msra.mxu0 0
      %1000 = vmatprep.subr.bf16.mxu0 0
      %1001 = vmatpush1.bf16.msra.mxu0 0
      %1002 = vmatprep.subr.bf16.mxu0 0
      %1003 = vmatpush1.bf16.msra.mxu0 0
      %1004 = vmatprep.subr.bf16.mxu0 0
      %1005 = vmatpush1.bf16.msra.mxu0 0
      %1006 = vmatprep.subr.bf16.mxu0 0
      %1007 = vmatpush1.bf16.msra.mxu0 0
      %1008 = vmatprep.subr.bf16.mxu0 0
      %1009 = vmatpush1.bf16.msra.mxu0 0
      %1010 = vmatprep.subr.bf16.mxu0 %v991
      %1011 = vmatpush1.bf16.msra.mxu0 %v988
      %1012 = vmatprep.subr.bf16.mxu0 0
      %1013 = vmatpush2.bf16.msra.mxu0 0
      %1014 = vmatprep.subr.bf16.mxu0 0
      %1015 = vmatpush2.bf16.msra.mxu0 0
      %1016 = vmatprep.subr.bf16.mxu0 0
      %1017 = vmatpush2.bf16.msra.mxu0 0
      %1018 = vmatprep.subr.bf16.mxu0 0
      %1019 = vmatpush2.bf16.msra.mxu0 0
      %1020 = vmatprep.subr.bf16.mxu0 0
      %1021 = vmatpush2.bf16.msra.mxu0 0
      %1022 = vmatprep.subr.bf16.mxu0 0
      %1023 = vmatpush2.bf16.msra.mxu0 0
      %1024 = vmatprep.subr.bf16.mxu0 0
      %1025 = vmatpush2.bf16.msra.mxu0 0
      %1026 = vmatprep.subr.bf16.mxu0 0
      %1027 = vmatpush2.bf16.msra.mxu0 0
      %1028 = vmatprep.mubr.bf16.mxu0 0
      %1029 = vmatmul.mubr.bf16.gmra.mxu0 %v985
      %v1030 = vpop.f32.mrf.mxu0
      %v1031 = vadd.f32 0.0, %v1030
      %v1032 = vpop.f32.mrf.mxu0
      %v1033 = vadd.f32 0.0, %v1032
      %v1034 = vpop.f32.mrf.mxu0
      %v1035 = vpop.f32.mrf.mxu0
      %1036 = vdwg.mxu0
      %1037 = vmatprep.subr.bf16.mxu0 0
      %1038 = vmatpush1.bf16.msra.mxu0 0
      %1039 = vmatprep.subr.bf16.mxu0 0
      %1040 = vmatpush1.bf16.msra.mxu0 0
      %1041 = vmatprep.subr.bf16.mxu0 0
      %1042 = vmatpush1.bf16.msra.mxu0 0
      %1043 = vmatprep.subr.bf16.mxu0 0
      %1044 = vmatpush1.bf16.msra.mxu0 0
      %1045 = vmatprep.subr.bf16.mxu0 0
      %1046 = vmatpush1.bf16.msra.mxu0 0
      %1047 = vmatprep.subr.bf16.mxu0 0
      %1048 = vmatpush1.bf16.msra.mxu0 0
      %1049 = vmatprep.subr.bf16.mxu0 0
      %1050 = vmatpush1.bf16.msra.mxu0 0
      %1051 = vmatprep.subr.bf16.mxu0 0
      %1052 = vmatpush1.bf16.msra.mxu0 %v994
      %1053 = vmatprep.subr.bf16.mxu0 0
      %1054 = vmatpush2.bf16.msra.mxu0 0
      %1055 = vmatprep.subr.bf16.mxu0 0
      %1056 = vmatpush2.bf16.msra.mxu0 0
      %1057 = vmatprep.subr.bf16.mxu0 0
      %1058 = vmatpush2.bf16.msra.mxu0 0
      %1059 = vmatprep.subr.bf16.mxu0 0
      %1060 = vmatpush2.bf16.msra.mxu0 0
      %1061 = vmatprep.subr.bf16.mxu0 0
      %1062 = vmatpush2.bf16.msra.mxu0 0
      %1063 = vmatprep.subr.bf16.mxu0 0
      %1064 = vmatpush2.bf16.msra.mxu0 0
      %1065 = vmatprep.subr.bf16.mxu0 0
      %1066 = vmatpush2.bf16.msra.mxu0 0
      %1067 = vmatprep.subr.bf16.mxu0 0
      %1068 = vmatpush2.bf16.msra.mxu0 0
      %1069 = vmatprep.mubr.bf16.mxu0 0
      %1070 = vmatmul.mubr.bf16.gmra.mxu0 %v985
      %v1071 = vpop.f32.mrf.mxu0
      %v1072 = vadd.f32 0.0, %v1071
      %v1073 = vpop.f32.mrf.mxu0
      %v1074 = vpop.f32.mrf.mxu0
      %v1075 = vpop.f32.mrf.mxu0
      %1076 = vdwg.mxu0
      %v1077 = vadd.f32 %v954, %v1031
      %v1078 = vadd.f32 %v955, %v1033
      %v1079 = vadd.f32 %v956, %v1072
      %1080 = vrot.lane.b32.xlu0 %v477, 111
      %v1081 = vpop.permute.xlu0 %1080
      %1082 = vrot.lane.b32.xlu0 %v478, 111
      %v1083 = vpop.permute.xlu0 %1082
      %1084 = vrot.lane.b32.xlu0 %v479, 111
      %v1085 = vpop.permute.xlu0 %1084
      %vm1086 = vcmask 908288
      %v1087 = vsel %vm1086, %v1081, %v1083
      %v1088 = vsel %vm1086, %v1083, %v1085
      %v1090 = vsel %vm621, %v484, 0
      %v1093 = vsel %vm625, %v1087, 0
      %v1096 = vsel %vm625, %v1088, 0
      %v1099 = vsel %vm625, %v1085, 0
      %1101 = vmatprep.subr.bf16.mxu0 0
      %1102 = vmatpush1.bf16.msra.mxu0 0
      %1103 = vmatprep.subr.bf16.mxu0 0
      %1104 = vmatpush1.bf16.msra.mxu0 0
      %1105 = vmatprep.subr.bf16.mxu0 0
      %1106 = vmatpush1.bf16.msra.mxu0 0
      %1107 = vmatprep.subr.bf16.mxu0 0
      %1108 = vmatpush1.bf16.msra.mxu0 0
      %1109 = vmatprep.subr.bf16.mxu0 0
      %1110 = vmatpush1.bf16.msra.mxu0 0
      %1111 = vmatprep.subr.bf16.mxu0 0
      %1112 = vmatpush1.bf16.msra.mxu0 0
      %1113 = vmatprep.subr.bf16.mxu0 0
      %1114 = vmatpush1.bf16.msra.mxu0 0
      %1115 = vmatprep.subr.bf16.mxu0 %v1096
      %1116 = vmatpush1.bf16.msra.mxu0 %v1093
      %1117 = vmatprep.subr.bf16.mxu0 0
      %1118 = vmatpush2.bf16.msra.mxu0 0
      %1119 = vmatprep.subr.bf16.mxu0 0
      %1120 = vmatpush2.bf16.msra.mxu0 0
      %1121 = vmatprep.subr.bf16.mxu0 0
      %1122 = vmatpush2.bf16.msra.mxu0 0
      %1123 = vmatprep.subr.bf16.mxu0 0
      %1124 = vmatpush2.bf16.msra.mxu0 0
      %1125 = vmatprep.subr.bf16.mxu0 0
      %1126 = vmatpush2.bf16.msra.mxu0 0
      %1127 = vmatprep.subr.bf16.mxu0 0
      %1128 = vmatpush2.bf16.msra.mxu0 0
      %1129 = vmatprep.subr.bf16.mxu0 0
      %1130 = vmatpush2.bf16.msra.mxu0 0
      %1131 = vmatprep.subr.bf16.mxu0 0
      %1132 = vmatpush2.bf16.msra.mxu0 0
      %1133 = vmatprep.mubr.bf16.mxu0 0
      %1134 = vmatmul.mubr.bf16.gmra.mxu0 %v1090
      %v1135 = vpop.f32.mrf.mxu0
      %v1136 = vadd.f32 0.0, %v1135
      %v1137 = vpop.f32.mrf.mxu0
      %v1138 = vadd.f32 0.0, %v1137
      %v1139 = vpop.f32.mrf.mxu0
      %v1140 = vpop.f32.mrf.mxu0
      %1141 = vdwg.mxu0
      %1142 = vmatprep.subr.bf16.mxu0 0
      %1143 = vmatpush1.bf16.msra.mxu0 0
      %1144 = vmatprep.subr.bf16.mxu0 0
      %1145 = vmatpush1.bf16.msra.mxu0 0
      %1146 = vmatprep.subr.bf16.mxu0 0
      %1147 = vmatpush1.bf16.msra.mxu0 0
      %1148 = vmatprep.subr.bf16.mxu0 0
      %1149 = vmatpush1.bf16.msra.mxu0 0
      %1150 = vmatprep.subr.bf16.mxu0 0
      %1151 = vmatpush1.bf16.msra.mxu0 0
      %1152 = vmatprep.subr.bf16.mxu0 0
      %1153 = vmatpush1.bf16.msra.mxu0 0
      %1154 = vmatprep.subr.bf16.mxu0 0
      %1155 = vmatpush1.bf16.msra.mxu0 0
      %1156 = vmatprep.subr.bf16.mxu0 0
      %1157 = vmatpush1.bf16.msra.mxu0 %v1099
      %1158 = vmatprep.subr.bf16.mxu0 0
      %1159 = vmatpush2.bf16.msra.mxu0 0
      %1160 = vmatprep.subr.bf16.mxu0 0
      %1161 = vmatpush2.bf16.msra.mxu0 0
      %1162 = vmatprep.subr.bf16.mxu0 0
      %1163 = vmatpush2.bf16.msra.mxu0 0
      %1164 = vmatprep.subr.bf16.mxu0 0
      %1165 = vmatpush2.bf16.msra.mxu0 0
      %1166 = vmatprep.subr.bf16.mxu0 0
      %1167 = vmatpush2.bf16.msra.mxu0 0
      %1168 = vmatprep.subr.bf16.mxu0 0
      %1169 = vmatpush2.bf16.msra.mxu0 0
      %1170 = vmatprep.subr.bf16.mxu0 0
      %1171 = vmatpush2.bf16.msra.mxu0 0
      %1172 = vmatprep.subr.bf16.mxu0 0
      %1173 = vmatpush2.bf16.msra.mxu0 0
      %1174 = vmatprep.mubr.bf16.mxu0 0
      %1175 = vmatmul.mubr.bf16.gmra.mxu0 %v1090
      %v1176 = vpop.f32.mrf.mxu0
      %v1177 = vadd.f32 0.0, %v1176
      %v1178 = vpop.f32.mrf.mxu0
      %v1179 = vpop.f32.mrf.mxu0
      %v1180 = vpop.f32.mrf.mxu0
      %1181 = vdwg.mxu0
      %v1182 = vadd.f32 %v1077, %v1136
      %v1183 = vadd.f32 %v1078, %v1138
      %v1184 = vadd.f32 %v1079, %v1177
      %1185 = vrot.lane.b32.xlu0 %v825, 18
      %v1186 = vpop.permute.xlu0 %1185
      %1187 = vrot.lane.b32.xlu0 %v829, 18
      %v1188 = vpop.permute.xlu0 %1187
      %1189 = vrot.lane.b32.xlu0 %v833, 18
      %v1190 = vpop.permute.xlu0 %1189
      %vm1191 = vcmask 146432
      %v1192 = vsel %vm1191, %v1186, %v1188
      %v1193 = vsel %vm1191, %v1188, %v1190
      %vm1194 = vcmp.ne.s16.totalorder %v1186, 0
      %vm1195 = vcmp.ne.s16.totalorder %v1192, 0
      %vm1196 = vcmp.ne.s16.totalorder %v1193, 0
      %v1197 = vsel %vm1194, %v477, 0
      %v1198 = vsel %vm1195, %v478, 0
      %v1199 = vsel %vm1196, %v479, 0
      %1203 = vrot.lane.b32.xlu0 %v1197, 110
      %v1204 = vpop.permute.xlu0 %1203
      %1205 = vrot.lane.b32.xlu0 %v1198, 110
      %v1206 = vpop.permute.xlu0 %1205
      %1207 = vrot.lane.b32.xlu0 %v1199, 110
      %v1208 = vpop.permute.xlu0 %1207
      %vm1209 = vcmask 900096
      %v1210 = vsel %vm1209, %v1204, %v1206
      %v1211 = vsel %vm1209, %v1206, %v1208
      %v1213 = vsel %vm621, %v485, 0
      %v1216 = vsel %vm625, %v1210, 0
      %v1219 = vsel %vm625, %v1211, 0
      %v1222 = vsel %vm625, %v1208, 0
      %1224 = vmatprep.subr.bf16.mxu0 0
      %1225 = vmatpush1.bf16.msra.mxu0 0
      %1226 = vmatprep.subr.bf16.mxu0 0
      %1227 = vmatpush1.bf16.msra.mxu0 0
      %1228 = vmatprep.subr.bf16.mxu0 0
      %1229 = vmatpush1.bf16.msra.mxu0 0
      %1230 = vmatprep.subr.bf16.mxu0 0
      %1231 = vmatpush1.bf16.msra.mxu0 0
      %1232 = vmatprep.subr.bf16.mxu0 0
      %1233 = vmatpush1.bf16.msra.mxu0 0
      %1234 = vmatprep.subr.bf16.mxu0 0
      %1235 = vmatpush1.bf16.msra.mxu0 0
      %1236 = vmatprep.subr.bf16.mxu0 0
      %1237 = vmatpush1.bf16.msra.mxu0 0
      %1238 = vmatprep.subr.bf16.mxu0 %v1219
      %1239 = vmatpush1.bf16.msra.mxu0 %v1216
      %1240 = vmatprep.subr.bf16.mxu0 0
      %1241 = vmatpush2.bf16.msra.mxu0 0
      %1242 = vmatprep.subr.bf16.mxu0 0
      %1243 = vmatpush2.bf16.msra.mxu0 0
      %1244 = vmatprep.subr.bf16.mxu0 0
      %1245 = vmatpush2.bf16.msra.mxu0 0
      %1246 = vmatprep.subr.bf16.mxu0 0
      %1247 = vmatpush2.bf16.msra.mxu0 0
      %1248 = vmatprep.subr.bf16.mxu0 0
      %1249 = vmatpush2.bf16.msra.mxu0 0
      %1250 = vmatprep.subr.bf16.mxu0 0
      %1251 = vmatpush2.bf16.msra.mxu0 0
      %1252 = vmatprep.subr.bf16.mxu0 0
      %1253 = vmatpush2.bf16.msra.mxu0 0
      %1254 = vmatprep.subr.bf16.mxu0 0
      %1255 = vmatpush2.bf16.msra.mxu0 0
      %1256 = vmatprep.mubr.bf16.mxu0 0
      %1257 = vmatmul.mubr.bf16.gmra.mxu0 %v1213
      %v1258 = vpop.f32.mrf.mxu0
      %v1259 = vadd.f32 0.0, %v1258
      %v1260 = vpop.f32.mrf.mxu0
      %v1261 = vadd.f32 0.0, %v1260
      %v1262 = vpop.f32.mrf.mxu0
      %v1263 = vpop.f32.mrf.mxu0
      %1264 = vdwg.mxu0
      %1265 = vmatprep.subr.bf16.mxu0 0
      %1266 = vmatpush1.bf16.msra.mxu0 0
      %1267 = vmatprep.subr.bf16.mxu0 0
      %1268 = vmatpush1.bf16.msra.mxu0 0
      %1269 = vmatprep.subr.bf16.mxu0 0
      %1270 = vmatpush1.bf16.msra.mxu0 0
      %1271 = vmatprep.subr.bf16.mxu0 0
      %1272 = vmatpush1.bf16.msra.mxu0 0
      %1273 = vmatprep.subr.bf16.mxu0 0
      %1274 = vmatpush1.bf16.msra.mxu0 0
      %1275 = vmatprep.subr.bf16.mxu0 0
      %1276 = vmatpush1.bf16.msra.mxu0 0
      %1277 = vmatprep.subr.bf16.mxu0 0
      %1278 = vmatpush1.bf16.msra.mxu0 0
      %1279 = vmatprep.subr.bf16.mxu0 0
      %1280 = vmatpush1.bf16.msra.mxu0 %v1222
      %1281 = vmatprep.subr.bf16.mxu0 0
      %1282 = vmatpush2.bf16.msra.mxu0 0
      %1283 = vmatprep.subr.bf16.mxu0 0
      %1284 = vmatpush2.bf16.msra.mxu0 0
      %1285 = vmatprep.subr.bf16.mxu0 0
      %1286 = vmatpush2.bf16.msra.mxu0 0
      %1287 = vmatprep.subr.bf16.mxu0 0
      %1288 = vmatpush2.bf16.msra.mxu0 0
      %1289 = vmatprep.subr.bf16.mxu0 0
      %1290 = vmatpush2.bf16.msra.mxu0 0
      %1291 = vmatprep.subr.bf16.mxu0 0
      %1292 = vmatpush2.bf16.msra.mxu0 0
      %1293 = vmatprep.subr.bf16.mxu0 0
      %1294 = vmatpush2.bf16.msra.mxu0 0
      %1295 = vmatprep.subr.bf16.mxu0 0
      %1296 = vmatpush2.bf16.msra.mxu0 0
      %1297 = vmatprep.mubr.bf16.mxu0 0
      %1298 = vmatmul.mubr.bf16.gmra.mxu0 %v1213
      %v1299 = vpop.f32.mrf.mxu0
      %v1300 = vadd.f32 0.0, %v1299
      %v1301 = vpop.f32.mrf.mxu0
      %v1302 = vpop.f32.mrf.mxu0
      %v1303 = vpop.f32.mrf.mxu0
      %1304 = vdwg.mxu0
      %v1305 = vadd.f32 %v1182, %v1259
      %v1306 = vadd.f32 %v1183, %v1261
      %v1307 = vadd.f32 %v1184, %v1300
      %1308 = vrot.lane.b32.xlu0 %v594, 32
      %v1309 = vpop.permute.xlu0 %1308
      %1310 = vrot.lane.b32.xlu0 %v598, 32
      %v1311 = vpop.permute.xlu0 %1310
      %1312 = vrot.lane.b32.xlu0 %v602, 32
      %v1313 = vpop.permute.xlu0 %1312
      %vm1314 = vcmask 261120
      %v1315 = vsel %vm1314, %v1309, %v1311
      %v1316 = vsel %vm1314, %v1311, %v1313
      %vm1317 = vcmp.ne.s16.totalorder %v1309, 0
      %vm1318 = vcmp.ne.s16.totalorder %v1315, 0
      %vm1319 = vcmp.ne.s16.totalorder %v1316, 0
      %v1320 = vsel %vm1317, %v477, 0
      %v1321 = vsel %vm1318, %v478, 0
      %v1322 = vsel %vm1319, %v479, 0
      %1326 = vrot.lane.b32.xlu0 %v1320, 96
      %v1327 = vpop.permute.xlu0 %1326
      %1328 = vrot.lane.b32.xlu0 %v1321, 96
      %v1329 = vpop.permute.xlu0 %1328
      %1330 = vrot.lane.b32.xlu0 %v1322, 96
      %v1331 = vpop.permute.xlu0 %1330
      %vm1332 = vcmask 785408
      %v1333 = vsel %vm1332, %v1327, %v1329
      %v1334 = vsel %vm1332, %v1329, %v1331
      %v1336 = vsel %vm621, %v486, 0
      %v1339 = vsel %vm625, %v1333, 0
      %v1342 = vsel %vm625, %v1334, 0
      %v1345 = vsel %vm625, %v1331, 0
      %1347 = vmatprep.subr.bf16.mxu0 0
      %1348 = vmatpush1.bf16.msra.mxu0 0
      %1349 = vmatprep.subr.bf16.mxu0 0
      %1350 = vmatpush1.bf16.msra.mxu0 0
      %1351 = vmatprep.subr.bf16.mxu0 0
      %1352 = vmatpush1.bf16.msra.mxu0 0
      %1353 = vmatprep.subr.bf16.mxu0 0
      %1354 = vmatpush1.bf16.msra.mxu0 0
      %1355 = vmatprep.subr.bf16.mxu0 0
      %1356 = vmatpush1.bf16.msra.mxu0 0
      %1357 = vmatprep.subr.bf16.mxu0 0
      %1358 = vmatpush1.bf16.msra.mxu0 0
      %1359 = vmatprep.subr.bf16.mxu0 0
      %1360 = vmatpush1.bf16.msra.mxu0 0
      %1361 = vmatprep.subr.bf16.mxu0 %v1342
      %1362 = vmatpush1.bf16.msra.mxu0 %v1339
      %1363 = vmatprep.subr.bf16.mxu0 0
      %1364 = vmatpush2.bf16.msra.mxu0 0
      %1365 = vmatprep.subr.bf16.mxu0 0
      %1366 = vmatpush2.bf16.msra.mxu0 0
      %1367 = vmatprep.subr.bf16.mxu0 0
      %1368 = vmatpush2.bf16.msra.mxu0 0
      %1369 = vmatprep.subr.bf16.mxu0 0
      %1370 = vmatpush2.bf16.msra.mxu0 0
      %1371 = vmatprep.subr.bf16.mxu0 0
      %1372 = vmatpush2.bf16.msra.mxu0 0
      %1373 = vmatprep.subr.bf16.mxu0 0
      %1374 = vmatpush2.bf16.msra.mxu0 0
      %1375 = vmatprep.subr.bf16.mxu0 0
      %1376 = vmatpush2.bf16.msra.mxu0 0
      %1377 = vmatprep.subr.bf16.mxu0 0
      %1378 = vmatpush2.bf16.msra.mxu0 0
      %1379 = vmatprep.mubr.bf16.mxu0 0
      %1380 = vmatmul.mubr.bf16.gmra.mxu0 %v1336
      %v1381 = vpop.f32.mrf.mxu0
      %v1382 = vadd.f32 0.0, %v1381
      %v1383 = vpop.f32.mrf.mxu0
      %v1384 = vadd.f32 0.0, %v1383
      %v1385 = vpop.f32.mrf.mxu0
      %v1386 = vpop.f32.mrf.mxu0
      %1387 = vdwg.mxu0
      %1388 = vmatprep.subr.bf16.mxu0 0
      %1389 = vmatpush1.bf16.msra.mxu0 0
      %1390 = vmatprep.subr.bf16.mxu0 0
      %1391 = vmatpush1.bf16.msra.mxu0 0
      %1392 = vmatprep.subr.bf16.mxu0 0
      %1393 = vmatpush1.bf16.msra.mxu0 0
      %1394 = vmatprep.subr.bf16.mxu0 0
      %1395 = vmatpush1.bf16.msra.mxu0 0
      %1396 = vmatprep.subr.bf16.mxu0 0
      %1397 = vmatpush1.bf16.msra.mxu0 0
      %1398 = vmatprep.subr.bf16.mxu0 0
      %1399 = vmatpush1.bf16.msra.mxu0 0
      %1400 = vmatprep.subr.bf16.mxu0 0
      %1401 = vmatpush1.bf16.msra.mxu0 0
      %1402 = vmatprep.subr.bf16.mxu0 0
      %1403 = vmatpush1.bf16.msra.mxu0 %v1345
      %1404 = vmatprep.subr.bf16.mxu0 0
      %1405 = vmatpush2.bf16.msra.mxu0 0
      %1406 = vmatprep.subr.bf16.mxu0 0
      %1407 = vmatpush2.bf16.msra.mxu0 0
      %1408 = vmatprep.subr.bf16.mxu0 0
      %1409 = vmatpush2.bf16.msra.mxu0 0
      %1410 = vmatprep.subr.bf16.mxu0 0
      %1411 = vmatpush2.bf16.msra.mxu0 0
      %1412 = vmatprep.subr.bf16.mxu0 0
      %1413 = vmatpush2.bf16.msra.mxu0 0
      %1414 = vmatprep.subr.bf16.mxu0 0
      %1415 = vmatpush2.bf16.msra.mxu0 0
      %1416 = vmatprep.subr.bf16.mxu0 0
      %1417 = vmatpush2.bf16.msra.mxu0 0
      %1418 = vmatprep.subr.bf16.mxu0 0
      %1419 = vmatpush2.bf16.msra.mxu0 0
      %1420 = vmatprep.mubr.bf16.mxu0 0
      %1421 = vmatmul.mubr.bf16.gmra.mxu0 %v1336
      %v1422 = vpop.f32.mrf.mxu0
      %v1423 = vadd.f32 0.0, %v1422
      %v1424 = vpop.f32.mrf.mxu0
      %v1425 = vpop.f32.mrf.mxu0
      %v1426 = vpop.f32.mrf.mxu0
      %1427 = vdwg.mxu0
      %v1428 = vadd.f32 %v1305, %v1382
      %v1429 = vadd.f32 %v1306, %v1384
      %v1430 = vadd.f32 %v1307, %v1423
      %1431 = vrot.lane.b32.xlu0 %v477, 95
      %v1432 = vpop.permute.xlu0 %1431
      %1433 = vrot.lane.b32.xlu0 %v478, 95
      %v1434 = vpop.permute.xlu0 %1433
      %1435 = vrot.lane.b32.xlu0 %v479, 95
      %v1436 = vpop.permute.xlu0 %1435
      %vm1437 = vcmask 777216
      %v1438 = vsel %vm1437, %v1432, %v1434
      %v1439 = vsel %vm1437, %v1434, %v1436
      %v1441 = vsel %vm621, %v487, 0
      %v1444 = vsel %vm625, %v1438, 0
      %v1447 = vsel %vm625, %v1439, 0
      %v1450 = vsel %vm625, %v1436, 0
      %1452 = vmatprep.subr.bf16.mxu0 0
      %1453 = vmatpush1.bf16.msra.mxu0 0
      %1454 = vmatprep.subr.bf16.mxu0 0
      %1455 = vmatpush1.bf16.msra.mxu0 0
      %1456 = vmatprep.subr.bf16.mxu0 0
      %1457 = vmatpush1.bf16.msra.mxu0 0
      %1458 = vmatprep.subr.bf16.mxu0 0
      %1459 = vmatpush1.bf16.msra.mxu0 0
      %1460 = vmatprep.subr.bf16.mxu0 0
      %1461 = vmatpush1.bf16.msra.mxu0 0
      %1462 = vmatprep.subr.bf16.mxu0 0
      %1463 = vmatpush1.bf16.msra.mxu0 0
      %1464 = vmatprep.subr.bf16.mxu0 0
      %1465 = vmatpush1.bf16.msra.mxu0 0
      %1466 = vmatprep.subr.bf16.mxu0 %v1447
      %1467 = vmatpush1.bf16.msra.mxu0 %v1444
      %1468 = vmatprep.subr.bf16.mxu0 0
      %1469 = vmatpush2.bf16.msra.mxu0 0
      %1470 = vmatprep.subr.bf16.mxu0 0
      %1471 = vmatpush2.bf16.msra.mxu0 0
      %1472 = vmatprep.subr.bf16.mxu0 0
      %1473 = vmatpush2.bf16.msra.mxu0 0
      %1474 = vmatprep.subr.bf16.mxu0 0
      %1475 = vmatpush2.bf16.msra.mxu0 0
      %1476 = vmatprep.subr.bf16.mxu0 0
      %1477 = vmatpush2.bf16.msra.mxu0 0
      %1478 = vmatprep.subr.bf16.mxu0 0
      %1479 = vmatpush2.bf16.msra.mxu0 0
      %1480 = vmatprep.subr.bf16.mxu0 0
      %1481 = vmatpush2.bf16.msra.mxu0 0
      %1482 = vmatprep.subr.bf16.mxu0 0
      %1483 = vmatpush2.bf16.msra.mxu0 0
      %1484 = vmatprep.mubr.bf16.mxu0 0
      %1485 = vmatmul.mubr.bf16.gmra.mxu0 %v1441
      %v1486 = vpop.f32.mrf.mxu0
      %v1487 = vadd.f32 0.0, %v1486
      %v1488 = vpop.f32.mrf.mxu0
      %v1489 = vadd.f32 0.0, %v1488
      %v1490 = vpop.f32.mrf.mxu0
      %v1491 = vpop.f32.mrf.mxu0
      %1492 = vdwg.mxu0
      %1493 = vmatprep.subr.bf16.mxu0 0
      %1494 = vmatpush1.bf16.msra.mxu0 0
      %1495 = vmatprep.subr.bf16.mxu0 0
      %1496 = vmatpush1.bf16.msra.mxu0 0
      %1497 = vmatprep.subr.bf16.mxu0 0
      %1498 = vmatpush1.bf16.msra.mxu0 0
      %1499 = vmatprep.subr.bf16.mxu0 0
      %1500 = vmatpush1.bf16.msra.mxu0 0
      %1501 = vmatprep.subr.bf16.mxu0 0
      %1502 = vmatpush1.bf16.msra.mxu0 0
      %1503 = vmatprep.subr.bf16.mxu0 0
      %1504 = vmatpush1.bf16.msra.mxu0 0
      %1505 = vmatprep.subr.bf16.mxu0 0
      %1506 = vmatpush1.bf16.msra.mxu0 0
      %1507 = vmatprep.subr.bf16.mxu0 0
      %1508 = vmatpush1.bf16.msra.mxu0 %v1450
      %1509 = vmatprep.subr.bf16.mxu0 0
      %1510 = vmatpush2.bf16.msra.mxu0 0
      %1511 = vmatprep.subr.bf16.mxu0 0
      %1512 = vmatpush2.bf16.msra.mxu0 0
      %1513 = vmatprep.subr.bf16.mxu0 0
      %1514 = vmatpush2.bf16.msra.mxu0 0
      %1515 = vmatprep.subr.bf16.mxu0 0
      %1516 = vmatpush2.bf16.msra.mxu0 0
      %1517 = vmatprep.subr.bf16.mxu0 0
      %1518 = vmatpush2.bf16.msra.mxu0 0
      %1519 = vmatprep.subr.bf16.mxu0 0
      %1520 = vmatpush2.bf16.msra.mxu0 0
      %1521 = vmatprep.subr.bf16.mxu0 0
      %1522 = vmatpush2.bf16.msra.mxu0 0
      %1523 = vmatprep.subr.bf16.mxu0 0
      %1524 = vmatpush2.bf16.msra.mxu0 0
      %1525 = vmatprep.mubr.bf16.mxu0 0
      %1526 = vmatmul.mubr.bf16.gmra.mxu0 %v1441
      %v1527 = vpop.f32.mrf.mxu0
      %v1528 = vadd.f32 0.0, %v1527
      %v1529 = vpop.f32.mrf.mxu0
      %v1530 = vpop.f32.mrf.mxu0
      %v1531 = vpop.f32.mrf.mxu0
      %1532 = vdwg.mxu0
      %v1533 = vadd.f32 %v1428, %v1487
      %v1534 = vadd.f32 %v1429, %v1489
      %v1535 = vadd.f32 %v1430, %v1528
      %1536 = vrot.lane.b32.xlu0 %v825, 34
      %v1537 = vpop.permute.xlu0 %1536
      %1538 = vrot.lane.b32.xlu0 %v829, 34
      %v1539 = vpop.permute.xlu0 %1538
      %1540 = vrot.lane.b32.xlu0 %v833, 34
      %v1541 = vpop.permute.xlu0 %1540
      %vm1542 = vcmask 277504
      %v1543 = vsel %vm1542, %v1537, %v1539
      %v1544 = vsel %vm1542, %v1539, %v1541
      %vm1545 = vcmp.ne.s16.totalorder %v1537, 0
      %vm1546 = vcmp.ne.s16.totalorder %v1543, 0
      %vm1547 = vcmp.ne.s16.totalorder %v1544, 0
      %v1548 = vsel %vm1545, %v477, 0
      %v1549 = vsel %vm1546, %v478, 0
      %v1550 = vsel %vm1547, %v479, 0
      %1554 = vrot.lane.b32.xlu0 %v1548, 94
      %v1555 = vpop.permute.xlu0 %1554
      %1556 = vrot.lane.b32.xlu0 %v1549, 94
      %v1557 = vpop.permute.xlu0 %1556
      %1558 = vrot.lane.b32.xlu0 %v1550, 94
      %v1559 = vpop.permute.xlu0 %1558
      %vm1560 = vcmask 769024
      %v1561 = vsel %vm1560, %v1555, %v1557
      %v1562 = vsel %vm1560, %v1557, %v1559
      %v1564 = vsel %vm621, %v488, 0
      %v1567 = vsel %vm625, %v1561, 0
      %v1570 = vsel %vm625, %v1562, 0
      %v1573 = vsel %vm625, %v1559, 0
      %1575 = vmatprep.subr.bf16.mxu0 0
      %1576 = vmatpush1.bf16.msra.mxu0 0
      %1577 = vmatprep.subr.bf16.mxu0 0
      %1578 = vmatpush1.bf16.msra.mxu0 0
      %1579 = vmatprep.subr.bf16.mxu0 0
      %1580 = vmatpush1.bf16.msra.mxu0 0
      %1581 = vmatprep.subr.bf16.mxu0 0
      %1582 = vmatpush1.bf16.msra.mxu0 0
      %1583 = vmatprep.subr.bf16.mxu0 0
      %1584 = vmatpush1.bf16.msra.mxu0 0
      %1585 = vmatprep.subr.bf16.mxu0 0
      %1586 = vmatpush1.bf16.msra.mxu0 0
      %1587 = vmatprep.subr.bf16.mxu0 0
      %1588 = vmatpush1.bf16.msra.mxu0 0
      %1589 = vmatprep.subr.bf16.mxu0 %v1570
      %1590 = vmatpush1.bf16.msra.mxu0 %v1567
      %1591 = vmatprep.subr.bf16.mxu0 0
      %1592 = vmatpush2.bf16.msra.mxu0 0
      %1593 = vmatprep.subr.bf16.mxu0 0
      %1594 = vmatpush2.bf16.msra.mxu0 0
      %1595 = vmatprep.subr.bf16.mxu0 0
      %1596 = vmatpush2.bf16.msra.mxu0 0
      %1597 = vmatprep.subr.bf16.mxu0 0
      %1598 = vmatpush2.bf16.msra.mxu0 0
      %1599 = vmatprep.subr.bf16.mxu0 0
      %1600 = vmatpush2.bf16.msra.mxu0 0
      %1601 = vmatprep.subr.bf16.mxu0 0
      %1602 = vmatpush2.bf16.msra.mxu0 0
      %1603 = vmatprep.subr.bf16.mxu0 0
      %1604 = vmatpush2.bf16.msra.mxu0 0
      %1605 = vmatprep.subr.bf16.mxu0 0
      %1606 = vmatpush2.bf16.msra.mxu0 0
      %1607 = vmatprep.mubr.bf16.mxu0 0
      %1608 = vmatmul.mubr.bf16.gmra.mxu0 %v1564
      %v1609 = vpop.f32.mrf.mxu0
      %v1610 = vadd.f32 0.0, %v1609
      %v1611 = vpop.f32.mrf.mxu0
      %v1612 = vadd.f32 0.0, %v1611
      %v1613 = vpop.f32.mrf.mxu0
      %v1614 = vpop.f32.mrf.mxu0
      %1615 = vdwg.mxu0
      %1616 = vmatprep.subr.bf16.mxu0 0
      %1617 = vmatpush1.bf16.msra.mxu0 0
      %1618 = vmatprep.subr.bf16.mxu0 0
      %1619 = vmatpush1.bf16.msra.mxu0 0
      %1620 = vmatprep.subr.bf16.mxu0 0
      %1621 = vmatpush1.bf16.msra.mxu0 0
      %1622 = vmatprep.subr.bf16.mxu0 0
      %1623 = vmatpush1.bf16.msra.mxu0 0
      %1624 = vmatprep.subr.bf16.mxu0 0
      %1625 = vmatpush1.bf16.msra.mxu0 0
      %1626 = vmatprep.subr.bf16.mxu0 0
      %1627 = vmatpush1.bf16.msra.mxu0 0
      %1628 = vmatprep.subr.bf16.mxu0 0
      %1629 = vmatpush1.bf16.msra.mxu0 0
      %1630 = vmatprep.subr.bf16.mxu0 0
      %1631 = vmatpush1.bf16.msra.mxu0 %v1573
      %1632 = vmatprep.subr.bf16.mxu0 0
      %1633 = vmatpush2.bf16.msra.mxu0 0
      %1634 = vmatprep.subr.bf16.mxu0 0
      %1635 = vmatpush2.bf16.msra.mxu0 0
      %1636 = vmatprep.subr.bf16.mxu0 0
      %1637 = vmatpush2.bf16.msra.mxu0 0
      %1638 = vmatprep.subr.bf16.mxu0 0
      %1639 = vmatpush2.bf16.msra.mxu0 0
      %1640 = vmatprep.subr.bf16.mxu0 0
      %1641 = vmatpush2.bf16.msra.mxu0 0
      %1642 = vmatprep.subr.bf16.mxu0 0
      %1643 = vmatpush2.bf16.msra.mxu0 0
      %1644 = vmatprep.subr.bf16.mxu0 0
      %1645 = vmatpush2.bf16.msra.mxu0 0
      %1646 = vmatprep.subr.bf16.mxu0 0
      %1647 = vmatpush2.bf16.msra.mxu0 0
      %1648 = vmatprep.mubr.bf16.mxu0 0
      %1649 = vmatmul.mubr.bf16.gmra.mxu0 %v1564
      %v1650 = vpop.f32.mrf.mxu0
      %v1651 = vadd.f32 0.0, %v1650
      %v1652 = vpop.f32.mrf.mxu0
      %v1653 = vpop.f32.mrf.mxu0
      %v1654 = vpop.f32.mrf.mxu0
      %1655 = vdwg.mxu0
      %v1656 = vadd.f32 %v1533, %v1610
      %v1657 = vadd.f32 %v1534, %v1612
      %v1658 = vadd.f32 %v1535, %v1651
      %v1659 = vsel %vm603, %v469, 0
      %v1660 = vsel %vm604, %v470, 0
      %v1661 = vsel %vm605, %v471, 0
      %v1663 = vsel %vm621, %v489, 0
      %v1666 = vsel %vm625, %v1659, 0
      %v1669 = vsel %vm625, %v1660, 0
      %v1672 = vsel %vm625, %v1661, 0
      %1674 = vmatprep.subr.bf16.mxu0 0
      %1675 = vmatpush1.bf16.msra.mxu0 0
      %1676 = vmatprep.subr.bf16.mxu0 0
      %1677 = vmatpush1.bf16.msra.mxu0 0
      %1678 = vmatprep.subr.bf16.mxu0 0
      %1679 = vmatpush1.bf16.msra.mxu0 0
      %1680 = vmatprep.subr.bf16.mxu0 0
      %1681 = vmatpush1.bf16.msra.mxu0 0
      %1682 = vmatprep.subr.bf16.mxu0 0
      %1683 = vmatpush1.bf16.msra.mxu0 0
      %1684 = vmatprep.subr.bf16.mxu0 0
      %1685 = vmatpush1.bf16.msra.mxu0 0
      %1686 = vmatprep.subr.bf16.mxu0 0
      %1687 = vmatpush1.bf16.msra.mxu0 0
      %1688 = vmatprep.subr.bf16.mxu0 %v1669
      %1689 = vmatpush1.bf16.msra.mxu0 %v1666
      %1690 = vmatprep.subr.bf16.mxu0 0
      %1691 = vmatpush2.bf16.msra.mxu0 0
      %1692 = vmatprep.subr.bf16.mxu0 0
      %1693 = vmatpush2.bf16.msra.mxu0 0
      %1694 = vmatprep.subr.bf16.mxu0 0
      %1695 = vmatpush2.bf16.msra.mxu0 0
      %1696 = vmatprep.subr.bf16.mxu0 0
      %1697 = vmatpush2.bf16.msra.mxu0 0
      %1698 = vmatprep.subr.bf16.mxu0 0
      %1699 = vmatpush2.bf16.msra.mxu0 0
      %1700 = vmatprep.subr.bf16.mxu0 0
      %1701 = vmatpush2.bf16.msra.mxu0 0
      %1702 = vmatprep.subr.bf16.mxu0 0
      %1703 = vmatpush2.bf16.msra.mxu0 0
      %1704 = vmatprep.subr.bf16.mxu0 0
      %1705 = vmatpush2.bf16.msra.mxu0 0
      %1706 = vmatprep.mubr.bf16.mxu0 0
      %1707 = vmatmul.mubr.bf16.gmra.mxu0 %v1663
      %v1708 = vpop.f32.mrf.mxu0
      %v1709 = vadd.f32 0.0, %v1708
      %v1710 = vpop.f32.mrf.mxu0
      %v1711 = vadd.f32 0.0, %v1710
      %v1712 = vpop.f32.mrf.mxu0
      %v1713 = vpop.f32.mrf.mxu0
      %1714 = vdwg.mxu0
      %1715 = vmatprep.subr.bf16.mxu0 0
      %1716 = vmatpush1.bf16.msra.mxu0 0
      %1717 = vmatprep.subr.bf16.mxu0 0
      %1718 = vmatpush1.bf16.msra.mxu0 0
      %1719 = vmatprep.subr.bf16.mxu0 0
      %1720 = vmatpush1.bf16.msra.mxu0 0
      %1721 = vmatprep.subr.bf16.mxu0 0
      %1722 = vmatpush1.bf16.msra.mxu0 0
      %1723 = vmatprep.subr.bf16.mxu0 0
      %1724 = vmatpush1.bf16.msra.mxu0 0
      %1725 = vmatprep.subr.bf16.mxu0 0
      %1726 = vmatpush1.bf16.msra.mxu0 0
      %1727 = vmatprep.subr.bf16.mxu0 0
      %1728 = vmatpush1.bf16.msra.mxu0 0
      %1729 = vmatprep.subr.bf16.mxu0 0
      %1730 = vmatpush1.bf16.msra.mxu0 %v1672
      %1731 = vmatprep.subr.bf16.mxu0 0
      %1732 = vmatpush2.bf16.msra.mxu0 0
      %1733 = vmatprep.subr.bf16.mxu0 0
      %1734 = vmatpush2.bf16.msra.mxu0 0
      %1735 = vmatprep.subr.bf16.mxu0 0
      %1736 = vmatpush2.bf16.msra.mxu0 0
      %1737 = vmatprep.subr.bf16.mxu0 0
      %1738 = vmatpush2.bf16.msra.mxu0 0
      %1739 = vmatprep.subr.bf16.mxu0 0
      %1740 = vmatpush2.bf16.msra.mxu0 0
      %1741 = vmatprep.subr.bf16.mxu0 0
      %1742 = vmatpush2.bf16.msra.mxu0 0
      %1743 = vmatprep.subr.bf16.mxu0 0
      %1744 = vmatpush2.bf16.msra.mxu0 0
      %1745 = vmatprep.subr.bf16.mxu0 0
      %1746 = vmatpush2.bf16.msra.mxu0 0
      %1747 = vmatprep.mubr.bf16.mxu0 0
      %1748 = vmatmul.mubr.bf16.gmra.mxu0 %v1663
      %v1749 = vpop.f32.mrf.mxu0
      %v1750 = vadd.f32 0.0, %v1749
      %v1751 = vpop.f32.mrf.mxu0
      %v1752 = vpop.f32.mrf.mxu0
      %v1753 = vpop.f32.mrf.mxu0
      %1754 = vdwg.mxu0
      %v1755 = vadd.f32 %v1656, %v1709
      %v1756 = vadd.f32 %v1657, %v1711
      %v1757 = vadd.f32 %v1658, %v1750
      %1761 = vrot.lane.b32.xlu0 %v469, 127
      %v1762 = vpop.permute.xlu0 %1761
      %1763 = vrot.lane.b32.xlu0 %v470, 127
      %v1764 = vpop.permute.xlu0 %1763
      %1765 = vrot.lane.b32.xlu0 %v471, 127
      %v1766 = vpop.permute.xlu0 %1765
      %v1767 = vsel %vm618, %v1762, %v1764
      %v1768 = vsel %vm618, %v1764, %v1766
      %v1770 = vsel %vm621, %v490, 0
      %v1773 = vsel %vm625, %v1767, 0
      %v1776 = vsel %vm625, %v1768, 0
      %v1779 = vsel %vm625, %v1766, 0
      %1781 = vmatprep.subr.bf16.mxu0 0
      %1782 = vmatpush1.bf16.msra.mxu0 0
      %1783 = vmatprep.subr.bf16.mxu0 0
      %1784 = vmatpush1.bf16.msra.mxu0 0
      %1785 = vmatprep.subr.bf16.mxu0 0
      %1786 = vmatpush1.bf16.msra.mxu0 0
      %1787 = vmatprep.subr.bf16.mxu0 0
      %1788 = vmatpush1.bf16.msra.mxu0 0
      %1789 = vmatprep.subr.bf16.mxu0 0
      %1790 = vmatpush1.bf16.msra.mxu0 0
      %1791 = vmatprep.subr.bf16.mxu0 0
      %1792 = vmatpush1.bf16.msra.mxu0 0
      %1793 = vmatprep.subr.bf16.mxu0 0
      %1794 = vmatpush1.bf16.msra.mxu0 0
      %1795 = vmatprep.subr.bf16.mxu0 %v1776
      %1796 = vmatpush1.bf16.msra.mxu0 %v1773
      %1797 = vmatprep.subr.bf16.mxu0 0
      %1798 = vmatpush2.bf16.msra.mxu0 0
      %1799 = vmatprep.subr.bf16.mxu0 0
      %1800 = vmatpush2.bf16.msra.mxu0 0
      %1801 = vmatprep.subr.bf16.mxu0 0
      %1802 = vmatpush2.bf16.msra.mxu0 0
      %1803 = vmatprep.subr.bf16.mxu0 0
      %1804 = vmatpush2.bf16.msra.mxu0 0
      %1805 = vmatprep.subr.bf16.mxu0 0
      %1806 = vmatpush2.bf16.msra.mxu0 0
      %1807 = vmatprep.subr.bf16.mxu0 0
      %1808 = vmatpush2.bf16.msra.mxu0 0
      %1809 = vmatprep.subr.bf16.mxu0 0
      %1810 = vmatpush2.bf16.msra.mxu0 0
      %1811 = vmatprep.subr.bf16.mxu0 0
      %1812 = vmatpush2.bf16.msra.mxu0 0
      %1813 = vmatprep.mubr.bf16.mxu0 0
      %1814 = vmatmul.mubr.bf16.gmra.mxu0 %v1770
      %v1815 = vpop.f32.mrf.mxu0
      %v1816 = vadd.f32 0.0, %v1815
      %v1817 = vpop.f32.mrf.mxu0
      %v1818 = vadd.f32 0.0, %v1817
      %v1819 = vpop.f32.mrf.mxu0
      %v1820 = vpop.f32.mrf.mxu0
      %1821 = vdwg.mxu0
      %1822 = vmatprep.subr.bf16.mxu0 0
      %1823 = vmatpush1.bf16.msra.mxu0 0
      %1824 = vmatprep.subr.bf16.mxu0 0
      %1825 = vmatpush1.bf16.msra.mxu0 0
      %1826 = vmatprep.subr.bf16.mxu0 0
      %1827 = vmatpush1.bf16.msra.mxu0 0
      %1828 = vmatprep.subr.bf16.mxu0 0
      %1829 = vmatpush1.bf16.msra.mxu0 0
      %1830 = vmatprep.subr.bf16.mxu0 0
      %1831 = vmatpush1.bf16.msra.mxu0 0
      %1832 = vmatprep.subr.bf16.mxu0 0
      %1833 = vmatpush1.bf16.msra.mxu0 0
      %1834 = vmatprep.subr.bf16.mxu0 0
      %1835 = vmatpush1.bf16.msra.mxu0 0
      %1836 = vmatprep.subr.bf16.mxu0 0
      %1837 = vmatpush1.bf16.msra.mxu0 %v1779
      %1838 = vmatprep.subr.bf16.mxu0 0
      %1839 = vmatpush2.bf16.msra.mxu0 0
      %1840 = vmatprep.subr.bf16.mxu0 0
      %1841 = vmatpush2.bf16.msra.mxu0 0
      %1842 = vmatprep.subr.bf16.mxu0 0
      %1843 = vmatpush2.bf16.msra.mxu0 0
      %1844 = vmatprep.subr.bf16.mxu0 0
      %1845 = vmatpush2.bf16.msra.mxu0 0
      %1846 = vmatprep.subr.bf16.mxu0 0
      %1847 = vmatpush2.bf16.msra.mxu0 0
      %1848 = vmatprep.subr.bf16.mxu0 0
      %1849 = vmatpush2.bf16.msra.mxu0 0
      %1850 = vmatprep.subr.bf16.mxu0 0
      %1851 = vmatpush2.bf16.msra.mxu0 0
      %1852 = vmatprep.subr.bf16.mxu0 0
      %1853 = vmatpush2.bf16.msra.mxu0 0
      %1854 = vmatprep.mubr.bf16.mxu0 0
      %1855 = vmatmul.mubr.bf16.gmra.mxu0 %v1770
      %v1856 = vpop.f32.mrf.mxu0
      %v1857 = vadd.f32 0.0, %v1856
      %v1858 = vpop.f32.mrf.mxu0
      %v1859 = vpop.f32.mrf.mxu0
      %v1860 = vpop.f32.mrf.mxu0
      %1861 = vdwg.mxu0
      %v1862 = vadd.f32 %v1755, %v1816
      %v1863 = vadd.f32 %v1756, %v1818
      %v1864 = vadd.f32 %v1757, %v1857
      %v1865 = vsel %vm843, %v469, 0
      %v1866 = vsel %vm844, %v470, 0
      %v1867 = vsel %vm845, %v471, 0
      %1871 = vrot.lane.b32.xlu0 %v1865, 126
      %v1872 = vpop.permute.xlu0 %1871
      %1873 = vrot.lane.b32.xlu0 %v1866, 126
      %v1874 = vpop.permute.xlu0 %1873
      %1875 = vrot.lane.b32.xlu0 %v1867, 126
      %v1876 = vpop.permute.xlu0 %1875
      %v1877 = vsel %vm858, %v1872, %v1874
      %v1878 = vsel %vm858, %v1874, %v1876
      %v1880 = vsel %vm621, %v491, 0
      %v1883 = vsel %vm625, %v1877, 0
      %v1886 = vsel %vm625, %v1878, 0
      %v1889 = vsel %vm625, %v1876, 0
      %1891 = vmatprep.subr.bf16.mxu0 0
      %1892 = vmatpush1.bf16.msra.mxu0 0
      %1893 = vmatprep.subr.bf16.mxu0 0
      %1894 = vmatpush1.bf16.msra.mxu0 0
      %1895 = vmatprep.subr.bf16.mxu0 0
      %1896 = vmatpush1.bf16.msra.mxu0 0
      %1897 = vmatprep.subr.bf16.mxu0 0
      %1898 = vmatpush1.bf16.msra.mxu0 0
      %1899 = vmatprep.subr.bf16.mxu0 0
      %1900 = vmatpush1.bf16.msra.mxu0 0
      %1901 = vmatprep.subr.bf16.mxu0 0
      %1902 = vmatpush1.bf16.msra.mxu0 0
      %1903 = vmatprep.subr.bf16.mxu0 0
      %1904 = vmatpush1.bf16.msra.mxu0 0
      %1905 = vmatprep.subr.bf16.mxu0 %v1886
      %1906 = vmatpush1.bf16.msra.mxu0 %v1883
      %1907 = vmatprep.subr.bf16.mxu0 0
      %1908 = vmatpush2.bf16.msra.mxu0 0
      %1909 = vmatprep.subr.bf16.mxu0 0
      %1910 = vmatpush2.bf16.msra.mxu0 0
      %1911 = vmatprep.subr.bf16.mxu0 0
      %1912 = vmatpush2.bf16.msra.mxu0 0
      %1913 = vmatprep.subr.bf16.mxu0 0
      %1914 = vmatpush2.bf16.msra.mxu0 0
      %1915 = vmatprep.subr.bf16.mxu0 0
      %1916 = vmatpush2.bf16.msra.mxu0 0
      %1917 = vmatprep.subr.bf16.mxu0 0
      %1918 = vmatpush2.bf16.msra.mxu0 0
      %1919 = vmatprep.subr.bf16.mxu0 0
      %1920 = vmatpush2.bf16.msra.mxu0 0
      %1921 = vmatprep.subr.bf16.mxu0 0
      %1922 = vmatpush2.bf16.msra.mxu0 0
      %1923 = vmatprep.mubr.bf16.mxu0 0
      %1924 = vmatmul.mubr.bf16.gmra.mxu0 %v1880
      %v1925 = vpop.f32.mrf.mxu0
      %v1926 = vadd.f32 0.0, %v1925
      %v1927 = vpop.f32.mrf.mxu0
      %v1928 = vadd.f32 0.0, %v1927
      %v1929 = vpop.f32.mrf.mxu0
      %v1930 = vpop.f32.mrf.mxu0
      %1931 = vdwg.mxu0
      %1932 = vmatprep.subr.bf16.mxu0 0
      %1933 = vmatpush1.bf16.msra.mxu0 0
      %1934 = vmatprep.subr.bf16.mxu0 0
      %1935 = vmatpush1.bf16.msra.mxu0 0
      %1936 = vmatprep.subr.bf16.mxu0 0
      %1937 = vmatpush1.bf16.msra.mxu0 0
      %1938 = vmatprep.subr.bf16.mxu0 0
      %1939 = vmatpush1.bf16.msra.mxu0 0
      %1940 = vmatprep.subr.bf16.mxu0 0
      %1941 = vmatpush1.bf16.msra.mxu0 0
      %1942 = vmatprep.subr.bf16.mxu0 0
      %1943 = vmatpush1.bf16.msra.mxu0 0
      %1944 = vmatprep.subr.bf16.mxu0 0
      %1945 = vmatpush1.bf16.msra.mxu0 0
      %1946 = vmatprep.subr.bf16.mxu0 0
      %1947 = vmatpush1.bf16.msra.mxu0 %v1889
      %1948 = vmatprep.subr.bf16.mxu0 0
      %1949 = vmatpush2.bf16.msra.mxu0 0
      %1950 = vmatprep.subr.bf16.mxu0 0
      %1951 = vmatpush2.bf16.msra.mxu0 0
      %1952 = vmatprep.subr.bf16.mxu0 0
      %1953 = vmatpush2.bf16.msra.mxu0 0
      %1954 = vmatprep.subr.bf16.mxu0 0
      %1955 = vmatpush2.bf16.msra.mxu0 0
      %1956 = vmatprep.subr.bf16.mxu0 0
      %1957 = vmatpush2.bf16.msra.mxu0 0
      %1958 = vmatprep.subr.bf16.mxu0 0
      %1959 = vmatpush2.bf16.msra.mxu0 0
      %1960 = vmatprep.subr.bf16.mxu0 0
      %1961 = vmatpush2.bf16.msra.mxu0 0
      %1962 = vmatprep.subr.bf16.mxu0 0
      %1963 = vmatpush2.bf16.msra.mxu0 0
      %1964 = vmatprep.mubr.bf16.mxu0 0
      %1965 = vmatmul.mubr.bf16.gmra.mxu0 %v1880
      %v1966 = vpop.f32.mrf.mxu0
      %v1967 = vadd.f32 0.0, %v1966
      %v1968 = vpop.f32.mrf.mxu0
      %v1969 = vpop.f32.mrf.mxu0
      %v1970 = vpop.f32.mrf.mxu0
      %1971 = vdwg.mxu0
      %v1972 = vadd.f32 %v1862, %v1926
      %v1973 = vadd.f32 %v1863, %v1928
      %v1974 = vadd.f32 %v1864, %v1967
      %v1975 = vsel %vm966, %v469, 0
      %v1976 = vsel %vm967, %v470, 0
      %v1977 = vsel %vm968, %v471, 0
      %1981 = vrot.lane.b32.xlu0 %v1975, 112
      %v1982 = vpop.permute.xlu0 %1981
      %1983 = vrot.lane.b32.xlu0 %v1976, 112
      %v1984 = vpop.permute.xlu0 %1983
      %1985 = vrot.lane.b32.xlu0 %v1977, 112
      %v1986 = vpop.permute.xlu0 %1985
      %v1987 = vsel %vm981, %v1982, %v1984
      %v1988 = vsel %vm981, %v1984, %v1986
      %v1990 = vsel %vm621, %v492, 0
      %v1993 = vsel %vm625, %v1987, 0
      %v1996 = vsel %vm625, %v1988, 0
      %v1999 = vsel %vm625, %v1986, 0
      %2001 = vmatprep.subr.bf16.mxu0 0
      %2002 = vmatpush1.bf16.msra.mxu0 0
      %2003 = vmatprep.subr.bf16.mxu0 0
      %2004 = vmatpush1.bf16.msra.mxu0 0
      %2005 = vmatprep.subr.bf16.mxu0 0
      %2006 = vmatpush1.bf16.msra.mxu0 0
      %2007 = vmatprep.subr.bf16.mxu0 0
      %2008 = vmatpush1.bf16.msra.mxu0 0
      %2009 = vmatprep.subr.bf16.mxu0 0
      %2010 = vmatpush1.bf16.msra.mxu0 0
      %2011 = vmatprep.subr.bf16.mxu0 0
      %2012 = vmatpush1.bf16.msra.mxu0 0
      %2013 = vmatprep.subr.bf16.mxu0 0
      %2014 = vmatpush1.bf16.msra.mxu0 0
      %2015 = vmatprep.subr.bf16.mxu0 %v1996
      %2016 = vmatpush1.bf16.msra.mxu0 %v1993
      %2017 = vmatprep.subr.bf16.mxu0 0
      %2018 = vmatpush2.bf16.msra.mxu0 0
      %2019 = vmatprep.subr.bf16.mxu0 0
      %2020 = vmatpush2.bf16.msra.mxu0 0
      %2021 = vmatprep.subr.bf16.mxu0 0
      %2022 = vmatpush2.bf16.msra.mxu0 0
      %2023 = vmatprep.subr.bf16.mxu0 0
      %2024 = vmatpush2.bf16.msra.mxu0 0
      %2025 = vmatprep.subr.bf16.mxu0 0
      %2026 = vmatpush2.bf16.msra.mxu0 0
      %2027 = vmatprep.subr.bf16.mxu0 0
      %2028 = vmatpush2.bf16.msra.mxu0 0
      %2029 = vmatprep.subr.bf16.mxu0 0
      %2030 = vmatpush2.bf16.msra.mxu0 0
      %2031 = vmatprep.subr.bf16.mxu0 0
      %2032 = vmatpush2.bf16.msra.mxu0 0
      %2033 = vmatprep.mubr.bf16.mxu0 0
      %2034 = vmatmul.mubr.bf16.gmra.mxu0 %v1990
      %v2035 = vpop.f32.mrf.mxu0
      %v2036 = vadd.f32 0.0, %v2035
      %v2037 = vpop.f32.mrf.mxu0
      %v2038 = vadd.f32 0.0, %v2037
      %v2039 = vpop.f32.mrf.mxu0
      %v2040 = vpop.f32.mrf.mxu0
      %2041 = vdwg.mxu0
      %2042 = vmatprep.subr.bf16.mxu0 0
      %2043 = vmatpush1.bf16.msra.mxu0 0
      %2044 = vmatprep.subr.bf16.mxu0 0
      %2045 = vmatpush1.bf16.msra.mxu0 0
      %2046 = vmatprep.subr.bf16.mxu0 0
      %2047 = vmatpush1.bf16.msra.mxu0 0
      %2048 = vmatprep.subr.bf16.mxu0 0
      %2049 = vmatpush1.bf16.msra.mxu0 0
      %2050 = vmatprep.subr.bf16.mxu0 0
      %2051 = vmatpush1.bf16.msra.mxu0 0
      %2052 = vmatprep.subr.bf16.mxu0 0
      %2053 = vmatpush1.bf16.msra.mxu0 0
      %2054 = vmatprep.subr.bf16.mxu0 0
      %2055 = vmatpush1.bf16.msra.mxu0 0
      %2056 = vmatprep.subr.bf16.mxu0 0
      %2057 = vmatpush1.bf16.msra.mxu0 %v1999
      %2058 = vmatprep.subr.bf16.mxu0 0
      %2059 = vmatpush2.bf16.msra.mxu0 0
      %2060 = vmatprep.subr.bf16.mxu0 0
      %2061 = vmatpush2.bf16.msra.mxu0 0
      %2062 = vmatprep.subr.bf16.mxu0 0
      %2063 = vmatpush2.bf16.msra.mxu0 0
      %2064 = vmatprep.subr.bf16.mxu0 0
      %2065 = vmatpush2.bf16.msra.mxu0 0
      %2066 = vmatprep.subr.bf16.mxu0 0
      %2067 = vmatpush2.bf16.msra.mxu0 0
      %2068 = vmatprep.subr.bf16.mxu0 0
      %2069 = vmatpush2.bf16.msra.mxu0 0
      %2070 = vmatprep.subr.bf16.mxu0 0
      %2071 = vmatpush2.bf16.msra.mxu0 0
      %2072 = vmatprep.subr.bf16.mxu0 0
      %2073 = vmatpush2.bf16.msra.mxu0 0
      %2074 = vmatprep.mubr.bf16.mxu0 0
      %2075 = vmatmul.mubr.bf16.gmra.mxu0 %v1990
      %v2076 = vpop.f32.mrf.mxu0
      %v2077 = vadd.f32 0.0, %v2076
      %v2078 = vpop.f32.mrf.mxu0
      %v2079 = vpop.f32.mrf.mxu0
      %v2080 = vpop.f32.mrf.mxu0
      %2081 = vdwg.mxu0
      %v2082 = vadd.f32 %v1972, %v2036
      %v2083 = vadd.f32 %v1973, %v2038
      %v2084 = vadd.f32 %v1974, %v2077
      %2085 = vrot.lane.b32.xlu0 %v469, 111
      %v2086 = vpop.permute.xlu0 %2085
      %2087 = vrot.lane.b32.xlu0 %v470, 111
      %v2088 = vpop.permute.xlu0 %2087
      %2089 = vrot.lane.b32.xlu0 %v471, 111
      %v2090 = vpop.permute.xlu0 %2089
      %v2091 = vsel %vm1086, %v2086, %v2088
      %v2092 = vsel %vm1086, %v2088, %v2090
      %v2094 = vsel %vm621, %v493, 0
      %v2097 = vsel %vm625, %v2091, 0
      %v2100 = vsel %vm625, %v2092, 0
      %v2103 = vsel %vm625, %v2090, 0
      %2105 = vmatprep.subr.bf16.mxu0 0
      %2106 = vmatpush1.bf16.msra.mxu0 0
      %2107 = vmatprep.subr.bf16.mxu0 0
      %2108 = vmatpush1.bf16.msra.mxu0 0
      %2109 = vmatprep.subr.bf16.mxu0 0
      %2110 = vmatpush1.bf16.msra.mxu0 0
      %2111 = vmatprep.subr.bf16.mxu0 0
      %2112 = vmatpush1.bf16.msra.mxu0 0
      %2113 = vmatprep.subr.bf16.mxu0 0
      %2114 = vmatpush1.bf16.msra.mxu0 0
      %2115 = vmatprep.subr.bf16.mxu0 0
      %2116 = vmatpush1.bf16.msra.mxu0 0
      %2117 = vmatprep.subr.bf16.mxu0 0
      %2118 = vmatpush1.bf16.msra.mxu0 0
      %2119 = vmatprep.subr.bf16.mxu0 %v2100
      %2120 = vmatpush1.bf16.msra.mxu0 %v2097
      %2121 = vmatprep.subr.bf16.mxu0 0
      %2122 = vmatpush2.bf16.msra.mxu0 0
      %2123 = vmatprep.subr.bf16.mxu0 0
      %2124 = vmatpush2.bf16.msra.mxu0 0
      %2125 = vmatprep.subr.bf16.mxu0 0
      %2126 = vmatpush2.bf16.msra.mxu0 0
      %2127 = vmatprep.subr.bf16.mxu0 0
      %2128 = vmatpush2.bf16.msra.mxu0 0
      %2129 = vmatprep.subr.bf16.mxu0 0
      %2130 = vmatpush2.bf16.msra.mxu0 0
      %2131 = vmatprep.subr.bf16.mxu0 0
      %2132 = vmatpush2.bf16.msra.mxu0 0
      %2133 = vmatprep.subr.bf16.mxu0 0
      %2134 = vmatpush2.bf16.msra.mxu0 0
      %2135 = vmatprep.subr.bf16.mxu0 0
      %2136 = vmatpush2.bf16.msra.mxu0 0
      %2137 = vmatprep.mubr.bf16.mxu0 0
      %2138 = vmatmul.mubr.bf16.gmra.mxu0 %v2094
      %v2139 = vpop.f32.mrf.mxu0
      %v2140 = vadd.f32 0.0, %v2139
      %v2141 = vpop.f32.mrf.mxu0
      %v2142 = vadd.f32 0.0, %v2141
      %v2143 = vpop.f32.mrf.mxu0
      %v2144 = vpop.f32.mrf.mxu0
      %2145 = vdwg.mxu0
      %2146 = vmatprep.subr.bf16.mxu0 0
      %2147 = vmatpush1.bf16.msra.mxu0 0
      %2148 = vmatprep.subr.bf16.mxu0 0
      %2149 = vmatpush1.bf16.msra.mxu0 0
      %2150 = vmatprep.subr.bf16.mxu0 0
      %2151 = vmatpush1.bf16.msra.mxu0 0
      %2152 = vmatprep.subr.bf16.mxu0 0
      %2153 = vmatpush1.bf16.msra.mxu0 0
      %2154 = vmatprep.subr.bf16.mxu0 0
      %2155 = vmatpush1.bf16.msra.mxu0 0
      %2156 = vmatprep.subr.bf16.mxu0 0
      %2157 = vmatpush1.bf16.msra.mxu0 0
      %2158 = vmatprep.subr.bf16.mxu0 0
      %2159 = vmatpush1.bf16.msra.mxu0 0
      %2160 = vmatprep.subr.bf16.mxu0 0
      %2161 = vmatpush1.bf16.msra.mxu0 %v2103
      %2162 = vmatprep.subr.bf16.mxu0 0
      %2163 = vmatpush2.bf16.msra.mxu0 0
      %2164 = vmatprep.subr.bf16.mxu0 0
      %2165 = vmatpush2.bf16.msra.mxu0 0
      %2166 = vmatprep.subr.bf16.mxu0 0
      %2167 = vmatpush2.bf16.msra.mxu0 0
      %2168 = vmatprep.subr.bf16.mxu0 0
      %2169 = vmatpush2.bf16.msra.mxu0 0
      %2170 = vmatprep.subr.bf16.mxu0 0
      %2171 = vmatpush2.bf16.msra.mxu0 0
      %2172 = vmatprep.subr.bf16.mxu0 0
      %2173 = vmatpush2.bf16.msra.mxu0 0
      %2174 = vmatprep.subr.bf16.mxu0 0
      %2175 = vmatpush2.bf16.msra.mxu0 0
      %2176 = vmatprep.subr.bf16.mxu0 0
      %2177 = vmatpush2.bf16.msra.mxu0 0
      %2178 = vmatprep.mubr.bf16.mxu0 0
      %2179 = vmatmul.mubr.bf16.gmra.mxu0 %v2094
      %v2180 = vpop.f32.mrf.mxu0
      %v2181 = vadd.f32 0.0, %v2180
      %v2182 = vpop.f32.mrf.mxu0
      %v2183 = vpop.f32.mrf.mxu0
      %v2184 = vpop.f32.mrf.mxu0
      %2185 = vdwg.mxu0
      %v2186 = vadd.f32 %v2082, %v2140
      %v2187 = vadd.f32 %v2083, %v2142
      %v2188 = vadd.f32 %v2084, %v2181
      %v2189 = vsel %vm1194, %v469, 0
      %v2190 = vsel %vm1195, %v470, 0
      %v2191 = vsel %vm1196, %v471, 0
      %2195 = vrot.lane.b32.xlu0 %v2189, 110
      %v2196 = vpop.permute.xlu0 %2195
      %2197 = vrot.lane.b32.xlu0 %v2190, 110
      %v2198 = vpop.permute.xlu0 %2197
      %2199 = vrot.lane.b32.xlu0 %v2191, 110
      %v2200 = vpop.permute.xlu0 %2199
      %v2201 = vsel %vm1209, %v2196, %v2198
      %v2202 = vsel %vm1209, %v2198, %v2200
      %v2204 = vsel %vm621, %v494, 0
      %v2207 = vsel %vm625, %v2201, 0
      %v2210 = vsel %vm625, %v2202, 0
      %v2213 = vsel %vm625, %v2200, 0
      %2215 = vmatprep.subr.bf16.mxu0 0
      %2216 = vmatpush1.bf16.msra.mxu0 0
      %2217 = vmatprep.subr.bf16.mxu0 0
      %2218 = vmatpush1.bf16.msra.mxu0 0
      %2219 = vmatprep.subr.bf16.mxu0 0
      %2220 = vmatpush1.bf16.msra.mxu0 0
      %2221 = vmatprep.subr.bf16.mxu0 0
      %2222 = vmatpush1.bf16.msra.mxu0 0
      %2223 = vmatprep.subr.bf16.mxu0 0
      %2224 = vmatpush1.bf16.msra.mxu0 0
      %2225 = vmatprep.subr.bf16.mxu0 0
      %2226 = vmatpush1.bf16.msra.mxu0 0
      %2227 = vmatprep.subr.bf16.mxu0 0
      %2228 = vmatpush1.bf16.msra.mxu0 0
      %2229 = vmatprep.subr.bf16.mxu0 %v2210
      %2230 = vmatpush1.bf16.msra.mxu0 %v2207
      %2231 = vmatprep.subr.bf16.mxu0 0
      %2232 = vmatpush2.bf16.msra.mxu0 0
      %2233 = vmatprep.subr.bf16.mxu0 0
      %2234 = vmatpush2.bf16.msra.mxu0 0
      %2235 = vmatprep.subr.bf16.mxu0 0
      %2236 = vmatpush2.bf16.msra.mxu0 0
      %2237 = vmatprep.subr.bf16.mxu0 0
      %2238 = vmatpush2.bf16.msra.mxu0 0
      %2239 = vmatprep.subr.bf16.mxu0 0
      %2240 = vmatpush2.bf16.msra.mxu0 0
      %2241 = vmatprep.subr.bf16.mxu0 0
      %2242 = vmatpush2.bf16.msra.mxu0 0
      %2243 = vmatprep.subr.bf16.mxu0 0
      %2244 = vmatpush2.bf16.msra.mxu0 0
      %2245 = vmatprep.subr.bf16.mxu0 0
      %2246 = vmatpush2.bf16.msra.mxu0 0
      %2247 = vmatprep.mubr.bf16.mxu0 0
      %2248 = vmatmul.mubr.bf16.gmra.mxu0 %v2204
      %v2249 = vpop.f32.mrf.mxu0
      %v2250 = vadd.f32 0.0, %v2249
      %v2251 = vpop.f32.mrf.mxu0
      %v2252 = vadd.f32 0.0, %v2251
      %v2253 = vpop.f32.mrf.mxu0
      %v2254 = vpop.f32.mrf.mxu0
      %2255 = vdwg.mxu0
      %2256 = vmatprep.subr.bf16.mxu0 0
      %2257 = vmatpush1.bf16.msra.mxu0 0
      %2258 = vmatprep.subr.bf16.mxu0 0
      %2259 = vmatpush1.bf16.msra.mxu0 0
      %2260 = vmatprep.subr.bf16.mxu0 0
      %2261 = vmatpush1.bf16.msra.mxu0 0
      %2262 = vmatprep.subr.bf16.mxu0 0
      %2263 = vmatpush1.bf16.msra.mxu0 0
      %2264 = vmatprep.subr.bf16.mxu0 0
      %2265 = vmatpush1.bf16.msra.mxu0 0
      %2266 = vmatprep.subr.bf16.mxu0 0
      %2267 = vmatpush1.bf16.msra.mxu0 0
      %2268 = vmatprep.subr.bf16.mxu0 0
      %2269 = vmatpush1.bf16.msra.mxu0 0
      %2270 = vmatprep.subr.bf16.mxu0 0
      %2271 = vmatpush1.bf16.msra.mxu0 %v2213
      %2272 = vmatprep.subr.bf16.mxu0 0
      %2273 = vmatpush2.bf16.msra.mxu0 0
      %2274 = vmatprep.subr.bf16.mxu0 0
      %2275 = vmatpush2.bf16.msra.mxu0 0
      %2276 = vmatprep.subr.bf16.mxu0 0
      %2277 = vmatpush2.bf16.msra.mxu0 0
      %2278 = vmatprep.subr.bf16.mxu0 0
      %2279 = vmatpush2.bf16.msra.mxu0 0
      %2280 = vmatprep.subr.bf16.mxu0 0
      %2281 = vmatpush2.bf16.msra.mxu0 0
      %2282 = vmatprep.subr.bf16.mxu0 0
      %2283 = vmatpush2.bf16.msra.mxu0 0
      %2284 = vmatprep.subr.bf16.mxu0 0
      %2285 = vmatpush2.bf16.msra.mxu0 0
      %2286 = vmatprep.subr.bf16.mxu0 0
      %2287 = vmatpush2.bf16.msra.mxu0 0
      %2288 = vmatprep.mubr.bf16.mxu0 0
      %2289 = vmatmul.mubr.bf16.gmra.mxu0 %v2204
      %v2290 = vpop.f32.mrf.mxu0
      %v2291 = vadd.f32 0.0, %v2290
      %v2292 = vpop.f32.mrf.mxu0
      %v2293 = vpop.f32.mrf.mxu0
      %v2294 = vpop.f32.mrf.mxu0
      %2295 = vdwg.mxu0
      %v2296 = vadd.f32 %v2186, %v2250
      %v2297 = vadd.f32 %v2187, %v2252
      %v2298 = vadd.f32 %v2188, %v2291
      %v2299 = vsel %vm1317, %v469, 0
      %v2300 = vsel %vm1318, %v470, 0
      %v2301 = vsel %vm1319, %v471, 0
      %2305 = vrot.lane.b32.xlu0 %v2299, 96
      %v2306 = vpop.permute.xlu0 %2305
      %2307 = vrot.lane.b32.xlu0 %v2300, 96
      %v2308 = vpop.permute.xlu0 %2307
      %2309 = vrot.lane.b32.xlu0 %v2301, 96
      %v2310 = vpop.permute.xlu0 %2309
      %v2311 = vsel %vm1332, %v2306, %v2308
      %v2312 = vsel %vm1332, %v2308, %v2310
      %v2314 = vsel %vm621, %v495, 0
      %v2317 = vsel %vm625, %v2311, 0
      %v2320 = vsel %vm625, %v2312, 0
      %v2323 = vsel %vm625, %v2310, 0
      %2325 = vmatprep.subr.bf16.mxu0 0
      %2326 = vmatpush1.bf16.msra.mxu0 0
      %2327 = vmatprep.subr.bf16.mxu0 0
      %2328 = vmatpush1.bf16.msra.mxu0 0
      %2329 = vmatprep.subr.bf16.mxu0 0
      %2330 = vmatpush1.bf16.msra.mxu0 0
      %2331 = vmatprep.subr.bf16.mxu0 0
      %2332 = vmatpush1.bf16.msra.mxu0 0
      %2333 = vmatprep.subr.bf16.mxu0 0
      %2334 = vmatpush1.bf16.msra.mxu0 0
      %2335 = vmatprep.subr.bf16.mxu0 0
      %2336 = vmatpush1.bf16.msra.mxu0 0
      %2337 = vmatprep.subr.bf16.mxu0 0
      %2338 = vmatpush1.bf16.msra.mxu0 0
      %2339 = vmatprep.subr.bf16.mxu0 %v2320
      %2340 = vmatpush1.bf16.msra.mxu0 %v2317
      %2341 = vmatprep.subr.bf16.mxu0 0
      %2342 = vmatpush2.bf16.msra.mxu0 0
      %2343 = vmatprep.subr.bf16.mxu0 0
      %2344 = vmatpush2.bf16.msra.mxu0 0
      %2345 = vmatprep.subr.bf16.mxu0 0
      %2346 = vmatpush2.bf16.msra.mxu0 0
      %2347 = vmatprep.subr.bf16.mxu0 0
      %2348 = vmatpush2.bf16.msra.mxu0 0
      %2349 = vmatprep.subr.bf16.mxu0 0
      %2350 = vmatpush2.bf16.msra.mxu0 0
      %2351 = vmatprep.subr.bf16.mxu0 0
      %2352 = vmatpush2.bf16.msra.mxu0 0
      %2353 = vmatprep.subr.bf16.mxu0 0
      %2354 = vmatpush2.bf16.msra.mxu0 0
      %2355 = vmatprep.subr.bf16.mxu0 0
      %2356 = vmatpush2.bf16.msra.mxu0 0
      %2357 = vmatprep.mubr.bf16.mxu0 0
      %2358 = vmatmul.mubr.bf16.gmra.mxu0 %v2314
      %v2359 = vpop.f32.mrf.mxu0
      %v2360 = vadd.f32 0.0, %v2359
      %v2361 = vpop.f32.mrf.mxu0
      %v2362 = vadd.f32 0.0, %v2361
      %v2363 = vpop.f32.mrf.mxu0
      %v2364 = vpop.f32.mrf.mxu0
      %2365 = vdwg.mxu0
      %2366 = vmatprep.subr.bf16.mxu0 0
      %2367 = vmatpush1.bf16.msra.mxu0 0
      %2368 = vmatprep.subr.bf16.mxu0 0
      %2369 = vmatpush1.bf16.msra.mxu0 0
      %2370 = vmatprep.subr.bf16.mxu0 0
      %2371 = vmatpush1.bf16.msra.mxu0 0
      %2372 = vmatprep.subr.bf16.mxu0 0
      %2373 = vmatpush1.bf16.msra.mxu0 0
      %2374 = vmatprep.subr.bf16.mxu0 0
      %2375 = vmatpush1.bf16.msra.mxu0 0
      %2376 = vmatprep.subr.bf16.mxu0 0
      %2377 = vmatpush1.bf16.msra.mxu0 0
      %2378 = vmatprep.subr.bf16.mxu0 0
      %2379 = vmatpush1.bf16.msra.mxu0 0
      %2380 = vmatprep.subr.bf16.mxu0 0
      %2381 = vmatpush1.bf16.msra.mxu0 %v2323
      %2382 = vmatprep.subr.bf16.mxu0 0
      %2383 = vmatpush2.bf16.msra.mxu0 0
      %2384 = vmatprep.subr.bf16.mxu0 0
      %2385 = vmatpush2.bf16.msra.mxu0 0
      %2386 = vmatprep.subr.bf16.mxu0 0
      %2387 = vmatpush2.bf16.msra.mxu0 0
      %2388 = vmatprep.subr.bf16.mxu0 0
      %2389 = vmatpush2.bf16.msra.mxu0 0
      %2390 = vmatprep.subr.bf16.mxu0 0
      %2391 = vmatpush2.bf16.msra.mxu0 0
      %2392 = vmatprep.subr.bf16.mxu0 0
      %2393 = vmatpush2.bf16.msra.mxu0 0
      %2394 = vmatprep.subr.bf16.mxu0 0
      %2395 = vmatpush2.bf16.msra.mxu0 0
      %2396 = vmatprep.subr.bf16.mxu0 0
      %2397 = vmatpush2.bf16.msra.mxu0 0
      %2398 = vmatprep.mubr.bf16.mxu0 0
      %2399 = vmatmul.mubr.bf16.gmra.mxu0 %v2314
      %v2400 = vpop.f32.mrf.mxu0
      %v2401 = vadd.f32 0.0, %v2400
      %v2402 = vpop.f32.mrf.mxu0
      %v2403 = vpop.f32.mrf.mxu0
      %v2404 = vpop.f32.mrf.mxu0
      %2405 = vdwg.mxu0
      %v2406 = vadd.f32 %v2296, %v2360
      %v2407 = vadd.f32 %v2297, %v2362
      %v2408 = vadd.f32 %v2298, %v2401
      %2409 = vrot.lane.b32.xlu0 %v469, 95
      %v2410 = vpop.permute.xlu0 %2409
      %2411 = vrot.lane.b32.xlu0 %v470, 95
      %v2412 = vpop.permute.xlu0 %2411
      %2413 = vrot.lane.b32.xlu0 %v471, 95
      %v2414 = vpop.permute.xlu0 %2413
      %v2415 = vsel %vm1437, %v2410, %v2412
      %v2416 = vsel %vm1437, %v2412, %v2414
      %v2418 = vsel %vm621, %v496, 0
      %v2421 = vsel %vm625, %v2415, 0
      %v2424 = vsel %vm625, %v2416, 0
      %v2427 = vsel %vm625, %v2414, 0
      %2429 = vmatprep.subr.bf16.mxu0 0
      %2430 = vmatpush1.bf16.msra.mxu0 0
      %2431 = vmatprep.subr.bf16.mxu0 0
      %2432 = vmatpush1.bf16.msra.mxu0 0
      %2433 = vmatprep.subr.bf16.mxu0 0
      %2434 = vmatpush1.bf16.msra.mxu0 0
      %2435 = vmatprep.subr.bf16.mxu0 0
      %2436 = vmatpush1.bf16.msra.mxu0 0
      %2437 = vmatprep.subr.bf16.mxu0 0
      %2438 = vmatpush1.bf16.msra.mxu0 0
      %2439 = vmatprep.subr.bf16.mxu0 0
      %2440 = vmatpush1.bf16.msra.mxu0 0
      %2441 = vmatprep.subr.bf16.mxu0 0
      %2442 = vmatpush1.bf16.msra.mxu0 0
      %2443 = vmatprep.subr.bf16.mxu0 %v2424
      %2444 = vmatpush1.bf16.msra.mxu0 %v2421
      %2445 = vmatprep.subr.bf16.mxu0 0
      %2446 = vmatpush2.bf16.msra.mxu0 0
      %2447 = vmatprep.subr.bf16.mxu0 0
      %2448 = vmatpush2.bf16.msra.mxu0 0
      %2449 = vmatprep.subr.bf16.mxu0 0
      %2450 = vmatpush2.bf16.msra.mxu0 0
      %2451 = vmatprep.subr.bf16.mxu0 0
      %2452 = vmatpush2.bf16.msra.mxu0 0
      %2453 = vmatprep.subr.bf16.mxu0 0
      %2454 = vmatpush2.bf16.msra.mxu0 0
      %2455 = vmatprep.subr.bf16.mxu0 0
      %2456 = vmatpush2.bf16.msra.mxu0 0
      %2457 = vmatprep.subr.bf16.mxu0 0
      %2458 = vmatpush2.bf16.msra.mxu0 0
      %2459 = vmatprep.subr.bf16.mxu0 0
      %2460 = vmatpush2.bf16.msra.mxu0 0
      %2461 = vmatprep.mubr.bf16.mxu0 0
      %2462 = vmatmul.mubr.bf16.gmra.mxu0 %v2418
      %v2463 = vpop.f32.mrf.mxu0
      %v2464 = vadd.f32 0.0, %v2463
      %v2465 = vpop.f32.mrf.mxu0
      %v2466 = vadd.f32 0.0, %v2465
      %v2467 = vpop.f32.mrf.mxu0
      %v2468 = vpop.f32.mrf.mxu0
      %2469 = vdwg.mxu0
      %2470 = vmatprep.subr.bf16.mxu0 0
      %2471 = vmatpush1.bf16.msra.mxu0 0
      %2472 = vmatprep.subr.bf16.mxu0 0
      %2473 = vmatpush1.bf16.msra.mxu0 0
      %2474 = vmatprep.subr.bf16.mxu0 0
      %2475 = vmatpush1.bf16.msra.mxu0 0
      %2476 = vmatprep.subr.bf16.mxu0 0
      %2477 = vmatpush1.bf16.msra.mxu0 0
      %2478 = vmatprep.subr.bf16.mxu0 0
      %2479 = vmatpush1.bf16.msra.mxu0 0
      %2480 = vmatprep.subr.bf16.mxu0 0
      %2481 = vmatpush1.bf16.msra.mxu0 0
      %2482 = vmatprep.subr.bf16.mxu0 0
      %2483 = vmatpush1.bf16.msra.mxu0 0
      %2484 = vmatprep.subr.bf16.mxu0 0
      %2485 = vmatpush1.bf16.msra.mxu0 %v2427
      %2486 = vmatprep.subr.bf16.mxu0 0
      %2487 = vmatpush2.bf16.msra.mxu0 0
      %2488 = vmatprep.subr.bf16.mxu0 0
      %2489 = vmatpush2.bf16.msra.mxu0 0
      %2490 = vmatprep.subr.bf16.mxu0 0
      %2491 = vmatpush2.bf16.msra.mxu0 0
      %2492 = vmatprep.subr.bf16.mxu0 0
      %2493 = vmatpush2.bf16.msra.mxu0 0
      %2494 = vmatprep.subr.bf16.mxu0 0
      %2495 = vmatpush2.bf16.msra.mxu0 0
      %2496 = vmatprep.subr.bf16.mxu0 0
      %2497 = vmatpush2.bf16.msra.mxu0 0
      %2498 = vmatprep.subr.bf16.mxu0 0
      %2499 = vmatpush2.bf16.msra.mxu0 0
      %2500 = vmatprep.subr.bf16.mxu0 0
      %2501 = vmatpush2.bf16.msra.mxu0 0
      %2502 = vmatprep.mubr.bf16.mxu0 0
      %2503 = vmatmul.mubr.bf16.gmra.mxu0 %v2418
      %v2504 = vpop.f32.mrf.mxu0
      %v2505 = vadd.f32 0.0, %v2504
      %v2506 = vpop.f32.mrf.mxu0
      %v2507 = vpop.f32.mrf.mxu0
      %v2508 = vpop.f32.mrf.mxu0
      %2509 = vdwg.mxu0
      %v2510 = vadd.f32 %v2406, %v2464
      %v2511 = vadd.f32 %v2407, %v2466
      %v2512 = vadd.f32 %v2408, %v2505
      %v2513 = vsel %vm1545, %v469, 0
      %v2514 = vsel %vm1546, %v470, 0
      %v2515 = vsel %vm1547, %v471, 0
      %2519 = vrot.lane.b32.xlu0 %v2513, 94
      %v2520 = vpop.permute.xlu0 %2519
      %2521 = vrot.lane.b32.xlu0 %v2514, 94
      %v2522 = vpop.permute.xlu0 %2521
      %2523 = vrot.lane.b32.xlu0 %v2515, 94
      %v2524 = vpop.permute.xlu0 %2523
      %v2525 = vsel %vm1560, %v2520, %v2522
      %v2526 = vsel %vm1560, %v2522, %v2524
      %v2528 = vsel %vm621, %v497, 0
      %v2531 = vsel %vm625, %v2525, 0
      %v2534 = vsel %vm625, %v2526, 0
      %v2537 = vsel %vm625, %v2524, 0
      %2539 = vmatprep.subr.bf16.mxu0 0
      %2540 = vmatpush1.bf16.msra.mxu0 0
      %2541 = vmatprep.subr.bf16.mxu0 0
      %2542 = vmatpush1.bf16.msra.mxu0 0
      %2543 = vmatprep.subr.bf16.mxu0 0
      %2544 = vmatpush1.bf16.msra.mxu0 0
      %2545 = vmatprep.subr.bf16.mxu0 0
      %2546 = vmatpush1.bf16.msra.mxu0 0
      %2547 = vmatprep.subr.bf16.mxu0 0
      %2548 = vmatpush1.bf16.msra.mxu0 0
      %2549 = vmatprep.subr.bf16.mxu0 0
      %2550 = vmatpush1.bf16.msra.mxu0 0
      %2551 = vmatprep.subr.bf16.mxu0 0
      %2552 = vmatpush1.bf16.msra.mxu0 0
      %2553 = vmatprep.subr.bf16.mxu0 %v2534
      %2554 = vmatpush1.bf16.msra.mxu0 %v2531
      %2555 = vmatprep.subr.bf16.mxu0 0
      %2556 = vmatpush2.bf16.msra.mxu0 0
      %2557 = vmatprep.subr.bf16.mxu0 0
      %2558 = vmatpush2.bf16.msra.mxu0 0
      %2559 = vmatprep.subr.bf16.mxu0 0
      %2560 = vmatpush2.bf16.msra.mxu0 0
      %2561 = vmatprep.subr.bf16.mxu0 0
      %2562 = vmatpush2.bf16.msra.mxu0 0
      %2563 = vmatprep.subr.bf16.mxu0 0
      %2564 = vmatpush2.bf16.msra.mxu0 0
      %2565 = vmatprep.subr.bf16.mxu0 0
      %2566 = vmatpush2.bf16.msra.mxu0 0
      %2567 = vmatprep.subr.bf16.mxu0 0
      %2568 = vmatpush2.bf16.msra.mxu0 0
      %2569 = vmatprep.subr.bf16.mxu0 0
      %2570 = vmatpush2.bf16.msra.mxu0 0
      %2571 = vmatprep.mubr.bf16.mxu0 0
      %2572 = vmatmul.mubr.bf16.gmra.mxu0 %v2528
      %v2573 = vpop.f32.mrf.mxu0
      %v2574 = vadd.f32 0.0, %v2573
      %v2575 = vpop.f32.mrf.mxu0
      %v2576 = vadd.f32 0.0, %v2575
      %v2577 = vpop.f32.mrf.mxu0
      %v2578 = vpop.f32.mrf.mxu0
      %2579 = vdwg.mxu0
      %2580 = vmatprep.subr.bf16.mxu0 0
      %2581 = vmatpush1.bf16.msra.mxu0 0
      %2582 = vmatprep.subr.bf16.mxu0 0
      %2583 = vmatpush1.bf16.msra.mxu0 0
      %2584 = vmatprep.subr.bf16.mxu0 0
      %2585 = vmatpush1.bf16.msra.mxu0 0
      %2586 = vmatprep.subr.bf16.mxu0 0
      %2587 = vmatpush1.bf16.msra.mxu0 0
      %2588 = vmatprep.subr.bf16.mxu0 0
      %2589 = vmatpush1.bf16.msra.mxu0 0
      %2590 = vmatprep.subr.bf16.mxu0 0
      %2591 = vmatpush1.bf16.msra.mxu0 0
      %2592 = vmatprep.subr.bf16.mxu0 0
      %2593 = vmatpush1.bf16.msra.mxu0 0
      %2594 = vmatprep.subr.bf16.mxu0 0
      %2595 = vmatpush1.bf16.msra.mxu0 %v2537
      %2596 = vmatprep.subr.bf16.mxu0 0
      %2597 = vmatpush2.bf16.msra.mxu0 0
      %2598 = vmatprep.subr.bf16.mxu0 0
      %2599 = vmatpush2.bf16.msra.mxu0 0
      %2600 = vmatprep.subr.bf16.mxu0 0
      %2601 = vmatpush2.bf16.msra.mxu0 0
      %2602 = vmatprep.subr.bf16.mxu0 0
      %2603 = vmatpush2.bf16.msra.mxu0 0
      %2604 = vmatprep.subr.bf16.mxu0 0
      %2605 = vmatpush2.bf16.msra.mxu0 0
      %2606 = vmatprep.subr.bf16.mxu0 0
      %2607 = vmatpush2.bf16.msra.mxu0 0
      %2608 = vmatprep.subr.bf16.mxu0 0
      %2609 = vmatpush2.bf16.msra.mxu0 0
      %2610 = vmatprep.subr.bf16.mxu0 0
      %2611 = vmatpush2.bf16.msra.mxu0 0
      %2612 = vmatprep.mubr.bf16.mxu0 0
      %2613 = vmatmul.mubr.bf16.gmra.mxu0 %v2528
      %v2614 = vpop.f32.mrf.mxu0
      %v2615 = vadd.f32 0.0, %v2614
      %v2616 = vpop.f32.mrf.mxu0
      %v2617 = vpop.f32.mrf.mxu0
      %v2618 = vpop.f32.mrf.mxu0
      %2619 = vdwg.mxu0
      %v2620 = vadd.f32 %v2510, %v2574
      %v2621 = vadd.f32 %v2511, %v2576
      %v2622 = vadd.f32 %v2512, %v2615
      %2624 = vset.pattern.permute.xlu0 0
      %2625 = vperm.xlu0 %2624, %v507
      %v2626 = vpop.permute.xlu0 %2625
      %v2628 = vmul.f32 %v2620, %v2626
      %v2629 = vmul.f32 %v2621, %v2626
      %v2630 = vmul.f32 %v2622, %v2626
      %2632 = vset.pattern.permute.xlu0 0
      %2633 = vperm.xlu0 %2632, %v508
      %v2634 = vpop.permute.xlu0 %2633
      %v2636 = vadd.f32 %v2628, %v2634
      %v2637 = vadd.f32 %v2629, %v2634
      %v2638 = vadd.f32 %v2630, %v2634
      %v2639 = vmax.f32 %v2636, 0.0
      %v2640 = vmax.f32 %v2637, 0.0
      %v2641 = vmax.f32 %v2638, 0.0
      %vm2642 = vcmp.ge.s32.totalorder %v512, 17
      %vm2643 = vcmp.ge.s32.totalorder %v513, 17
      %vm2644 = vcmp.ge.s32.totalorder %v514, 17
      %vm2645 = vcmp.lt.s32.totalorder %v512, 273
      %vm2646 = vcmp.lt.s32.totalorder %v513, 273
      %vm2647 = vcmp.lt.s32.totalorder %v514, 273
      %vm2648 = vmand %vm2642, %vm2645
      %vm2649 = vmand %vm2643, %vm2646
      %vm2650 = vmand %vm2644, %vm2647
      %v2651 = vsel %vm2648, 1, 0
      %v2652 = vsel %vm2649, 1, 0
      %v2653 = vsel %vm2650, 1, 0
      %vm2654 = vcmp.eq.s32.totalorder %v2651, 1
      %vm2655 = vcmp.eq.s32.totalorder %v2652, 1
      %vm2656 = vcmp.eq.s32.totalorder %v2653, 1
      %v2657 = vsel %vm2654, %v2639, 0.0
      %v2658 = vsel %vm2655, %v2640, 0.0
      %v2659 = vsel %vm2656, %v2641, 0.0
      %v2660 = vpack.c.bf16 %v2657, %v2657
      %v2661 = vpack.c.bf16 %v2658, %v2658
      %v2662 = vpack.c.bf16 %v2659, %v2659
      %vm2663 = vcmp.ge.s32.totalorder %v576, 1
      %vm2664 = vcmp.ge.s32.totalorder %v577, 1
      %v2665 = vsel %vm2663, 1, 0
      %v2666 = vsel %vm2664, 1, 0
      %vm2667 = vcmp.eq.s32.totalorder %v2665, 1
      %vm2668 = vcmp.eq.s32.totalorder %v2666, 1
      %vm2669 = vmpackc.low %vm2668, %vm2667
      %v2670 = vsel %vm2669, 65537, 0
      %v2671 = vlaneseq
      %v2672 = vshrl.u32 %v2671, 7
      %v2673 = vsub.s32 0, %v2672
      %v2674 = vrot.slane %v2670, %v2673
      %v2675 = vlaneseq
      %v2676 = vshrl.u32 %v2675, 7
      %v2677 = vsub.s32 4, %v2676
      %v2678 = vrot.slane %v2670, %v2677
      %vm2679 = vcmp.ne.s16.totalorder %v2674, 0
      %vm2680 = vcmp.ne.s16.totalorder %v2678, 0
      %v2681 = vsel %vm2679, %v2660, 0
      %v2682 = vsel %vm2680, %v2661, 0
      %2686 = vrot.lane.b32.xlu0 %v2660, 127
      %v2687 = vpop.permute.xlu0 %2686
      %2688 = vrot.lane.b32.xlu0 %v2661, 127
      %v2689 = vpop.permute.xlu0 %2688
      %2690 = vrot.lane.b32.xlu0 %v2662, 127
      %v2691 = vpop.permute.xlu0 %2690
      %v2692 = vsel %vm618, %v2687, %v2689
      %v2693 = vsel %vm618, %v2689, %v2691
      %v2695 = vsel %vm621, %v499, 0
      %v2698 = vsel %vm625, %v2692, 0
      %v2701 = vsel %vm625, %v2693, 0
      %2703 = vmatprep.subr.bf16.mxu0 0
      %2704 = vmatpush1.bf16.msra.mxu0 0
      %2705 = vmatprep.subr.bf16.mxu0 0
      %2706 = vmatpush1.bf16.msra.mxu0 0
      %2707 = vmatprep.subr.bf16.mxu0 0
      %2708 = vmatpush1.bf16.msra.mxu0 0
      %2709 = vmatprep.subr.bf16.mxu0 0
      %2710 = vmatpush1.bf16.msra.mxu0 0
      %2711 = vmatprep.subr.bf16.mxu0 0
      %2712 = vmatpush1.bf16.msra.mxu0 0
      %2713 = vmatprep.subr.bf16.mxu0 0
      %2714 = vmatpush1.bf16.msra.mxu0 0
      %2715 = vmatprep.subr.bf16.mxu0 0
      %2716 = vmatpush1.bf16.msra.mxu0 0
      %2717 = vmatprep.subr.bf16.mxu0 %v2701
      %2718 = vmatpush1.bf16.msra.mxu0 %v2698
      %2719 = vmatprep.subr.bf16.mxu0 0
      %2720 = vmatpush2.bf16.msra.mxu0 0
      %2721 = vmatprep.subr.bf16.mxu0 0
      %2722 = vmatpush2.bf16.msra.mxu0 0
      %2723 = vmatprep.subr.bf16.mxu0 0
      %2724 = vmatpush2.bf16.msra.mxu0 0
      %2725 = vmatprep.subr.bf16.mxu0 0
      %2726 = vmatpush2.bf16.msra.mxu0 0
      %2727 = vmatprep.subr.bf16.mxu0 0
      %2728 = vmatpush2.bf16.msra.mxu0 0
      %2729 = vmatprep.subr.bf16.mxu0 0
      %2730 = vmatpush2.bf16.msra.mxu0 0
      %2731 = vmatprep.subr.bf16.mxu0 0
      %2732 = vmatpush2.bf16.msra.mxu0 0
      %2733 = vmatprep.subr.bf16.mxu0 0
      %2734 = vmatpush2.bf16.msra.mxu0 0
      %2735 = vmatprep.mubr.bf16.mxu0 0
      %2736 = vmatmul.mubr.bf16.gmra.mxu0 %v2695
      %v2737 = vpop.f32.mrf.mxu0
      %v2738 = vadd.f32 0.0, %v2737
      %v2739 = vpop.f32.mrf.mxu0
      %v2740 = vadd.f32 0.0, %v2739
      %v2741 = vpop.f32.mrf.mxu0
      %v2742 = vpop.f32.mrf.mxu0
      %2743 = vdwg.mxu0
      %v2745 = vsel %vm621, %v498, 0
      %v2748 = vsel %vm625, %v2681, 0
      %v2751 = vsel %vm625, %v2682, 0
      %2753 = vmatprep.subr.bf16.mxu0 0
      %2754 = vmatpush1.bf16.msra.mxu0 0
      %2755 = vmatprep.subr.bf16.mxu0 0
      %2756 = vmatpush1.bf16.msra.mxu0 0
      %2757 = vmatprep.subr.bf16.mxu0 0
      %2758 = vmatpush1.bf16.msra.mxu0 0
      %2759 = vmatprep.subr.bf16.mxu0 0
      %2760 = vmatpush1.bf16.msra.mxu0 0
      %2761 = vmatprep.subr.bf16.mxu0 0
      %2762 = vmatpush1.bf16.msra.mxu0 0
      %2763 = vmatprep.subr.bf16.mxu0 0
      %2764 = vmatpush1.bf16.msra.mxu0 0
      %2765 = vmatprep.subr.bf16.mxu0 0
      %2766 = vmatpush1.bf16.msra.mxu0 0
      %2767 = vmatprep.subr.bf16.mxu0 %v2751
      %2768 = vmatpush1.bf16.msra.mxu0 %v2748
      %2769 = vmatprep.subr.bf16.mxu0 0
      %2770 = vmatpush2.bf16.msra.mxu0 0
      %2771 = vmatprep.subr.bf16.mxu0 0
      %2772 = vmatpush2.bf16.msra.mxu0 0
      %2773 = vmatprep.subr.bf16.mxu0 0
      %2774 = vmatpush2.bf16.msra.mxu0 0
      %2775 = vmatprep.subr.bf16.mxu0 0
      %2776 = vmatpush2.bf16.msra.mxu0 0
      %2777 = vmatprep.subr.bf16.mxu0 0
      %2778 = vmatpush2.bf16.msra.mxu0 0
      %2779 = vmatprep.subr.bf16.mxu0 0
      %2780 = vmatpush2.bf16.msra.mxu0 0
      %2781 = vmatprep.subr.bf16.mxu0 0
      %2782 = vmatpush2.bf16.msra.mxu0 0
      %2783 = vmatprep.subr.bf16.mxu0 0
      %2784 = vmatpush2.bf16.msra.mxu0 0
      %2785 = vmatprep.mubr.bf16.mxu0 0
      %2786 = vmatmul.mubr.bf16.gmra.mxu0 %v2745
      %v2787 = vpop.f32.mrf.mxu0
      %v2788 = vadd.f32 %v2738, %v2787
      %v2789 = vpop.f32.mrf.mxu0
      %v2790 = vadd.f32 %v2740, %v2789
      %v2791 = vpop.f32.mrf.mxu0
      %v2792 = vpop.f32.mrf.mxu0
      %2793 = vdwg.mxu0
      %vm2794 = vcmp.le.s32.totalorder %v576, 14
      %vm2795 = vcmp.le.s32.totalorder %v577, 14
      %v2796 = vsel %vm2794, 1, 0
      %v2797 = vsel %vm2795, 1, 0
      %vm2798 = vcmp.eq.s32.totalorder %v2796, 1
      %vm2799 = vcmp.eq.s32.totalorder %v2797, 1
      %vm2800 = vmpackc.low %vm2799, %vm2798
      %v2801 = vsel %vm2800, 65537, 0
      %v2802 = vlaneseq
      %v2803 = vshrl.u32 %v2802, 7
      %v2804 = vsub.s32 0, %v2803
      %v2805 = vrot.slane %v2801, %v2804
      %v2806 = vlaneseq
      %v2807 = vshrl.u32 %v2806, 7
      %v2808 = vsub.s32 4, %v2807
      %v2809 = vrot.slane %v2801, %v2808
      %2810 = vrot.lane.b32.xlu0 %v2805, 2
      %v2811 = vpop.permute.xlu0 %2810
      %2812 = vrot.lane.b32.xlu0 %v2809, 2
      %v2813 = vpop.permute.xlu0 %2812
      %v2814 = vsel %vm840, %v2811, %v2813
      %vm2815 = vcmp.ne.s16.totalorder %v2811, 0
      %vm2816 = vcmp.ne.s16.totalorder %v2814, 0
      %vm2817 = vcmp.ne.s16.totalorder %v2813, 0
      %v2818 = vsel %vm2815, %v2660, 0
      %v2819 = vsel %vm2816, %v2661, 0
      %v2820 = vsel %vm2817, %v2662, 0
      %2824 = vrot.lane.b32.xlu0 %v2818, 126
      %v2825 = vpop.permute.xlu0 %2824
      %2826 = vrot.lane.b32.xlu0 %v2819, 126
      %v2827 = vpop.permute.xlu0 %2826
      %2828 = vrot.lane.b32.xlu0 %v2820, 126
      %v2829 = vpop.permute.xlu0 %2828
      %v2830 = vsel %vm858, %v2825, %v2827
      %v2831 = vsel %vm858, %v2827, %v2829
      %v2833 = vsel %vm621, %v500, 0
      %v2836 = vsel %vm625, %v2830, 0
      %v2839 = vsel %vm625, %v2831, 0
      %2841 = vmatprep.subr.bf16.mxu0 0
      %2842 = vmatpush1.bf16.msra.mxu0 0
      %2843 = vmatprep.subr.bf16.mxu0 0
      %2844 = vmatpush1.bf16.msra.mxu0 0
      %2845 = vmatprep.subr.bf16.mxu0 0
      %2846 = vmatpush1.bf16.msra.mxu0 0
      %2847 = vmatprep.subr.bf16.mxu0 0
      %2848 = vmatpush1.bf16.msra.mxu0 0
      %2849 = vmatprep.subr.bf16.mxu0 0
      %2850 = vmatpush1.bf16.msra.mxu0 0
      %2851 = vmatprep.subr.bf16.mxu0 0
      %2852 = vmatpush1.bf16.msra.mxu0 0
      %2853 = vmatprep.subr.bf16.mxu0 0
      %2854 = vmatpush1.bf16.msra.mxu0 0
      %2855 = vmatprep.subr.bf16.mxu0 %v2839
      %2856 = vmatpush1.bf16.msra.mxu0 %v2836
      %2857 = vmatprep.subr.bf16.mxu0 0
      %2858 = vmatpush2.bf16.msra.mxu0 0
      %2859 = vmatprep.subr.bf16.mxu0 0
      %2860 = vmatpush2.bf16.msra.mxu0 0
      %2861 = vmatprep.subr.bf16.mxu0 0
      %2862 = vmatpush2.bf16.msra.mxu0 0
      %2863 = vmatprep.subr.bf16.mxu0 0
      %2864 = vmatpush2.bf16.msra.mxu0 0
      %2865 = vmatprep.subr.bf16.mxu0 0
      %2866 = vmatpush2.bf16.msra.mxu0 0
      %2867 = vmatprep.subr.bf16.mxu0 0
      %2868 = vmatpush2.bf16.msra.mxu0 0
      %2869 = vmatprep.subr.bf16.mxu0 0
      %2870 = vmatpush2.bf16.msra.mxu0 0
      %2871 = vmatprep.subr.bf16.mxu0 0
      %2872 = vmatpush2.bf16.msra.mxu0 0
      %2873 = vmatprep.mubr.bf16.mxu0 0
      %2874 = vmatmul.mubr.bf16.gmra.mxu0 %v2833
      %v2875 = vpop.f32.mrf.mxu0
      %v2876 = vadd.f32 0.0, %v2875
      %v2877 = vpop.f32.mrf.mxu0
      %v2878 = vadd.f32 0.0, %v2877
      %v2879 = vpop.f32.mrf.mxu0
      %v2880 = vpop.f32.mrf.mxu0
      %2881 = vdwg.mxu0
      %v2882 = vadd.f32 %v2788, %v2876
      %v2883 = vadd.f32 %v2790, %v2878
      %2884 = vrot.lane.b32.xlu0 %v2674, 16
      %v2885 = vpop.permute.xlu0 %2884
      %2886 = vrot.lane.b32.xlu0 %v2678, 16
      %v2887 = vpop.permute.xlu0 %2886
      %v2888 = vsel %vm963, %v2885, %v2887
      %vm2889 = vcmp.ne.s16.totalorder %v2885, 0
      %vm2890 = vcmp.ne.s16.totalorder %v2888, 0
      %vm2891 = vcmp.ne.s16.totalorder %v2887, 0
      %v2892 = vsel %vm2889, %v2660, 0
      %v2893 = vsel %vm2890, %v2661, 0
      %v2894 = vsel %vm2891, %v2662, 0
      %2898 = vrot.lane.b32.xlu0 %v2892, 112
      %v2899 = vpop.permute.xlu0 %2898
      %2900 = vrot.lane.b32.xlu0 %v2893, 112
      %v2901 = vpop.permute.xlu0 %2900
      %2902 = vrot.lane.b32.xlu0 %v2894, 112
      %v2903 = vpop.permute.xlu0 %2902
      %v2904 = vsel %vm981, %v2899, %v2901
      %v2905 = vsel %vm981, %v2901, %v2903
      %v2907 = vsel %vm621, %v501, 0
      %v2910 = vsel %vm625, %v2904, 0
      %v2913 = vsel %vm625, %v2905, 0
      %2915 = vmatprep.subr.bf16.mxu0 0
      %2916 = vmatpush1.bf16.msra.mxu0 0
      %2917 = vmatprep.subr.bf16.mxu0 0
      %2918 = vmatpush1.bf16.msra.mxu0 0
      %2919 = vmatprep.subr.bf16.mxu0 0
      %2920 = vmatpush1.bf16.msra.mxu0 0
      %2921 = vmatprep.subr.bf16.mxu0 0
      %2922 = vmatpush1.bf16.msra.mxu0 0
      %2923 = vmatprep.subr.bf16.mxu0 0
      %2924 = vmatpush1.bf16.msra.mxu0 0
      %2925 = vmatprep.subr.bf16.mxu0 0
      %2926 = vmatpush1.bf16.msra.mxu0 0
      %2927 = vmatprep.subr.bf16.mxu0 0
      %2928 = vmatpush1.bf16.msra.mxu0 0
      %2929 = vmatprep.subr.bf16.mxu0 %v2913
      %2930 = vmatpush1.bf16.msra.mxu0 %v2910
      %2931 = vmatprep.subr.bf16.mxu0 0
      %2932 = vmatpush2.bf16.msra.mxu0 0
      %2933 = vmatprep.subr.bf16.mxu0 0
      %2934 = vmatpush2.bf16.msra.mxu0 0
      %2935 = vmatprep.subr.bf16.mxu0 0
      %2936 = vmatpush2.bf16.msra.mxu0 0
      %2937 = vmatprep.subr.bf16.mxu0 0
      %2938 = vmatpush2.bf16.msra.mxu0 0
      %2939 = vmatprep.subr.bf16.mxu0 0
      %2940 = vmatpush2.bf16.msra.mxu0 0
      %2941 = vmatprep.subr.bf16.mxu0 0
      %2942 = vmatpush2.bf16.msra.mxu0 0
      %2943 = vmatprep.subr.bf16.mxu0 0
      %2944 = vmatpush2.bf16.msra.mxu0 0
      %2945 = vmatprep.subr.bf16.mxu0 0
      %2946 = vmatpush2.bf16.msra.mxu0 0
      %2947 = vmatprep.mubr.bf16.mxu0 0
      %2948 = vmatmul.mubr.bf16.gmra.mxu0 %v2907
      %v2949 = vpop.f32.mrf.mxu0
      %v2950 = vadd.f32 0.0, %v2949
      %v2951 = vpop.f32.mrf.mxu0
      %v2952 = vadd.f32 0.0, %v2951
      %v2953 = vpop.f32.mrf.mxu0
      %v2954 = vpop.f32.mrf.mxu0
      %2955 = vdwg.mxu0
      %v2956 = vadd.f32 %v2882, %v2950
      %v2957 = vadd.f32 %v2883, %v2952
      %2958 = vrot.lane.b32.xlu0 %v2660, 111
      %v2959 = vpop.permute.xlu0 %2958
      %2960 = vrot.lane.b32.xlu0 %v2661, 111
      %v2961 = vpop.permute.xlu0 %2960
      %2962 = vrot.lane.b32.xlu0 %v2662, 111
      %v2963 = vpop.permute.xlu0 %2962
      %v2964 = vsel %vm1086, %v2959, %v2961
      %v2965 = vsel %vm1086, %v2961, %v2963
      %v2967 = vsel %vm621, %v502, 0
      %v2970 = vsel %vm625, %v2964, 0
      %v2973 = vsel %vm625, %v2965, 0
      %2975 = vmatprep.subr.bf16.mxu0 0
      %2976 = vmatpush1.bf16.msra.mxu0 0
      %2977 = vmatprep.subr.bf16.mxu0 0
      %2978 = vmatpush1.bf16.msra.mxu0 0
      %2979 = vmatprep.subr.bf16.mxu0 0
      %2980 = vmatpush1.bf16.msra.mxu0 0
      %2981 = vmatprep.subr.bf16.mxu0 0
      %2982 = vmatpush1.bf16.msra.mxu0 0
      %2983 = vmatprep.subr.bf16.mxu0 0
      %2984 = vmatpush1.bf16.msra.mxu0 0
      %2985 = vmatprep.subr.bf16.mxu0 0
      %2986 = vmatpush1.bf16.msra.mxu0 0
      %2987 = vmatprep.subr.bf16.mxu0 0
      %2988 = vmatpush1.bf16.msra.mxu0 0
      %2989 = vmatprep.subr.bf16.mxu0 %v2973
      %2990 = vmatpush1.bf16.msra.mxu0 %v2970
      %2991 = vmatprep.subr.bf16.mxu0 0
      %2992 = vmatpush2.bf16.msra.mxu0 0
      %2993 = vmatprep.subr.bf16.mxu0 0
      %2994 = vmatpush2.bf16.msra.mxu0 0
      %2995 = vmatprep.subr.bf16.mxu0 0
      %2996 = vmatpush2.bf16.msra.mxu0 0
      %2997 = vmatprep.subr.bf16.mxu0 0
      %2998 = vmatpush2.bf16.msra.mxu0 0
      %2999 = vmatprep.subr.bf16.mxu0 0
      %3000 = vmatpush2.bf16.msra.mxu0 0
      %3001 = vmatprep.subr.bf16.mxu0 0
      %3002 = vmatpush2.bf16.msra.mxu0 0
      %3003 = vmatprep.subr.bf16.mxu0 0
      %3004 = vmatpush2.bf16.msra.mxu0 0
      %3005 = vmatprep.subr.bf16.mxu0 0
      %3006 = vmatpush2.bf16.msra.mxu0 0
      %3007 = vmatprep.mubr.bf16.mxu0 0
      %3008 = vmatmul.mubr.bf16.gmra.mxu0 %v2967
      %v3009 = vpop.f32.mrf.mxu0
      %v3010 = vadd.f32 0.0, %v3009
      %v3011 = vpop.f32.mrf.mxu0
      %v3012 = vadd.f32 0.0, %v3011
      %v3013 = vpop.f32.mrf.mxu0
      %v3014 = vpop.f32.mrf.mxu0
      %3015 = vdwg.mxu0
      %v3016 = vadd.f32 %v2956, %v3010
      %v3017 = vadd.f32 %v2957, %v3012
      %3018 = vrot.lane.b32.xlu0 %v2805, 18
      %v3019 = vpop.permute.xlu0 %3018
      %3020 = vrot.lane.b32.xlu0 %v2809, 18
      %v3021 = vpop.permute.xlu0 %3020
      %v3022 = vsel %vm1191, %v3019, %v3021
      %vm3023 = vcmp.ne.s16.totalorder %v3019, 0
      %vm3024 = vcmp.ne.s16.totalorder %v3022, 0
      %vm3025 = vcmp.ne.s16.totalorder %v3021, 0
      %v3026 = vsel %vm3023, %v2660, 0
      %v3027 = vsel %vm3024, %v2661, 0
      %v3028 = vsel %vm3025, %v2662, 0
      %3032 = vrot.lane.b32.xlu0 %v3026, 110
      %v3033 = vpop.permute.xlu0 %3032
      %3034 = vrot.lane.b32.xlu0 %v3027, 110
      %v3035 = vpop.permute.xlu0 %3034
      %3036 = vrot.lane.b32.xlu0 %v3028, 110
      %v3037 = vpop.permute.xlu0 %3036
      %v3038 = vsel %vm1209, %v3033, %v3035
      %v3039 = vsel %vm1209, %v3035, %v3037
      %v3041 = vsel %vm621, %v503, 0
      %v3044 = vsel %vm625, %v3038, 0
      %v3047 = vsel %vm625, %v3039, 0
      %3049 = vmatprep.subr.bf16.mxu0 0
      %3050 = vmatpush1.bf16.msra.mxu0 0
      %3051 = vmatprep.subr.bf16.mxu0 0
      %3052 = vmatpush1.bf16.msra.mxu0 0
      %3053 = vmatprep.subr.bf16.mxu0 0
      %3054 = vmatpush1.bf16.msra.mxu0 0
      %3055 = vmatprep.subr.bf16.mxu0 0
      %3056 = vmatpush1.bf16.msra.mxu0 0
      %3057 = vmatprep.subr.bf16.mxu0 0
      %3058 = vmatpush1.bf16.msra.mxu0 0
      %3059 = vmatprep.subr.bf16.mxu0 0
      %3060 = vmatpush1.bf16.msra.mxu0 0
      %3061 = vmatprep.subr.bf16.mxu0 0
      %3062 = vmatpush1.bf16.msra.mxu0 0
      %3063 = vmatprep.subr.bf16.mxu0 %v3047
      %3064 = vmatpush1.bf16.msra.mxu0 %v3044
      %3065 = vmatprep.subr.bf16.mxu0 0
      %3066 = vmatpush2.bf16.msra.mxu0 0
      %3067 = vmatprep.subr.bf16.mxu0 0
      %3068 = vmatpush2.bf16.msra.mxu0 0
      %3069 = vmatprep.subr.bf16.mxu0 0
      %3070 = vmatpush2.bf16.msra.mxu0 0
      %3071 = vmatprep.subr.bf16.mxu0 0
      %3072 = vmatpush2.bf16.msra.mxu0 0
      %3073 = vmatprep.subr.bf16.mxu0 0
      %3074 = vmatpush2.bf16.msra.mxu0 0
      %3075 = vmatprep.subr.bf16.mxu0 0
      %3076 = vmatpush2.bf16.msra.mxu0 0
      %3077 = vmatprep.subr.bf16.mxu0 0
      %3078 = vmatpush2.bf16.msra.mxu0 0
      %3079 = vmatprep.subr.bf16.mxu0 0
      %3080 = vmatpush2.bf16.msra.mxu0 0
      %3081 = vmatprep.mubr.bf16.mxu0 0
      %3082 = vmatmul.mubr.bf16.gmra.mxu0 %v3041
      %v3083 = vpop.f32.mrf.mxu0
      %v3084 = vadd.f32 0.0, %v3083
      %v3085 = vpop.f32.mrf.mxu0
      %v3086 = vadd.f32 0.0, %v3085
      %v3087 = vpop.f32.mrf.mxu0
      %v3088 = vpop.f32.mrf.mxu0
      %3089 = vdwg.mxu0
      %v3090 = vadd.f32 %v3016, %v3084
      %v3091 = vadd.f32 %v3017, %v3086
      %3092 = vrot.lane.b32.xlu0 %v2674, 32
      %v3093 = vpop.permute.xlu0 %3092
      %3094 = vrot.lane.b32.xlu0 %v2678, 32
      %v3095 = vpop.permute.xlu0 %3094
      %v3096 = vsel %vm1314, %v3093, %v3095
      %vm3097 = vcmp.ne.s16.totalorder %v3093, 0
      %vm3098 = vcmp.ne.s16.totalorder %v3096, 0
      %vm3099 = vcmp.ne.s16.totalorder %v3095, 0
      %v3100 = vsel %vm3097, %v2660, 0
      %v3101 = vsel %vm3098, %v2661, 0
      %v3102 = vsel %vm3099, %v2662, 0
      %3106 = vrot.lane.b32.xlu0 %v3100, 96
      %v3107 = vpop.permute.xlu0 %3106
      %3108 = vrot.lane.b32.xlu0 %v3101, 96
      %v3109 = vpop.permute.xlu0 %3108
      %3110 = vrot.lane.b32.xlu0 %v3102, 96
      %v3111 = vpop.permute.xlu0 %3110
      %v3112 = vsel %vm1332, %v3107, %v3109
      %v3113 = vsel %vm1332, %v3109, %v3111
      %v3115 = vsel %vm621, %v504, 0
      %v3118 = vsel %vm625, %v3112, 0
      %v3121 = vsel %vm625, %v3113, 0
      %3123 = vmatprep.subr.bf16.mxu0 0
      %3124 = vmatpush1.bf16.msra.mxu0 0
      %3125 = vmatprep.subr.bf16.mxu0 0
      %3126 = vmatpush1.bf16.msra.mxu0 0
      %3127 = vmatprep.subr.bf16.mxu0 0
      %3128 = vmatpush1.bf16.msra.mxu0 0
      %3129 = vmatprep.subr.bf16.mxu0 0
      %3130 = vmatpush1.bf16.msra.mxu0 0
      %3131 = vmatprep.subr.bf16.mxu0 0
      %3132 = vmatpush1.bf16.msra.mxu0 0
      %3133 = vmatprep.subr.bf16.mxu0 0
      %3134 = vmatpush1.bf16.msra.mxu0 0
      %3135 = vmatprep.subr.bf16.mxu0 0
      %3136 = vmatpush1.bf16.msra.mxu0 0
      %3137 = vmatprep.subr.bf16.mxu0 %v3121
      %3138 = vmatpush1.bf16.msra.mxu0 %v3118
      %3139 = vmatprep.subr.bf16.mxu0 0
      %3140 = vmatpush2.bf16.msra.mxu0 0
      %3141 = vmatprep.subr.bf16.mxu0 0
      %3142 = vmatpush2.bf16.msra.mxu0 0
      %3143 = vmatprep.subr.bf16.mxu0 0
      %3144 = vmatpush2.bf16.msra.mxu0 0
      %3145 = vmatprep.subr.bf16.mxu0 0
      %3146 = vmatpush2.bf16.msra.mxu0 0
      %3147 = vmatprep.subr.bf16.mxu0 0
      %3148 = vmatpush2.bf16.msra.mxu0 0
      %3149 = vmatprep.subr.bf16.mxu0 0
      %3150 = vmatpush2.bf16.msra.mxu0 0
      %3151 = vmatprep.subr.bf16.mxu0 0
      %3152 = vmatpush2.bf16.msra.mxu0 0
      %3153 = vmatprep.subr.bf16.mxu0 0
      %3154 = vmatpush2.bf16.msra.mxu0 0
      %3155 = vmatprep.mubr.bf16.mxu0 0
      %3156 = vmatmul.mubr.bf16.gmra.mxu0 %v3115
      %v3157 = vpop.f32.mrf.mxu0
      %v3158 = vadd.f32 0.0, %v3157
      %v3159 = vpop.f32.mrf.mxu0
      %v3160 = vadd.f32 0.0, %v3159
      %v3161 = vpop.f32.mrf.mxu0
      %v3162 = vpop.f32.mrf.mxu0
      %3163 = vdwg.mxu0
      %v3164 = vadd.f32 %v3090, %v3158
      %v3165 = vadd.f32 %v3091, %v3160
      %3166 = vrot.lane.b32.xlu0 %v2660, 95
      %v3167 = vpop.permute.xlu0 %3166
      %3168 = vrot.lane.b32.xlu0 %v2661, 95
      %v3169 = vpop.permute.xlu0 %3168
      %3170 = vrot.lane.b32.xlu0 %v2662, 95
      %v3171 = vpop.permute.xlu0 %3170
      %v3172 = vsel %vm1437, %v3167, %v3169
      %v3173 = vsel %vm1437, %v3169, %v3171
      %v3175 = vsel %vm621, %v505, 0
      %v3178 = vsel %vm625, %v3172, 0
      %v3181 = vsel %vm625, %v3173, 0
      %3183 = vmatprep.subr.bf16.mxu0 0
      %3184 = vmatpush1.bf16.msra.mxu0 0
      %3185 = vmatprep.subr.bf16.mxu0 0
      %3186 = vmatpush1.bf16.msra.mxu0 0
      %3187 = vmatprep.subr.bf16.mxu0 0
      %3188 = vmatpush1.bf16.msra.mxu0 0
      %3189 = vmatprep.subr.bf16.mxu0 0
      %3190 = vmatpush1.bf16.msra.mxu0 0
      %3191 = vmatprep.subr.bf16.mxu0 0
      %3192 = vmatpush1.bf16.msra.mxu0 0
      %3193 = vmatprep.subr.bf16.mxu0 0
      %3194 = vmatpush1.bf16.msra.mxu0 0
      %3195 = vmatprep.subr.bf16.mxu0 0
      %3196 = vmatpush1.bf16.msra.mxu0 0
      %3197 = vmatprep.subr.bf16.mxu0 %v3181
      %3198 = vmatpush1.bf16.msra.mxu0 %v3178
      %3199 = vmatprep.subr.bf16.mxu0 0
      %3200 = vmatpush2.bf16.msra.mxu0 0
      %3201 = vmatprep.subr.bf16.mxu0 0
      %3202 = vmatpush2.bf16.msra.mxu0 0
      %3203 = vmatprep.subr.bf16.mxu0 0
      %3204 = vmatpush2.bf16.msra.mxu0 0
      %3205 = vmatprep.subr.bf16.mxu0 0
      %3206 = vmatpush2.bf16.msra.mxu0 0
      %3207 = vmatprep.subr.bf16.mxu0 0
      %3208 = vmatpush2.bf16.msra.mxu0 0
      %3209 = vmatprep.subr.bf16.mxu0 0
      %3210 = vmatpush2.bf16.msra.mxu0 0
      %3211 = vmatprep.subr.bf16.mxu0 0
      %3212 = vmatpush2.bf16.msra.mxu0 0
      %3213 = vmatprep.subr.bf16.mxu0 0
      %3214 = vmatpush2.bf16.msra.mxu0 0
      %3215 = vmatprep.mubr.bf16.mxu0 0
      %3216 = vmatmul.mubr.bf16.gmra.mxu0 %v3175
      %v3217 = vpop.f32.mrf.mxu0
      %v3218 = vadd.f32 0.0, %v3217
      %v3219 = vpop.f32.mrf.mxu0
      %v3220 = vadd.f32 0.0, %v3219
      %v3221 = vpop.f32.mrf.mxu0
      %v3222 = vpop.f32.mrf.mxu0
      %3223 = vdwg.mxu0
      %v3224 = vadd.f32 %v3164, %v3218
      %v3225 = vadd.f32 %v3165, %v3220
      %3226 = vrot.lane.b32.xlu0 %v2805, 34
      %v3227 = vpop.permute.xlu0 %3226
      %3228 = vrot.lane.b32.xlu0 %v2809, 34
      %v3229 = vpop.permute.xlu0 %3228
      %v3230 = vsel %vm1542, %v3227, %v3229
      %vm3231 = vcmp.ne.s16.totalorder %v3227, 0
      %vm3232 = vcmp.ne.s16.totalorder %v3230, 0
      %vm3233 = vcmp.ne.s16.totalorder %v3229, 0
      %v3234 = vsel %vm3231, %v2660, 0
      %v3235 = vsel %vm3232, %v2661, 0
      %v3236 = vsel %vm3233, %v2662, 0
      %3240 = vrot.lane.b32.xlu0 %v3234, 94
      %v3241 = vpop.permute.xlu0 %3240
      %3242 = vrot.lane.b32.xlu0 %v3235, 94
      %v3243 = vpop.permute.xlu0 %3242
      %3244 = vrot.lane.b32.xlu0 %v3236, 94
      %v3245 = vpop.permute.xlu0 %3244
      %v3246 = vsel %vm1560, %v3241, %v3243
      %v3247 = vsel %vm1560, %v3243, %v3245
      %v3249 = vsel %vm621, %v506, 0
      %v3252 = vsel %vm625, %v3246, 0
      %v3255 = vsel %vm625, %v3247, 0
      %3257 = vmatprep.subr.bf16.mxu0 0
      %3258 = vmatpush1.bf16.msra.mxu0 0
      %3259 = vmatprep.subr.bf16.mxu0 0
      %3260 = vmatpush1.bf16.msra.mxu0 0
      %3261 = vmatprep.subr.bf16.mxu0 0
      %3262 = vmatpush1.bf16.msra.mxu0 0
      %3263 = vmatprep.subr.bf16.mxu0 0
      %3264 = vmatpush1.bf16.msra.mxu0 0
      %3265 = vmatprep.subr.bf16.mxu0 0
      %3266 = vmatpush1.bf16.msra.mxu0 0
      %3267 = vmatprep.subr.bf16.mxu0 0
      %3268 = vmatpush1.bf16.msra.mxu0 0
      %3269 = vmatprep.subr.bf16.mxu0 0
      %3270 = vmatpush1.bf16.msra.mxu0 0
      %3271 = vmatprep.subr.bf16.mxu0 %v3255
      %3272 = vmatpush1.bf16.msra.mxu0 %v3252
      %3273 = vmatprep.subr.bf16.mxu0 0
      %3274 = vmatpush2.bf16.msra.mxu0 0
      %3275 = vmatprep.subr.bf16.mxu0 0
      %3276 = vmatpush2.bf16.msra.mxu0 0
      %3277 = vmatprep.subr.bf16.mxu0 0
      %3278 = vmatpush2.bf16.msra.mxu0 0
      %3279 = vmatprep.subr.bf16.mxu0 0
      %3280 = vmatpush2.bf16.msra.mxu0 0
      %3281 = vmatprep.subr.bf16.mxu0 0
      %3282 = vmatpush2.bf16.msra.mxu0 0
      %3283 = vmatprep.subr.bf16.mxu0 0
      %3284 = vmatpush2.bf16.msra.mxu0 0
      %3285 = vmatprep.subr.bf16.mxu0 0
      %3286 = vmatpush2.bf16.msra.mxu0 0
      %3287 = vmatprep.subr.bf16.mxu0 0
      %3288 = vmatpush2.bf16.msra.mxu0 0
      %3289 = vmatprep.mubr.bf16.mxu0 0
      %3290 = vmatmul.mubr.bf16.gmra.mxu0 %v3249
      %v3291 = vpop.f32.mrf.mxu0
      %v3292 = vadd.f32 0.0, %v3291
      %v3293 = vpop.f32.mrf.mxu0
      %v3294 = vadd.f32 0.0, %v3293
      %v3295 = vpop.f32.mrf.mxu0
      %v3296 = vpop.f32.mrf.mxu0
      %3297 = vdwg.mxu0
      %v3298 = vadd.f32 %v3224, %v3292
      %v3299 = vadd.f32 %v3225, %v3294
      %3301 = vset.pattern.permute.xlu0 0
      %3302 = vperm.xlu0 %3301, %v509
      %v3303 = vpop.permute.xlu0 %3302
      %v3305 = vmul.f32 %v3298, %v3303
      %v3306 = vmul.f32 %v3299, %v3303
      %3308 = vset.pattern.permute.xlu0 0
      %3309 = vperm.xlu0 %3308, %v510
      %v3310 = vpop.permute.xlu0 %3309
      %v3312 = vadd.f32 %v3305, %v3310
      %v3313 = vadd.f32 %v3306, %v3310
      %v3314 = vmax.f32 %v3312, 0.0
      %v3315 = vmax.f32 %v3313, 0.0
      %v3318 = vcombine.low %v3314, %v3315
      %3320 = vst [vmem:[%s295] sm:$0xff] %v3318
      %p3321 = scmp.lt.s32.totalorder %s18, 1
      %s3322 = scalar_select %p3321, %s18, 1
      %s3323 = smul.addr %s3322, 2
      %s3324 = smul.addr %s3323, 4
      %s3325 = scalar_lea.vmem %s7, %s3324
      // Predicated region
      $region49: #{up_forward.1} parent=47 // pred_check
        %p3326 = pneg %p193
      $region50: #{up_forward.1} parent=47 // pred_check_branch
        %3328 = sbr.rel (%p3326) target = $region52
      $region51: #{up_forward.1} parent=47 // pred_region
        _
      $region52: #{up_forward.1} parent=47 // pred_fallthru
        _
    $region48: #{up_forward.1} parent=5 // pred_fallthru
      _
    %p3329 = scmp.le.s32.totalorder 2, %s13
    // Predicated region
    $region53: #{up_forward.1} parent=5 // pred_check
      %p3330 = pneg %p3329
    $region54: #{up_forward.1} parent=5 // pred_check_branch
      %3332 = sbr.rel (%p3330) target = $region56
    $region55: #{up_forward.1} parent=5 // pred_region
      %s3333 = ssub.s32 %s13, 2
      // Predicated region
      $region57: #{up_forward.1} parent=55 // pred_check
        %p3334 = pneg %p199
      $region58: #{up_forward.1} parent=55 // pred_check_branch
        %3336 = sbr.rel (%p3334) target = $region60
      $region59: #{up_forward.1} parent=55 // pred_region
        %p3337 = scmp.lt.s32.totalorder %s19, 1
        %s3338 = scalar_select %p3337, %s19, 1
        %s3339 = smul.addr %s3338, 2
        %s3340 = smul.addr %s3339, 4
        %s3341 = scalar_lea.vmem %s7, %s3340
      $region60: #{up_forward.1} parent=55 // pred_fallthru
        _
    $region56: #{up_forward.1} parent=5 // pred_fallthru
      _
  $region6: #{up_forward.1} parent=0 // loop_footer
    %s17 = sadd.s32 1, %s13
  $region7: #{up_forward.1} parent=0 // loop_footer_branch
    %12 = sbr.rel target = $region3
  $region8: #{up_forward.1} parent=0 // loop_exit
    _

</llo_original>
